<compile_context>
chip_gen: v7x
topology: tpu7x:2x2x1
jax: 0.10.0
libtpu: 0.0.40
codegen_flags: <defaults>
</compile_context>

<pallas_src>
import jax
import jax.numpy as jnp
from jax import lax
from jax.experimental import pallas as pl
from jax.experimental.pallas import tpu as pltpu

EPS = 1e-5
LANE = 128
VMEM_LIMIT = 32 * 1024 * 1024   # explicit scoped-VMEM ceiling (safe on v5e/v6e/v7x)


# ----------------------------------------------------------------------------
# small helpers
# ----------------------------------------------------------------------------
def _round_up(n, m):
    return ((n + m - 1) // m) * m


def _largest_divisor_leq(n, cap, multiple=1):
    cap = max(1, min(cap, n))
    for t in range(cap, 0, -1):
        if n % t == 0 and t % multiple == 0:
            return t
    return n   # fall back to the full dimension (always a legal block)


def _pad_to(a, shape, value=0.0):
    pads = [(0, s - d) for d, s in zip(a.shape, shape)]
    return jnp.pad(a, pads, constant_values=value)


def _bn_apply(v, s_ref, g_ref, b_ref, inv_count):
    """Normalize v [rows, C] with accumulated (sum, sumsq) stats s_ref [2, C]."""
    mu = s_ref[0:1, :] * inv_count
    var = s_ref[1:2, :] * inv_count - mu * mu
    scale = lax.rsqrt(var + EPS) * g_ref[...]
    return (v - mu) * scale + b_ref[...]


def _expand_compute(x_ref, w_ref, use_mxu):
    """1x1 expansion conv on one row tile: [TM, Cin] x [Cin, Cexp_p]."""
    if use_mxu:
        # large Cin: bf16 operands for full MXU throughput, f32 accumulate
        return jnp.dot(x_ref[...].astype(jnp.bfloat16), w_ref[...],
                       preferred_element_type=jnp.float32)
    # tiny Cin (e.g. 4): a K=4 matmul starves the MXU; do Cin VPU FMAs instead
    x = x_ref[...]
    w = w_ref[...]
    acc = x[:, 0:1] * w[0:1, :]
    for k in range(1, x.shape[1]):
        acc = acc + x[:, k:k + 1] * w[k:k + 1, :]
    return acc


# ----------------------------------------------------------------------------
# forward pass
# ----------------------------------------------------------------------------
def inverted_residual_forward(x_nchw, p):
    N, Cin, H, W = x_nchw.shape
    Cexp = p["w1"].shape[1]
    Cout = p["w3"].shape[1]
    Ho = (H + 2 - 3) // 2 + 1
    Wo = (W + 2 - 3) // 2 + 1
    M = N * H * W
    M2 = N * Ho * Wo
    Cexp_p = _round_up(Cexp, LANE)     # lane-dense channel padding
    Cout_p = _round_up(Cout, LANE)
    f32 = jnp.float32
    use_mxu = Cin >= 16

    # ---- padded (lane-dense) parameters -------------------------------------
    w1p = _pad_to(p["w1"].astype(f32), (Cin, Cexp_p))
    if use_mxu:
        w1p = w1p.astype(jnp.bfloat16)
    g1p = _pad_to(p["g1"], (1, Cexp_p), 1.0)
    b1p = _pad_to(p["b1"], (1, Cexp_p))
    dwp = _pad_to(p["dw"], (9, Cexp_p))
    g2p = _pad_to(p["g2"], (1, Cexp_p), 1.0)
    b2p = _pad_to(p["b2"], (1, Cexp_p))
    w3p = _pad_to(p["w3"], (Cexp_p, Cout_p)).astype(jnp.bfloat16)   # MXU operand
    g3p = _pad_to(p["g3"], (1, Cout_p), 1.0)
    bb3p = _pad_to(p["bb3"], (1, Cout_p))
    # NOTE: conv bias b3 is intentionally NOT used: a per-channel constant
    # added before batch-stat BatchNorm cancels exactly in (z - mean(z)).

    # =========================================================================
    # Stage A: 1x1 expand conv + BN(batch stats) + ReLU6   (two passes over M)
    # =========================================================================
    x2d = jnp.transpose(x_nchw, (0, 2, 3, 1)).reshape(M, Cin)   # NHWC rows

    # Row tile: kept small here so the toy problem exercises multi-tile
    # accumulation; bump the cap (512-2048) / re-derive per generation.
    TM = _largest_divisor_leq(M, min(1024, max(8, M // 2)), multiple=8)
    nM = M // TM
    inv_m = 1.0 / M

    def expand_stats_kernel(x_ref, w_ref, s_ref):
        y = _expand_compute(x_ref, w_ref, use_mxu)            # [TM, Cexp_p]

        @pl.when(pl.program_id(0) == 0)
        def _():
            s_ref[...] = jnp.zeros_like(s_ref)

        s_ref[0:1, :] += jnp.sum(y, axis=0, keepdims=True)
        s_ref[1:2, :] += jnp.sum(y * y, axis=0, keepdims=True)

    stats1 = pl.pallas_call(
        expand_stats_kernel,
        out_shape=jax.ShapeDtypeStruct((2, Cexp_p), f32),
        grid=(nM,),
        in_specs=[
            pl.BlockSpec((TM, Cin), lambda i: (i, 0)),
            pl.BlockSpec((Cin, Cexp_p), lambda i: (0, 0)),
        ],
        out_specs=pl.BlockSpec((2, Cexp_p), lambda i: (0, 0)),   # resident accumulator
        compiler_params=pltpu.CompilerParams(
            dimension_semantics=("arbitrary",),
            vmem_limit_bytes=VMEM_LIMIT),
    )(x2d, w1p)

    def expand_norm_kernel(x_ref, w_ref, s_ref, g_ref, b_ref, y_ref):
        y = _expand_compute(x_ref, w_ref, use_mxu)
        y = _bn_apply(y, s_ref, g_ref, b_ref, inv_m)
        y_ref[...] = jnp.clip(y, 0.0, 6.0)

    y2d = pl.pallas_call(
        expand_norm_kernel,
        out_shape=jax.ShapeDtypeStruct((M, Cexp_p), f32),
        grid=(nM,),
        in_specs=[
            pl.BlockSpec((TM, Cin), lambda i: (i, 0)),
            pl.BlockSpec((Cin, Cexp_p), lambda i: (0, 0)),
            pl.BlockSpec((2, Cexp_p), lambda i: (0, 0)),
            pl.BlockSpec((1, Cexp_p), lambda i: (0, 0)),
            pl.BlockSpec((1, Cexp_p), lambda i: (0, 0)),
        ],
        out_specs=pl.BlockSpec((TM, Cexp_p), lambda i: (i, 0)),
        compiler_params=pltpu.CompilerParams(
            dimension_semantics=("parallel",),
            vmem_limit_bytes=VMEM_LIMIT),
        cost_estimate=pl.CostEstimate(
            flops=2 * M * Cin * Cexp_p + 8 * M * Cexp_p,
            transcendentals=0,
            bytes_accessed=4 * (2 * M * Cin + M * Cexp_p)),
    )(x2d, w1p, stats1, g1p, b1p)

    # =========================================================================
    # Stage B/C: depthwise 3x3/s2 + BN + ReLU6, then 1x1 projection + BN
    # =========================================================================
    # Wrapper glue: spatial zero-pad + even/odd parity split so every one of
    # the 9 depthwise taps is a *contiguous* in-kernel slice (no strided loads
    # and no 9x im2col materialization in HBM).
    y = y2d.reshape(N, H, W, Cexp_p)
    HP, WP = 2 * Ho + 2, 2 * Wo + 2
    yp = jnp.pad(y, ((0, 0), (1, HP - H - 1), (1, WP - W - 1), (0, 0)))
    p_ee = yp[:, 0::2, 0::2, :]        # [N, Ho+1, Wo+1, Cexp_p]
    p_eo = yp[:, 0::2, 1::2, :]
    p_oe = yp[:, 1::2, 0::2, :]
    p_oo = yp[:, 1::2, 1::2, :]
    Hh, Wh = Ho + 1, Wo + 1

    # output-row block (second grid axis) -- sized so the toy exercises >1 block
    cap = max(1, 512 // max(1, Wo))
    if Ho >= 2:
        cap = min(cap, Ho // 2)
    THo = _largest_divisor_leq(Ho, cap)
    nHB = Ho // THo
    inv_m2 = 1.0 / M2

    def _dw_accum(pref, dw_ref, ho0):
        """9 unrolled per-lane FMAs -> depthwise output [THo*Wo, Cexp_p]."""
        dwv = dw_ref[...]                                  # [9, Cexp_p]
        acc = None
        for kh in range(3):
            for kw in range(3):
                src = pref[(kh % 2, kw % 2)]
                tap = src[0, pl.ds(ho0 + kh // 2, THo),
                          (kw // 2):(kw // 2) + Wo, :]     # [THo, Wo, C]
                tap = tap.reshape(THo * Wo, Cexp_p)
                term = tap * dwv[kh * 3 + kw:kh * 3 + kw + 1, :]
                acc = term if acc is None else acc + term
        return acc

    parity_spec = pl.BlockSpec((1, Hh, Wh, Cexp_p), lambda n, hb: (n, 0, 0, 0))
    dw_spec = pl.BlockSpec((9, Cexp_p), lambda n, hb: (0, 0))
    vecC_spec = pl.BlockSpec((1, Cexp_p), lambda n, hb: (0, 0))
    stats2_spec = pl.BlockSpec((2, Cexp_p), lambda n, hb: (0, 0))

    def dw_stats_kernel(ee_ref, eo_ref, oe_ref, oo_ref, dw_ref, s_ref):
        pref = {(0, 0): ee_ref, (0, 1): eo_ref, (1, 0): oe_ref, (1, 1): oo_ref}
        ho0 = pl.multiple_of(pl.program_id(1) * THo, THo)
        acc = _dw_accum(pref, dw_ref, ho0)                 # [THo*Wo, Cexp_p]

        @pl.when(jnp.logical_and(pl.program_id(0) == 0, pl.program_id(1) == 0))
        def _():
            s_ref[...] = jnp.zeros_like(s_ref)

        s_ref[0:1, :] += jnp.sum(acc, axis=0, keepdims=True)
        s_ref[1:2, :] += jnp.sum(acc * acc, axis=0, keepdims=True)

    stats2 = pl.pallas_call(
        dw_stats_kernel,
        out_shape=jax.ShapeDtypeStruct((2, Cexp_p), f32),
        grid=(N, nHB),
        in_specs=[parity_spec] * 4 + [dw_spec],
        out_specs=stats2_spec,
        compiler_params=pltpu.CompilerParams(
            dimension_semantics=("arbitrary", "arbitrary"),
            vmem_limit_bytes=VMEM_LIMIT),
    )(p_ee, p_eo, p_oe, p_oo, dwp)

    def dw_project_kernel(ee_ref, eo_ref, oe_ref, oo_ref, dw_ref, s2_ref,
                          g2_ref, b2_ref, w3_ref, z_ref, s3_ref):
        pref = {(0, 0): ee_ref, (0, 1): eo_ref, (1, 0): oe_ref, (1, 1): oo_ref}
        ho0 = pl.multiple_of(pl.program_id(1) * THo, THo)
        acc = _dw_accum(pref, dw_ref, ho0)                 # recompute (cheap FMAs)
        h = jnp.clip(_bn_apply(acc, s2_ref, g2_ref, b2_ref, inv_m2), 0.0, 6.0)
        # bf16 MXU operands, f32 accumulation; conv bias b3 dropped (BN cancels it)
        z = jnp.dot(h.astype(jnp.bfloat16), w3_ref[...],
                    preferred_element_type=jnp.float32)    # [THo*Wo, Cout_p]

        @pl.when(jnp.logical_and(pl.program_id(0) == 0, pl.program_id(1) == 0))
        def _():
            s3_ref[...] = jnp.zeros_like(s3_ref)

        s3_ref[0:1, :] += jnp.sum(z, axis=0, keepdims=True)
        s3_ref[1:2, :] += jnp.sum(z * z, axis=0, keepdims=True)
        z_ref[...] = z.reshape(1, THo, Wo, Cout_p)

    z_pre, stats3 = pl.pallas_call(
        dw_project_kernel,
        out_shape=(jax.ShapeDtypeStruct((N, Ho, Wo, Cout_p), f32),
                   jax.ShapeDtypeStruct((2, Cout_p), f32)),
        grid=(N, nHB),
        in_specs=[parity_spec] * 4 + [
            dw_spec,
            stats2_spec,
            vecC_spec,
            vecC_spec,
            pl.BlockSpec((Cexp_p, Cout_p), lambda n, hb: (0, 0)),
        ],
        out_specs=(pl.BlockSpec((1, THo, Wo, Cout_p), lambda n, hb: (n, hb, 0, 0)),
                   pl.BlockSpec((2, Cout_p), lambda n, hb: (0, 0))),
        compiler_params=pltpu.CompilerParams(
            dimension_semantics=("arbitrary", "arbitrary"),
            vmem_limit_bytes=VMEM_LIMIT),
        cost_estimate=pl.CostEstimate(
            flops=2 * M2 * Cexp_p * Cout_p + 24 * M2 * Cexp_p,
            transcendentals=0,
            bytes_accessed=4 * (N * HP * WP * Cexp_p + M2 * Cout_p)),
    )(p_ee, p_eo, p_oe, p_oo, dwp, stats2, g2p, b2p, w3p)

    def bn3_kernel(z_ref, s3_ref, g3_ref, b3_ref, o_ref):
        z = z_ref[...].reshape(THo * Wo, Cout_p)
        o = _bn_apply(z, s3_ref, g3_ref, b3_ref, inv_m2)
        o_ref[...] = o.reshape(1, THo, Wo, Cout_p)

    out4 = pl.pallas_call(
        bn3_kernel,
        out_shape=jax.ShapeDtypeStruct((N, Ho, Wo, Cout_p), f32),
        grid=(N, nHB),
        in_specs=[
            pl.BlockSpec((1, THo, Wo, Cout_p), lambda n, hb: (n, hb, 0, 0)),
            pl.BlockSpec((2, Cout_p), lambda n, hb: (0, 0)),
            pl.BlockSpec((1, Cout_p), lambda n, hb: (0, 0)),
            pl.BlockSpec((1, Cout_p), lambda n, hb: (0, 0)),
        ],
        out_specs=pl.BlockSpec((1, THo, Wo, Cout_p), lambda n, hb: (n, hb, 0, 0)),
        compiler_params=pltpu.CompilerParams(
            dimension_semantics=("parallel", "parallel"),
            vmem_limit_bytes=VMEM_LIMIT),
    )(z_pre, stats3, g3p, bb3p)

    out = out4[:, :, :, :Cout]                # drop channel padding
    return jnp.transpose(out, (0, 3, 1, 2))   # back to NCHW


# ----------------------------------------------------------------------------
# Deterministic parameter construction (synthetic, matches module shapes)
# ----------------------------------------------------------------------------
def make_params(key, cin, cout, expansion_factor=6, ks=3):
    cexp = cin * expansion_factor
    k1, k2, k3, k4 = jax.random.split(key, 4)
    return {
        "w1": 0.1 * jax.random.normal(k1, (cin, cexp), jnp.float32),      # Conv2d(cin, cexp, 1)
        "dw": 0.1 * jax.random.normal(k2, (ks * ks, cexp), jnp.float32),  # depthwise 3x3
        "w3": 0.1 * jax.random.normal(k3, (cexp, cout), jnp.float32),     # Conv2d(cexp, cout, 1)
        "b3": 0.1 * jax.random.normal(k4, (1, cout), jnp.float32),        # its bias (cancels in BN)
        "g1": jnp.ones((1, cexp), jnp.float32), "b1": jnp.zeros((1, cexp), jnp.float32),
        "g2": jnp.ones((1, cexp), jnp.float32), "b2": jnp.zeros((1, cexp), jnp.float32),
        "g3": jnp.ones((1, cout), jnp.float32), "bb3": jnp.zeros((1, cout), jnp.float32),
    }


# ----------------------------------------------------------------------------
# Pure-JAX reference (lax.conv, all f32, includes the b3 bias) for checking
# ----------------------------------------------------------------------------
def reference_forward(x_nchw, p):
    dn = ("NCHW", "OIHW", "NCHW")

    def bn(y, g, b):
        mu = jnp.mean(y, axis=(0, 2, 3), keepdims=True)
        var = jnp.mean(jnp.square(y - mu), axis=(0, 2, 3), keepdims=True)
        return (y - mu) * lax.rsqrt(var + EPS) * g.reshape(1, -1, 1, 1) + b.reshape(1, -1, 1, 1)

    cexp = p["w1"].shape[1]
    w1 = p["w1"].T[:, :, None, None]
    y = lax.conv_general_dilated(x_nchw, w1, (1, 1), "VALID", dimension_numbers=dn)
    y = jnp.clip(bn(y, p["g1"], p["b1"]), 0.0, 6.0)

    dw = p["dw"].T.reshape(cexp, 1, 3, 3)
    y = lax.conv_general_dilated(y, dw, (2, 2), ((1, 1), (1, 1)),
                                 feature_group_count=cexp, dimension_numbers=dn)
    y = jnp.clip(bn(y, p["g2"], p["b2"]), 0.0, 6.0)

    w3 = p["w3"].T[:, :, None, None]
    y = lax.conv_general_dilated(y, w3, (1, 1), "VALID", dimension_numbers=dn)
    y = y + p["b3"].reshape(1, -1, 1, 1)
    return bn(y, p["g3"], p["bb3"])


if __name__ == "__main__":
    key = jax.random.PRNGKey(0)
    kx, kp = jax.random.split(key)

    N, Cin, H, W = 2, 4, 16, 16
    Cout = 8
    x = jax.random.normal(kx, (N, Cin, H, W), jnp.float32)
    params = make_params(kp, Cin, Cout)

    fwd = jax.jit(inverted_residual_forward)
    out = jax.block_until_ready(fwd(x, params))

    ref = jax.block_until_ready(reference_forward(x, params))
    assert out.shape == (N, Cout, 8, 8), out.shape
    # tolerance accounts for the intentional bf16 MXU operands in the projection matmul
    assert jnp.allclose(out, ref, atol=2e-2, rtol=2e-2), float(jnp.max(jnp.abs(out - ref)))

    print("KERNEL_OK")
</pallas_src>

<mosaic_0001>
module attributes {stable_mosaic.version = 11 : i64} {
  func.func @expand_stats_kernel(%arg0: i32, %arg1: memref<256x4xf32, #tpu.memory_space<vmem>>, %arg2: memref<4x128xf32, #tpu.memory_space<vmem>>, %arg3: memref<2x128xf32, #tpu.memory_space<vmem>>) attributes {dimension_semantics = [#tpu.dimension_semantics<arbitrary>], iteration_bounds = array<i64: 2>, scalar_prefetch = 0 : i64, scratch_operands = 0 : i64, tpu.core_type = #tpu.core_type<tc>, window_params = [{transform_indices = @transform_0, window_bounds = array<i64: 256, 4>}, {pipeline_mode = #tpu.pipeline_mode<synchronous>, transform_indices = @transform_1, window_bounds = array<i64: 4, 128>}, {pipeline_mode = #tpu.pipeline_mode<synchronous>, transform_indices = @transform_2, window_bounds = array<i64: 2, 128>}]} {
    %c0 = arith.constant 0 : index
    %c0_0 = arith.constant 0 : index
    %0 = vector.load %arg1[%c0, %c0_0] : memref<256x4xf32, #tpu.memory_space<vmem>>, vector<256x4xf32>
    %c0_1 = arith.constant 0 : index
    %c0_2 = arith.constant 0 : index
    %1 = vector.load %arg2[%c0_1, %c0_2] : memref<4x128xf32, #tpu.memory_space<vmem>>, vector<4x128xf32>
    %2 = vector.extract_strided_slice %0 {offsets = [0, 0], sizes = [256, 1], strides = [1, 1]} : vector<256x4xf32> to vector<256x1xf32>
    %3 = vector.extract_strided_slice %1 {offsets = [0, 0], sizes = [1, 128], strides = [1, 1]} : vector<4x128xf32> to vector<1x128xf32>
    %4 = vector.broadcast %2 : vector<256x1xf32> to vector<256x128xf32>
    %5 = vector.broadcast %3 : vector<1x128xf32> to vector<256x128xf32>
    %6 = arith.mulf %4, %5 : vector<256x128xf32>
    %7 = vector.extract_strided_slice %0 {offsets = [0, 1], sizes = [256, 1], strides = [1, 1]} : vector<256x4xf32> to vector<256x1xf32>
    %8 = vector.extract_strided_slice %1 {offsets = [1, 0], sizes = [1, 128], strides = [1, 1]} : vector<4x128xf32> to vector<1x128xf32>
    %9 = vector.broadcast %7 : vector<256x1xf32> to vector<256x128xf32>
    %10 = vector.broadcast %8 : vector<1x128xf32> to vector<256x128xf32>
    %11 = arith.mulf %9, %10 : vector<256x128xf32>
    %12 = arith.addf %6, %11 : vector<256x128xf32>
    %13 = vector.extract_strided_slice %0 {offsets = [0, 2], sizes = [256, 1], strides = [1, 1]} : vector<256x4xf32> to vector<256x1xf32>
    %14 = vector.extract_strided_slice %1 {offsets = [2, 0], sizes = [1, 128], strides = [1, 1]} : vector<4x128xf32> to vector<1x128xf32>
    %15 = vector.broadcast %13 : vector<256x1xf32> to vector<256x128xf32>
    %16 = vector.broadcast %14 : vector<1x128xf32> to vector<256x128xf32>
    %17 = arith.mulf %15, %16 : vector<256x128xf32>
    %18 = arith.addf %12, %17 : vector<256x128xf32>
    %19 = vector.extract_strided_slice %0 {offsets = [0, 3], sizes = [256, 1], strides = [1, 1]} : vector<256x4xf32> to vector<256x1xf32>
    %20 = vector.extract_strided_slice %1 {offsets = [3, 0], sizes = [1, 128], strides = [1, 1]} : vector<4x128xf32> to vector<1x128xf32>
    %21 = vector.broadcast %19 : vector<256x1xf32> to vector<256x128xf32>
    %22 = vector.broadcast %20 : vector<1x128xf32> to vector<256x128xf32>
    %23 = arith.mulf %21, %22 : vector<256x128xf32>
    %24 = arith.addf %18, %23 : vector<256x128xf32>
    %c0_i32 = arith.constant 0 : i32
    %25 = arith.cmpi eq, %arg0, %c0_i32 : i32
    %26 = arith.extui %25 : i1 to i32
    %c0_i32_3 = arith.constant 0 : i32
    %27 = arith.cmpi ne, %26, %c0_i32_3 : i32
    scf.if %27 {
      %cst_12 = arith.constant 0.000000e+00 : f32
      %39 = vector.broadcast %cst_12 : f32 to vector<2x128xf32>
      %c0_13 = arith.constant 0 : index
      %c0_14 = arith.constant 0 : index
      %40 = vector.load %arg3[%c0_13, %c0_14] : memref<2x128xf32, #tpu.memory_space<vmem>>, vector<2x128xf32>
      tpu.vector_store %arg3[%c0_13, %c0_14], %39 {strides = array<i32>} : memref<2x128xf32, #tpu.memory_space<vmem>>, vector<2x128xf32>,
    } else {
    }
    %c0_4 = arith.constant 0 : index
    %c0_5 = arith.constant 0 : index
    %28 = vector.load %arg3[%c0_4, %c0_5] : memref<2x128xf32, #tpu.memory_space<vmem>>, vector<1x128xf32>
    %cst = arith.constant dense<0.000000e+00> : vector<128xf32>
    %29 = vector.multi_reduction <add>, %24, %cst [0] : vector<256x128xf32> to vector<128xf32>
    %30 = vector.shape_cast %29 : vector<128xf32> to vector<1x128xf32>
    %31 = arith.addf %28, %30 : vector<1x128xf32>
    %c0_6 = arith.constant 0 : index
    %c0_7 = arith.constant 0 : index
    %32 = vector.load %arg3[%c0_6, %c0_7] : memref<2x128xf32, #tpu.memory_space<vmem>>, vector<1x128xf32>
    tpu.vector_store %arg3[%c0_6, %c0_7], %31 {strides = array<i32>} : memref<2x128xf32, #tpu.memory_space<vmem>>, vector<1x128xf32>,
    %c1 = arith.constant 1 : index
    %c0_8 = arith.constant 0 : index
    %33 = vector.load %arg3[%c1, %c0_8] : memref<2x128xf32, #tpu.memory_space<vmem>>, vector<1x128xf32>
    %34 = arith.mulf %24, %24 : vector<256x128xf32>
    %cst_9 = arith.constant dense<0.000000e+00> : vector<128xf32>
    %35 = vector.multi_reduction <add>, %34, %cst_9 [0] : vector<256x128xf32> to vector<128xf32>
    %36 = vector.shape_cast %35 : vector<128xf32> to vector<1x128xf32>
    %37 = arith.addf %33, %36 : vector<1x128xf32>
    %c1_10 = arith.constant 1 : index
    %c0_11 = arith.constant 0 : index
    %38 = vector.load %arg3[%c1_10, %c0_11] : memref<2x128xf32, #tpu.memory_space<vmem>>, vector<1x128xf32>
    tpu.vector_store %arg3[%c1_10, %c0_11], %37 {strides = array<i32>} : memref<2x128xf32, #tpu.memory_space<vmem>>, vector<1x128xf32>,
    return
  }
  func.func @transform_0(%arg0: i32) -> (i32, i32) {
    %c0_i32 = arith.constant 0 : i32
    %c0_i32_0 = arith.constant 0 : i32
    return %arg0, %c0_i32 : i32, i32
  }
  func.func @transform_1(%arg0: i32) -> (i32, i32) {
    %c0_i32 = arith.constant 0 : i32
    %c0_i32_0 = arith.constant 0 : i32
    %c0_i32_1 = arith.constant 0 : i32
    return %c0_i32, %c0_i32_0 : i32, i32
  }
  func.func @transform_2(%arg0: i32) -> (i32, i32) {
    %c0_i32 = arith.constant 0 : i32
    %c0_i32_0 = arith.constant 0 : i32
    %c0_i32_1 = arith.constant 0 : i32
    return %c0_i32, %c0_i32_0 : i32, i32
  }
}

module attributes {stable_mosaic.version = 11 : i64} {
  func.func @expand_norm_kernel(%arg0: i32, %arg1: memref<256x4xf32, #tpu.memory_space<vmem>>, %arg2: memref<4x128xf32, #tpu.memory_space<vmem>>, %arg3: memref<2x128xf32, #tpu.memory_space<vmem>>, %arg4: memref<1x128xf32, #tpu.memory_space<vmem>>, %arg5: memref<1x128xf32, #tpu.memory_space<vmem>>, %arg6: memref<256x128xf32, #tpu.memory_space<vmem>>) attributes {dimension_semantics = [#tpu.dimension_semantics<parallel>], iteration_bounds = array<i64: 2>, scalar_prefetch = 0 : i64, scratch_operands = 0 : i64, tpu.core_type = #tpu.core_type<tc>, window_params = [{transform_indices = @transform_0, window_bounds = array<i64: 256, 4>}, {pipeline_mode = #tpu.pipeline_mode<synchronous>, transform_indices = @transform_1, window_bounds = array<i64: 4, 128>}, {pipeline_mode = #tpu.pipeline_mode<synchronous>, transform_indices = @transform_2, window_bounds = array<i64: 2, 128>}, {pipeline_mode = #tpu.pipeline_mode<synchronous>, transform_indices = @transform_3, window_bounds = array<i64: 1, 128>}, {pipeline_mode = #tpu.pipeline_mode<synchronous>, transform_indices = @transform_4, window_bounds = array<i64: 1, 128>}, {transform_indices = @transform_5, window_bounds = array<i64: 256, 128>}]} {
    %c0 = arith.constant 0 : index
    %c0_0 = arith.constant 0 : index
    %0 = vector.load %arg1[%c0, %c0_0] : memref<256x4xf32, #tpu.memory_space<vmem>>, vector<256x4xf32>
    %c0_1 = arith.constant 0 : index
    %c0_2 = arith.constant 0 : index
    %1 = vector.load %arg2[%c0_1, %c0_2] : memref<4x128xf32, #tpu.memory_space<vmem>>, vector<4x128xf32>
    %2 = vector.extract_strided_slice %0 {offsets = [0, 0], sizes = [256, 1], strides = [1, 1]} : vector<256x4xf32> to vector<256x1xf32>
    %3 = vector.extract_strided_slice %1 {offsets = [0, 0], sizes = [1, 128], strides = [1, 1]} : vector<4x128xf32> to vector<1x128xf32>
    %4 = vector.broadcast %2 : vector<256x1xf32> to vector<256x128xf32>
    %5 = vector.broadcast %3 : vector<1x128xf32> to vector<256x128xf32>
    %6 = arith.mulf %4, %5 : vector<256x128xf32>
    %7 = vector.extract_strided_slice %0 {offsets = [0, 1], sizes = [256, 1], strides = [1, 1]} : vector<256x4xf32> to vector<256x1xf32>
    %8 = vector.extract_strided_slice %1 {offsets = [1, 0], sizes = [1, 128], strides = [1, 1]} : vector<4x128xf32> to vector<1x128xf32>
    %9 = vector.broadcast %7 : vector<256x1xf32> to vector<256x128xf32>
    %10 = vector.broadcast %8 : vector<1x128xf32> to vector<256x128xf32>
    %11 = arith.mulf %9, %10 : vector<256x128xf32>
    %12 = arith.addf %6, %11 : vector<256x128xf32>
    %13 = vector.extract_strided_slice %0 {offsets = [0, 2], sizes = [256, 1], strides = [1, 1]} : vector<256x4xf32> to vector<256x1xf32>
    %14 = vector.extract_strided_slice %1 {offsets = [2, 0], sizes = [1, 128], strides = [1, 1]} : vector<4x128xf32> to vector<1x128xf32>
    %15 = vector.broadcast %13 : vector<256x1xf32> to vector<256x128xf32>
    %16 = vector.broadcast %14 : vector<1x128xf32> to vector<256x128xf32>
    %17 = arith.mulf %15, %16 : vector<256x128xf32>
    %18 = arith.addf %12, %17 : vector<256x128xf32>
    %19 = vector.extract_strided_slice %0 {offsets = [0, 3], sizes = [256, 1], strides = [1, 1]} : vector<256x4xf32> to vector<256x1xf32>
    %20 = vector.extract_strided_slice %1 {offsets = [3, 0], sizes = [1, 128], strides = [1, 1]} : vector<4x128xf32> to vector<1x128xf32>
    %21 = vector.broadcast %19 : vector<256x1xf32> to vector<256x128xf32>
    %22 = vector.broadcast %20 : vector<1x128xf32> to vector<256x128xf32>
    %23 = arith.mulf %21, %22 : vector<256x128xf32>
    %24 = arith.addf %18, %23 : vector<256x128xf32>
    %c0_3 = arith.constant 0 : index
    %c0_4 = arith.constant 0 : index
    %25 = vector.load %arg3[%c0_3, %c0_4] : memref<2x128xf32, #tpu.memory_space<vmem>>, vector<1x128xf32>
    %cst = arith.constant 0.001953125 : f32
    %26 = vector.broadcast %cst : f32 to vector<1x128xf32>
    %27 = arith.mulf %25, %26 : vector<1x128xf32>
    %c1 = arith.constant 1 : index
    %c0_5 = arith.constant 0 : index
    %28 = vector.load %arg3[%c1, %c0_5] : memref<2x128xf32, #tpu.memory_space<vmem>>, vector<1x128xf32>
    %cst_6 = arith.constant 0.001953125 : f32
    %29 = vector.broadcast %cst_6 : f32 to vector<1x128xf32>
    %30 = arith.mulf %28, %29 : vector<1x128xf32>
    %31 = arith.mulf %27, %27 : vector<1x128xf32>
    %32 = arith.subf %30, %31 : vector<1x128xf32>
    %cst_7 = arith.constant 9.99999974E-6 : f32
    %33 = vector.broadcast %cst_7 : f32 to vector<1x128xf32>
    %34 = arith.addf %32, %33 : vector<1x128xf32>
    %35 = math.rsqrt %34 : vector<1x128xf32>
    %c0_8 = arith.constant 0 : index
    %c0_9 = arith.constant 0 : index
    %36 = vector.load %arg4[%c0_8, %c0_9] : memref<1x128xf32, #tpu.memory_space<vmem>>, vector<1x128xf32>
    %37 = arith.mulf %35, %36 : vector<1x128xf32>
    %38 = vector.broadcast %27 : vector<1x128xf32> to vector<256x128xf32>
    %39 = arith.subf %24, %38 : vector<256x128xf32>
    %40 = vector.broadcast %37 : vector<1x128xf32> to vector<256x128xf32>
    %41 = arith.mulf %39, %40 : vector<256x128xf32>
    %c0_10 = arith.constant 0 : index
    %c0_11 = arith.constant 0 : index
    %42 = vector.load %arg5[%c0_10, %c0_11] : memref<1x128xf32, #tpu.memory_space<vmem>>, vector<1x128xf32>
    %43 = vector.broadcast %42 : vector<1x128xf32> to vector<256x128xf32>
    %44 = arith.addf %41, %43 : vector<256x128xf32>
    %cst_12 = arith.constant 0.000000e+00 : f32
    %cst_13 = arith.constant 6.000000e+00 : f32
    %45 = vector.broadcast %cst_12 : f32 to vector<256x128xf32>
    %46 = arith.maximumf %45, %44 : vector<256x128xf32>
    %47 = vector.broadcast %cst_13 : f32 to vector<256x128xf32>
    %48 = arith.minimumf %47, %46 : vector<256x128xf32>
    %c0_14 = arith.constant 0 : index
    %c0_15 = arith.constant 0 : index
    %49 = vector.load %arg6[%c0_14, %c0_15] : memref<256x128xf32, #tpu.memory_space<vmem>>, vector<256x128xf32>
    tpu.vector_store %arg6[%c0_14, %c0_15], %48 {strides = array<i32>} : memref<256x128xf32, #tpu.memory_space<vmem>>, vector<256x128xf32>,
    return
  }
  func.func @transform_0(%arg0: i32) -> (i32, i32) {
    %c0_i32 = arith.constant 0 : i32
    %c0_i32_0 = arith.constant 0 : i32
    return %arg0, %c0_i32 : i32, i32
  }
  func.func @transform_1(%arg0: i32) -> (i32, i32) {
    %c0_i32 = arith.constant 0 : i32
    %c0_i32_0 = arith.constant 0 : i32
    %c0_i32_1 = arith.constant 0 : i32
    return %c0_i32, %c0_i32_0 : i32, i32
  }
  func.func @transform_2(%arg0: i32) -> (i32, i32) {
    %c0_i32 = arith.constant 0 : i32
    %c0_i32_0 = arith.constant 0 : i32
    %c0_i32_1 = arith.constant 0 : i32
    return %c0_i32, %c0_i32_0 : i32, i32
  }
  func.func @transform_3(%arg0: i32) -> (i32, i32) {
    %c0_i32 = arith.constant 0 : i32
    %c0_i32_0 = arith.constant 0 : i32
    %c0_i32_1 = arith.constant 0 : i32
    return %c0_i32, %c0_i32_0 : i32, i32
  }
  func.func @transform_4(%arg0: i32) -> (i32, i32) {
    %c0_i32 = arith.constant 0 : i32
    %c0_i32_0 = arith.constant 0 : i32
    %c0_i32_1 = arith.constant 0 : i32
    return %c0_i32, %c0_i32_0 : i32, i32
  }
  func.func @transform_5(%arg0: i32) -> (i32, i32) {
    %c0_i32 = arith.constant 0 : i32
    %c0_i32_0 = arith.constant 0 : i32
    return %arg0, %c0_i32 : i32, i32
  }
}

module attributes {stable_mosaic.version = 11 : i64} {
  func.func @dw_stats_kernel(%arg0: i32, %arg1: i32, %arg2: memref<1x9x9x128xf32, #tpu.memory_space<vmem>>, %arg3: memref<1x9x9x128xf32, #tpu.memory_space<vmem>>, %arg4: memref<1x9x9x128xf32, #tpu.memory_space<vmem>>, %arg5: memref<1x9x9x128xf32, #tpu.memory_space<vmem>>, %arg6: memref<9x128xf32, #tpu.memory_space<vmem>>, %arg7: memref<2x128xf32, #tpu.memory_space<vmem>>) attributes {dimension_semantics = [#tpu.dimension_semantics<arbitrary>, #tpu.dimension_semantics<arbitrary>], iteration_bounds = array<i64: 2, 2>, scalar_prefetch = 0 : i64, scratch_operands = 0 : i64, tpu.core_type = #tpu.core_type<tc>, window_params = [{transform_indices = @transform_0, window_bounds = array<i64: 1, 9, 9, 128>}, {transform_indices = @transform_1, window_bounds = array<i64: 1, 9, 9, 128>}, {transform_indices = @transform_2, window_bounds = array<i64: 1, 9, 9, 128>}, {transform_indices = @transform_3, window_bounds = array<i64: 1, 9, 9, 128>}, {pipeline_mode = #tpu.pipeline_mode<synchronous>, transform_indices = @transform_4, window_bounds = array<i64: 9, 128>}, {pipeline_mode = #tpu.pipeline_mode<synchronous>, transform_indices = @transform_5, window_bounds = array<i64: 2, 128>}]} {
    %c4_i32 = arith.constant 4 : i32
    %0 = arith.muli %arg1, %c4_i32 : i32
    %1 = tpu.assume_multiple %0, 4 : i32
    %c0 = arith.constant 0 : index
    %c0_0 = arith.constant 0 : index
    %2 = vector.load %arg6[%c0, %c0_0] : memref<9x128xf32, #tpu.memory_space<vmem>>, vector<9x128xf32>
    %c0_i32 = arith.constant 0 : i32
    %3 = arith.addi %1, %c0_i32 : i32
    %c0_1 = arith.constant 0 : index
    %4 = arith.index_cast %3 : i32 to index
    %c0_2 = arith.constant 0 : index
    %c0_3 = arith.constant 0 : index
    %5 = vector.load %arg2[%c0_1, %4, %c0_2, %c0_3] : memref<1x9x9x128xf32, #tpu.memory_space<vmem>>, vector<1x4x8x128xf32>
    %6 = vector.shape_cast %5 : vector<1x4x8x128xf32> to vector<4x8x128xf32>
    %7 = vector.shape_cast %6 : vector<4x8x128xf32> to vector<32x128xf32>
    %8 = vector.extract_strided_slice %2 {offsets = [0, 0], sizes = [1, 128], strides = [1, 1]} : vector<9x128xf32> to vector<1x128xf32>
    %9 = vector.broadcast %8 : vector<1x128xf32> to vector<32x128xf32>
    %10 = arith.mulf %7, %9 : vector<32x128xf32>
    %c0_i32_4 = arith.constant 0 : i32
    %11 = arith.addi %1, %c0_i32_4 : i32
    %c0_5 = arith.constant 0 : index
    %12 = arith.index_cast %11 : i32 to index
    %c0_6 = arith.constant 0 : index
    %c0_7 = arith.constant 0 : index
    %13 = vector.load %arg3[%c0_5, %12, %c0_6, %c0_7] : memref<1x9x9x128xf32, #tpu.memory_space<vmem>>, vector<1x4x8x128xf32>
    %14 = vector.shape_cast %13 : vector<1x4x8x128xf32> to vector<4x8x128xf32>
    %15 = vector.shape_cast %14 : vector<4x8x128xf32> to vector<32x128xf32>
    %16 = vector.extract_strided_slice %2 {offsets = [1, 0], sizes = [1, 128], strides = [1, 1]} : vector<9x128xf32> to vector<1x128xf32>
    %17 = vector.broadcast %16 : vector<1x128xf32> to vector<32x128xf32>
    %18 = arith.mulf %15, %17 : vector<32x128xf32>
    %19 = arith.addf %10, %18 : vector<32x128xf32>
    %c0_i32_8 = arith.constant 0 : i32
    %20 = arith.addi %1, %c0_i32_8 : i32
    %c0_9 = arith.constant 0 : index
    %21 = arith.index_cast %20 : i32 to index
    %c1 = arith.constant 1 : index
    %c0_10 = arith.constant 0 : index
    %22 = vector.load %arg2[%c0_9, %21, %c1, %c0_10] : memref<1x9x9x128xf32, #tpu.memory_space<vmem>>, vector<1x4x8x128xf32>
    %23 = vector.shape_cast %22 : vector<1x4x8x128xf32> to vector<4x8x128xf32>
    %24 = vector.shape_cast %23 : vector<4x8x128xf32> to vector<32x128xf32>
    %25 = vector.extract_strided_slice %2 {offsets = [2, 0], sizes = [1, 128], strides = [1, 1]} : vector<9x128xf32> to vector<1x128xf32>
    %26 = vector.broadcast %25 : vector<1x128xf32> to vector<32x128xf32>
    %27 = arith.mulf %24, %26 : vector<32x128xf32>
    %28 = arith.addf %19, %27 : vector<32x128xf32>
    %c0_i32_11 = arith.constant 0 : i32
    %29 = arith.addi %1, %c0_i32_11 : i32
    %c0_12 = arith.constant 0 : index
    %30 = arith.index_cast %29 : i32 to index
    %c0_13 = arith.constant 0 : index
    %c0_14 = arith.constant 0 : index
    %31 = vector.load %arg4[%c0_12, %30, %c0_13, %c0_14] : memref<1x9x9x128xf32, #tpu.memory_space<vmem>>, vector<1x4x8x128xf32>
    %32 = vector.shape_cast %31 : vector<1x4x8x128xf32> to vector<4x8x128xf32>
    %33 = vector.shape_cast %32 : vector<4x8x128xf32> to vector<32x128xf32>
    %34 = vector.extract_strided_slice %2 {offsets = [3, 0], sizes = [1, 128], strides = [1, 1]} : vector<9x128xf32> to vector<1x128xf32>
    %35 = vector.broadcast %34 : vector<1x128xf32> to vector<32x128xf32>
    %36 = arith.mulf %33, %35 : vector<32x128xf32>
    %37 = arith.addf %28, %36 : vector<32x128xf32>
    %c0_i32_15 = arith.constant 0 : i32
    %38 = arith.addi %1, %c0_i32_15 : i32
    %c0_16 = arith.constant 0 : index
    %39 = arith.index_cast %38 : i32 to index
    %c0_17 = arith.constant 0 : index
    %c0_18 = arith.constant 0 : index
    %40 = vector.load %arg5[%c0_16, %39, %c0_17, %c0_18] : memref<1x9x9x128xf32, #tpu.memory_space<vmem>>, vector<1x4x8x128xf32>
    %41 = vector.shape_cast %40 : vector<1x4x8x128xf32> to vector<4x8x128xf32>
    %42 = vector.shape_cast %41 : vector<4x8x128xf32> to vector<32x128xf32>
    %43 = vector.extract_strided_slice %2 {offsets = [4, 0], sizes = [1, 128], strides = [1, 1]} : vector<9x128xf32> to vector<1x128xf32>
    %44 = vector.broadcast %43 : vector<1x128xf32> to vector<32x128xf32>
    %45 = arith.mulf %42, %44 : vector<32x128xf32>
    %46 = arith.addf %37, %45 : vector<32x128xf32>
    %c0_i32_19 = arith.constant 0 : i32
    %47 = arith.addi %1, %c0_i32_19 : i32
    %c0_20 = arith.constant 0 : index
    %48 = arith.index_cast %47 : i32 to index
    %c1_21 = arith.constant 1 : index
    %c0_22 = arith.constant 0 : index
    %49 = vector.load %arg4[%c0_20, %48, %c1_21, %c0_22] : memref<1x9x9x128xf32, #tpu.memory_space<vmem>>, vector<1x4x8x128xf32>
    %50 = vector.shape_cast %49 : vector<1x4x8x128xf32> to vector<4x8x128xf32>
    %51 = vector.shape_cast %50 : vector<4x8x128xf32> to vector<32x128xf32>
    %52 = vector.extract_strided_slice %2 {offsets = [5, 0], sizes = [1, 128], strides = [1, 1]} : vector<9x128xf32> to vector<1x128xf32>
    %53 = vector.broadcast %52 : vector<1x128xf32> to vector<32x128xf32>
    %54 = arith.mulf %51, %53 : vector<32x128xf32>
    %55 = arith.addf %46, %54 : vector<32x128xf32>
    %c1_i32 = arith.constant 1 : i32
    %56 = arith.addi %1, %c1_i32 : i32
    %c0_23 = arith.constant 0 : index
    %57 = arith.index_cast %56 : i32 to index
    %c0_24 = arith.constant 0 : index
    %c0_25 = arith.constant 0 : index
    %58 = vector.load %arg2[%c0_23, %57, %c0_24, %c0_25] : memref<1x9x9x128xf32, #tpu.memory_space<vmem>>, vector<1x4x8x128xf32>
    %59 = vector.shape_cast %58 : vector<1x4x8x128xf32> to vector<4x8x128xf32>
    %60 = vector.shape_cast %59 : vector<4x8x128xf32> to vector<32x128xf32>
    %61 = vector.extract_strided_slice %2 {offsets = [6, 0], sizes = [1, 128], strides = [1, 1]} : vector<9x128xf32> to vector<1x128xf32>
    %62 = vector.broadcast %61 : vector<1x128xf32> to vector<32x128xf32>
    %63 = arith.mulf %60, %62 : vector<32x128xf32>
    %64 = arith.addf %55, %63 : vector<32x128xf32>
    %c1_i32_26 = arith.constant 1 : i32
    %65 = arith.addi %1, %c1_i32_26 : i32
    %c0_27 = arith.constant 0 : index
    %66 = arith.index_cast %65 : i32 to index
    %c0_28 = arith.constant 0 : index
    %c0_29 = arith.constant 0 : index
    %67 = vector.load %arg3[%c0_27, %66, %c0_28, %c0_29] : memref<1x9x9x128xf32, #tpu.memory_space<vmem>>, vector<1x4x8x128xf32>
    %68 = vector.shape_cast %67 : vector<1x4x8x128xf32> to vector<4x8x128xf32>
    %69 = vector.shape_cast %68 : vector<4x8x128xf32> to vector<32x128xf32>
    %70 = vector.extract_strided_slice %2 {offsets = [7, 0], sizes = [1, 128], strides = [1, 1]} : vector<9x128xf32> to vector<1x128xf32>
    %71 = vector.broadcast %70 : vector<1x128xf32> to vector<32x128xf32>
    %72 = arith.mulf %69, %71 : vector<32x128xf32>
    %73 = arith.addf %64, %72 : vector<32x128xf32>
    %c1_i32_30 = arith.constant 1 : i32
    %74 = arith.addi %1, %c1_i32_30 : i32
    %c0_31 = arith.constant 0 : index
    %75 = arith.index_cast %74 : i32 to index
    %c1_32 = arith.constant 1 : index
    %c0_33 = arith.constant 0 : index
    %76 = vector.load %arg2[%c0_31, %75, %c1_32, %c0_33] : memref<1x9x9x128xf32, #tpu.memory_space<vmem>>, vector<1x4x8x128xf32>
    %77 = vector.shape_cast %76 : vector<1x4x8x128xf32> to vector<4x8x128xf32>
    %78 = vector.shape_cast %77 : vector<4x8x128xf32> to vector<32x128xf32>
    %79 = vector.extract_strided_slice %2 {offsets = [8, 0], sizes = [1, 128], strides = [1, 1]} : vector<9x128xf32> to vector<1x128xf32>
    %80 = vector.broadcast %79 : vector<1x128xf32> to vector<32x128xf32>
    %81 = arith.mulf %78, %80 : vector<32x128xf32>
    %82 = arith.addf %73, %81 : vector<32x128xf32>
    %c0_i32_34 = arith.constant 0 : i32
    %83 = arith.cmpi eq, %arg0, %c0_i32_34 : i32
    %c0_i32_35 = arith.constant 0 : i32
    %84 = arith.cmpi eq, %arg1, %c0_i32_35 : i32
    %85 = arith.andi %83, %84 : i1
    %86 = arith.extui %85 : i1 to i32
    %c0_i32_36 = arith.constant 0 : i32
    %87 = arith.cmpi ne, %86, %c0_i32_36 : i32
    scf.if %87 {
      %cst_46 = arith.constant 0.000000e+00 : f32
      %99 = vector.broadcast %cst_46 : f32 to vector<2x128xf32>
      %c0_47 = arith.constant 0 : index
      %c0_48 = arith.constant 0 : index
      %100 = vector.load %arg7[%c0_47, %c0_48] : memref<2x128xf32, #tpu.memory_space<vmem>>, vector<2x128xf32>
      tpu.vector_store %arg7[%c0_47, %c0_48], %99 {strides = array<i32>} : memref<2x128xf32, #tpu.memory_space<vmem>>, vector<2x128xf32>,
    } else {
    }
    %c0_37 = arith.constant 0 : index
    %c0_38 = arith.constant 0 : index
    %88 = vector.load %arg7[%c0_37, %c0_38] : memref<2x128xf32, #tpu.memory_space<vmem>>, vector<1x128xf32>
    %cst = arith.constant dense<0.000000e+00> : vector<128xf32>
    %89 = vector.multi_reduction <add>, %82, %cst [0] : vector<32x128xf32> to vector<128xf32>
    %90 = vector.shape_cast %89 : vector<128xf32> to vector<1x128xf32>
    %91 = arith.addf %88, %90 : vector<1x128xf32>
    %c0_39 = arith.constant 0 : index
    %c0_40 = arith.constant 0 : index
    %92 = vector.load %arg7[%c0_39, %c0_40] : memref<2x128xf32, #tpu.memory_space<vmem>>, vector<1x128xf32>
    tpu.vector_store %arg7[%c0_39, %c0_40], %91 {strides = array<i32>} : memref<2x128xf32, #tpu.memory_space<vmem>>, vector<1x128xf32>,
    %c1_41 = arith.constant 1 : index
    %c0_42 = arith.constant 0 : index
    %93 = vector.load %arg7[%c1_41, %c0_42] : memref<2x128xf32, #tpu.memory_space<vmem>>, vector<1x128xf32>
    %94 = arith.mulf %82, %82 : vector<32x128xf32>
    %cst_43 = arith.constant dense<0.000000e+00> : vector<128xf32>
    %95 = vector.multi_reduction <add>, %94, %cst_43 [0] : vector<32x128xf32> to vector<128xf32>
    %96 = vector.shape_cast %95 : vector<128xf32> to vector<1x128xf32>
    %97 = arith.addf %93, %96 : vector<1x128xf32>
    %c1_44 = arith.constant 1 : index
    %c0_45 = arith.constant 0 : index
    %98 = vector.load %arg7[%c1_44, %c0_45] : memref<2x128xf32, #tpu.memory_space<vmem>>, vector<1x128xf32>
    tpu.vector_store %arg7[%c1_44, %c0_45], %97 {strides = array<i32>} : memref<2x128xf32, #tpu.memory_space<vmem>>, vector<1x128xf32>,
    return
  }
  func.func @transform_0(%arg0: i32, %arg1: i32) -> (i32, i32, i32, i32) {
    %c0_i32 = arith.constant 0 : i32
    %c0_i32_0 = arith.constant 0 : i32
    %c0_i32_1 = arith.constant 0 : i32
    %c0_i32_2 = arith.constant 0 : i32
    return %arg0, %c0_i32, %c0_i32_0, %c0_i32_1 : i32, i32, i32, i32
  }
  func.func @transform_1(%arg0: i32, %arg1: i32) -> (i32, i32, i32, i32) {
    %c0_i32 = arith.constant 0 : i32
    %c0_i32_0 = arith.constant 0 : i32
    %c0_i32_1 = arith.constant 0 : i32
    %c0_i32_2 = arith.constant 0 : i32
    return %arg0, %c0_i32, %c0_i32_0, %c0_i32_1 : i32, i32, i32, i32
  }
  func.func @transform_2(%arg0: i32, %arg1: i32) -> (i32, i32, i32, i32) {
    %c0_i32 = arith.constant 0 : i32
    %c0_i32_0 = arith.constant 0 : i32
    %c0_i32_1 = arith.constant 0 : i32
    %c0_i32_2 = arith.constant 0 : i32
    return %arg0, %c0_i32, %c0_i32_0, %c0_i32_1 : i32, i32, i32, i32
  }
  func.func @transform_3(%arg0: i32, %arg1: i32) -> (i32, i32, i32, i32) {
    %c0_i32 = arith.constant 0 : i32
    %c0_i32_0 = arith.constant 0 : i32
    %c0_i32_1 = arith.constant 0 : i32
    %c0_i32_2 = arith.constant 0 : i32
    return %arg0, %c0_i32, %c0_i32_0, %c0_i32_1 : i32, i32, i32, i32
  }
  func.func @transform_4(%arg0: i32, %arg1: i32) -> (i32, i32) {
    %c0_i32 = arith.constant 0 : i32
    %c0_i32_0 = arith.constant 0 : i32
    %c0_i32_1 = arith.constant 0 : i32
    return %c0_i32, %c0_i32_0 : i32, i32
  }
  func.func @transform_5(%arg0: i32, %arg1: i32) -> (i32, i32) {
    %c0_i32 = arith.constant 0 : i32
    %c0_i32_0 = arith.constant 0 : i32
    %c0_i32_1 = arith.constant 0 : i32
    return %c0_i32, %c0_i32_0 : i32, i32
  }
}

module attributes {stable_mosaic.version = 11 : i64} {
  func.func @dw_project_kernel(%arg0: i32, %arg1: i32, %arg2: memref<1x9x9x128xf32, #tpu.memory_space<vmem>>, %arg3: memref<1x9x9x128xf32, #tpu.memory_space<vmem>>, %arg4: memref<1x9x9x128xf32, #tpu.memory_space<vmem>>, %arg5: memref<1x9x9x128xf32, #tpu.memory_space<vmem>>, %arg6: memref<9x128xf32, #tpu.memory_space<vmem>>, %arg7: memref<2x128xf32, #tpu.memory_space<vmem>>, %arg8: memref<1x128xf32, #tpu.memory_space<vmem>>, %arg9: memref<1x128xf32, #tpu.memory_space<vmem>>, %arg10: memref<128x128xbf16, #tpu.memory_space<vmem>>, %arg11: memref<1x4x8x128xf32, #tpu.memory_space<vmem>>, %arg12: memref<2x128xf32, #tpu.memory_space<vmem>>) attributes {dimension_semantics = [#tpu.dimension_semantics<arbitrary>, #tpu.dimension_semantics<arbitrary>], iteration_bounds = array<i64: 2, 2>, scalar_prefetch = 0 : i64, scratch_operands = 0 : i64, tpu.core_type = #tpu.core_type<tc>, window_params = [{transform_indices = @transform_0, window_bounds = array<i64: 1, 9, 9, 128>}, {transform_indices = @transform_1, window_bounds = array<i64: 1, 9, 9, 128>}, {transform_indices = @transform_2, window_bounds = array<i64: 1, 9, 9, 128>}, {transform_indices = @transform_3, window_bounds = array<i64: 1, 9, 9, 128>}, {pipeline_mode = #tpu.pipeline_mode<synchronous>, transform_indices = @transform_4, window_bounds = array<i64: 9, 128>}, {pipeline_mode = #tpu.pipeline_mode<synchronous>, transform_indices = @transform_5, window_bounds = array<i64: 2, 128>}, {pipeline_mode = #tpu.pipeline_mode<synchronous>, transform_indices = @transform_6, window_bounds = array<i64: 1, 128>}, {pipeline_mode = #tpu.pipeline_mode<synchronous>, transform_indices = @transform_7, window_bounds = array<i64: 1, 128>}, {pipeline_mode = #tpu.pipeline_mode<synchronous>, transform_indices = @transform_8, window_bounds = array<i64: 128, 128>}, {transform_indices = @transform_9, window_bounds = array<i64: 1, 4, 8, 128>}, {pipeline_mode = #tpu.pipeline_mode<synchronous>, transform_indices = @transform_10, window_bounds = array<i64: 2, 128>}]} {
    %c4_i32 = arith.constant 4 : i32
    %0 = arith.muli %arg1, %c4_i32 : i32
    %1 = tpu.assume_multiple %0, 4 : i32
    %c0 = arith.constant 0 : index
    %c0_0 = arith.constant 0 : index
    %2 = vector.load %arg6[%c0, %c0_0] : memref<9x128xf32, #tpu.memory_space<vmem>>, vector<9x128xf32>
    %c0_i32 = arith.constant 0 : i32
    %3 = arith.addi %1, %c0_i32 : i32
    %c0_1 = arith.constant 0 : index
    %4 = arith.index_cast %3 : i32 to index
    %c0_2 = arith.constant 0 : index
    %c0_3 = arith.constant 0 : index
    %5 = vector.load %arg2[%c0_1, %4, %c0_2, %c0_3] : memref<1x9x9x128xf32, #tpu.memory_space<vmem>>, vector<1x4x8x128xf32>
    %6 = vector.shape_cast %5 : vector<1x4x8x128xf32> to vector<4x8x128xf32>
    %7 = vector.shape_cast %6 : vector<4x8x128xf32> to vector<32x128xf32>
    %8 = vector.extract_strided_slice %2 {offsets = [0, 0], sizes = [1, 128], strides = [1, 1]} : vector<9x128xf32> to vector<1x128xf32>
    %9 = vector.broadcast %8 : vector<1x128xf32> to vector<32x128xf32>
    %10 = arith.mulf %7, %9 : vector<32x128xf32>
    %c0_i32_4 = arith.constant 0 : i32
    %11 = arith.addi %1, %c0_i32_4 : i32
    %c0_5 = arith.constant 0 : index
    %12 = arith.index_cast %11 : i32 to index
    %c0_6 = arith.constant 0 : index
    %c0_7 = arith.constant 0 : index
    %13 = vector.load %arg3[%c0_5, %12, %c0_6, %c0_7] : memref<1x9x9x128xf32, #tpu.memory_space<vmem>>, vector<1x4x8x128xf32>
    %14 = vector.shape_cast %13 : vector<1x4x8x128xf32> to vector<4x8x128xf32>
    %15 = vector.shape_cast %14 : vector<4x8x128xf32> to vector<32x128xf32>
    %16 = vector.extract_strided_slice %2 {offsets = [1, 0], sizes = [1, 128], strides = [1, 1]} : vector<9x128xf32> to vector<1x128xf32>
    %17 = vector.broadcast %16 : vector<1x128xf32> to vector<32x128xf32>
    %18 = arith.mulf %15, %17 : vector<32x128xf32>
    %19 = arith.addf %10, %18 : vector<32x128xf32>
    %c0_i32_8 = arith.constant 0 : i32
    %20 = arith.addi %1, %c0_i32_8 : i32
    %c0_9 = arith.constant 0 : index
    %21 = arith.index_cast %20 : i32 to index
    %c1 = arith.constant 1 : index
    %c0_10 = arith.constant 0 : index
    %22 = vector.load %arg2[%c0_9, %21, %c1, %c0_10] : memref<1x9x9x128xf32, #tpu.memory_space<vmem>>, vector<1x4x8x128xf32>
    %23 = vector.shape_cast %22 : vector<1x4x8x128xf32> to vector<4x8x128xf32>
    %24 = vector.shape_cast %23 : vector<4x8x128xf32> to vector<32x128xf32>
    %25 = vector.extract_strided_slice %2 {offsets = [2, 0], sizes = [1, 128], strides = [1, 1]} : vector<9x128xf32> to vector<1x128xf32>
    %26 = vector.broadcast %25 : vector<1x128xf32> to vector<32x128xf32>
    %27 = arith.mulf %24, %26 : vector<32x128xf32>
    %28 = arith.addf %19, %27 : vector<32x128xf32>
    %c0_i32_11 = arith.constant 0 : i32
    %29 = arith.addi %1, %c0_i32_11 : i32
    %c0_12 = arith.constant 0 : index
    %30 = arith.index_cast %29 : i32 to index
    %c0_13 = arith.constant 0 : index
    %c0_14 = arith.constant 0 : index
    %31 = vector.load %arg4[%c0_12, %30, %c0_13, %c0_14] : memref<1x9x9x128xf32, #tpu.memory_space<vmem>>, vector<1x4x8x128xf32>
    %32 = vector.shape_cast %31 : vector<1x4x8x128xf32> to vector<4x8x128xf32>
    %33 = vector.shape_cast %32 : vector<4x8x128xf32> to vector<32x128xf32>
    %34 = vector.extract_strided_slice %2 {offsets = [3, 0], sizes = [1, 128], strides = [1, 1]} : vector<9x128xf32> to vector<1x128xf32>
    %35 = vector.broadcast %34 : vector<1x128xf32> to vector<32x128xf32>
    %36 = arith.mulf %33, %35 : vector<32x128xf32>
    %37 = arith.addf %28, %36 : vector<32x128xf32>
    %c0_i32_15 = arith.constant 0 : i32
    %38 = arith.addi %1, %c0_i32_15 : i32
    %c0_16 = arith.constant 0 : index
    %39 = arith.index_cast %38 : i32 to index
    %c0_17 = arith.constant 0 : index
    %c0_18 = arith.constant 0 : index
    %40 = vector.load %arg5[%c0_16, %39, %c0_17, %c0_18] : memref<1x9x9x128xf32, #tpu.memory_space<vmem>>, vector<1x4x8x128xf32>
    %41 = vector.shape_cast %40 : vector<1x4x8x128xf32> to vector<4x8x128xf32>
    %42 = vector.shape_cast %41 : vector<4x8x128xf32> to vector<32x128xf32>
    %43 = vector.extract_strided_slice %2 {offsets = [4, 0], sizes = [1, 128], strides = [1, 1]} : vector<9x128xf32> to vector<1x128xf32>
    %44 = vector.broadcast %43 : vector<1x128xf32> to vector<32x128xf32>
    %45 = arith.mulf %42, %44 : vector<32x128xf32>
    %46 = arith.addf %37, %45 : vector<32x128xf32>
    %c0_i32_19 = arith.constant 0 : i32
    %47 = arith.addi %1, %c0_i32_19 : i32
    %c0_20 = arith.constant 0 : index
    %48 = arith.index_cast %47 : i32 to index
    %c1_21 = arith.constant 1 : index
    %c0_22 = arith.constant 0 : index
    %49 = vector.load %arg4[%c0_20, %48, %c1_21, %c0_22] : memref<1x9x9x128xf32, #tpu.memory_space<vmem>>, vector<1x4x8x128xf32>
    %50 = vector.shape_cast %49 : vector<1x4x8x128xf32> to vector<4x8x128xf32>
    %51 = vector.shape_cast %50 : vector<4x8x128xf32> to vector<32x128xf32>
    %52 = vector.extract_strided_slice %2 {offsets = [5, 0], sizes = [1, 128], strides = [1, 1]} : vector<9x128xf32> to vector<1x128xf32>
    %53 = vector.broadcast %52 : vector<1x128xf32> to vector<32x128xf32>
    %54 = arith.mulf %51, %53 : vector<32x128xf32>
    %55 = arith.addf %46, %54 : vector<32x128xf32>
    %c1_i32 = arith.constant 1 : i32
    %56 = arith.addi %1, %c1_i32 : i32
    %c0_23 = arith.constant 0 : index
    %57 = arith.index_cast %56 : i32 to index
    %c0_24 = arith.constant 0 : index
    %c0_25 = arith.constant 0 : index
    %58 = vector.load %arg2[%c0_23, %57, %c0_24, %c0_25] : memref<1x9x9x128xf32, #tpu.memory_space<vmem>>, vector<1x4x8x128xf32>
    %59 = vector.shape_cast %58 : vector<1x4x8x128xf32> to vector<4x8x128xf32>
    %60 = vector.shape_cast %59 : vector<4x8x128xf32> to vector<32x128xf32>
    %61 = vector.extract_strided_slice %2 {offsets = [6, 0], sizes = [1, 128], strides = [1, 1]} : vector<9x128xf32> to vector<1x128xf32>
    %62 = vector.broadcast %61 : vector<1x128xf32> to vector<32x128xf32>
    %63 = arith.mulf %60, %62 : vector<32x128xf32>
    %64 = arith.addf %55, %63 : vector<32x128xf32>
    %c1_i32_26 = arith.constant 1 : i32
    %65 = arith.addi %1, %c1_i32_26 : i32
    %c0_27 = arith.constant 0 : index
    %66 = arith.index_cast %65 : i32 to index
    %c0_28 = arith.constant 0 : index
    %c0_29 = arith.constant 0 : index
    %67 = vector.load %arg3[%c0_27, %66, %c0_28, %c0_29] : memref<1x9x9x128xf32, #tpu.memory_space<vmem>>, vector<1x4x8x128xf32>
    %68 = vector.shape_cast %67 : vector<1x4x8x128xf32> to vector<4x8x128xf32>
    %69 = vector.shape_cast %68 : vector<4x8x128xf32> to vector<32x128xf32>
    %70 = vector.extract_strided_slice %2 {offsets = [7, 0], sizes = [1, 128], strides = [1, 1]} : vector<9x128xf32> to vector<1x128xf32>
    %71 = vector.broadcast %70 : vector<1x128xf32> to vector<32x128xf32>
    %72 = arith.mulf %69, %71 : vector<32x128xf32>
    %73 = arith.addf %64, %72 : vector<32x128xf32>
    %c1_i32_30 = arith.constant 1 : i32
    %74 = arith.addi %1, %c1_i32_30 : i32
    %c0_31 = arith.constant 0 : index
    %75 = arith.index_cast %74 : i32 to index
    %c1_32 = arith.constant 1 : index
    %c0_33 = arith.constant 0 : index
    %76 = vector.load %arg2[%c0_31, %75, %c1_32, %c0_33] : memref<1x9x9x128xf32, #tpu.memory_space<vmem>>, vector<1x4x8x128xf32>
    %77 = vector.shape_cast %76 : vector<1x4x8x128xf32> to vector<4x8x128xf32>
    %78 = vector.shape_cast %77 : vector<4x8x128xf32> to vector<32x128xf32>
    %79 = vector.extract_strided_slice %2 {offsets = [8, 0], sizes = [1, 128], strides = [1, 1]} : vector<9x128xf32> to vector<1x128xf32>
    %80 = vector.broadcast %79 : vector<1x128xf32> to vector<32x128xf32>
    %81 = arith.mulf %78, %80 : vector<32x128xf32>
    %82 = arith.addf %73, %81 : vector<32x128xf32>
    %c0_34 = arith.constant 0 : index
    %c0_35 = arith.constant 0 : index
    %83 = vector.load %arg7[%c0_34, %c0_35] : memref<2x128xf32, #tpu.memory_space<vmem>>, vector<1x128xf32>
    %cst = arith.constant 7.812500e-03 : f32
    %84 = vector.broadcast %cst : f32 to vector<1x128xf32>
    %85 = arith.mulf %83, %84 : vector<1x128xf32>
    %c1_36 = arith.constant 1 : index
    %c0_37 = arith.constant 0 : index
    %86 = vector.load %arg7[%c1_36, %c0_37] : memref<2x128xf32, #tpu.memory_space<vmem>>, vector<1x128xf32>
    %cst_38 = arith.constant 7.812500e-03 : f32
    %87 = vector.broadcast %cst_38 : f32 to vector<1x128xf32>
    %88 = arith.mulf %86, %87 : vector<1x128xf32>
    %89 = arith.mulf %85, %85 : vector<1x128xf32>
    %90 = arith.subf %88, %89 : vector<1x128xf32>
    %cst_39 = arith.constant 9.99999974E-6 : f32
    %91 = vector.broadcast %cst_39 : f32 to vector<1x128xf32>
    %92 = arith.addf %90, %91 : vector<1x128xf32>
    %93 = math.rsqrt %92 : vector<1x128xf32>
    %c0_40 = arith.constant 0 : index
    %c0_41 = arith.constant 0 : index
    %94 = vector.load %arg8[%c0_40, %c0_41] : memref<1x128xf32, #tpu.memory_space<vmem>>, vector<1x128xf32>
    %95 = arith.mulf %93, %94 : vector<1x128xf32>
    %96 = vector.broadcast %85 : vector<1x128xf32> to vector<32x128xf32>
    %97 = arith.subf %82, %96 : vector<32x128xf32>
    %98 = vector.broadcast %95 : vector<1x128xf32> to vector<32x128xf32>
    %99 = arith.mulf %97, %98 : vector<32x128xf32>
    %c0_42 = arith.constant 0 : index
    %c0_43 = arith.constant 0 : index
    %100 = vector.load %arg9[%c0_42, %c0_43] : memref<1x128xf32, #tpu.memory_space<vmem>>, vector<1x128xf32>
    %101 = vector.broadcast %100 : vector<1x128xf32> to vector<32x128xf32>
    %102 = arith.addf %99, %101 : vector<32x128xf32>
    %cst_44 = arith.constant 0.000000e+00 : f32
    %cst_45 = arith.constant 6.000000e+00 : f32
    %103 = vector.broadcast %cst_44 : f32 to vector<32x128xf32>
    %104 = arith.maximumf %103, %102 : vector<32x128xf32>
    %105 = vector.broadcast %cst_45 : f32 to vector<32x128xf32>
    %106 = arith.minimumf %105, %104 : vector<32x128xf32>
    %107 = arith.truncf %106 : vector<32x128xf32> to vector<32x128xbf16>
    %c0_46 = arith.constant 0 : index
    %c0_47 = arith.constant 0 : index
    %108 = vector.load %arg10[%c0_46, %c0_47] : memref<128x128xbf16, #tpu.memory_space<vmem>>, vector<128x128xbf16>
    %cst_48 = arith.constant dense<0.000000e+00> : vector<32x128xf32>
    %109 = tpu.matmul %107, %108, %cst_48 {dimension_numbers = #tpu.dot_dimension_numbers<[1], [0], [0], [1], [0, 0, 1, 1], [], []>} : vector<32x128xbf16>, vector<128x128xbf16>, vector<32x128xf32> -> vector<32x128xf32>
    %c0_i32_49 = arith.constant 0 : i32
    %110 = arith.cmpi eq, %arg0, %c0_i32_49 : i32
    %c0_i32_50 = arith.constant 0 : i32
    %111 = arith.cmpi eq, %arg1, %c0_i32_50 : i32
    %112 = arith.andi %110, %111 : i1
    %113 = arith.extui %112 : i1 to i32
    %c0_i32_51 = arith.constant 0 : i32
    %114 = arith.cmpi ne, %113, %c0_i32_51 : i32
    scf.if %114 {
      %cst_66 = arith.constant 0.000000e+00 : f32
      %128 = vector.broadcast %cst_66 : f32 to vector<2x128xf32>
      %c0_67 = arith.constant 0 : index
      %c0_68 = arith.constant 0 : index
      %129 = vector.load %arg12[%c0_67, %c0_68] : memref<2x128xf32, #tpu.memory_space<vmem>>, vector<2x128xf32>
      tpu.vector_store %arg12[%c0_67, %c0_68], %128 {strides = array<i32>} : memref<2x128xf32, #tpu.memory_space<vmem>>, vector<2x128xf32>,
    } else {
    }
    %c0_52 = arith.constant 0 : index
    %c0_53 = arith.constant 0 : index
    %115 = vector.load %arg12[%c0_52, %c0_53] : memref<2x128xf32, #tpu.memory_space<vmem>>, vector<1x128xf32>
    %cst_54 = arith.constant dense<0.000000e+00> : vector<128xf32>
    %116 = vector.multi_reduction <add>, %109, %cst_54 [0] : vector<32x128xf32> to vector<128xf32>
    %117 = vector.shape_cast %116 : vector<128xf32> to vector<1x128xf32>
    %118 = arith.addf %115, %117 : vector<1x128xf32>
    %c0_55 = arith.constant 0 : index
    %c0_56 = arith.constant 0 : index
    %119 = vector.load %arg12[%c0_55, %c0_56] : memref<2x128xf32, #tpu.memory_space<vmem>>, vector<1x128xf32>
    tpu.vector_store %arg12[%c0_55, %c0_56], %118 {strides = array<i32>} : memref<2x128xf32, #tpu.memory_space<vmem>>, vector<1x128xf32>,
    %c1_57 = arith.constant 1 : index
    %c0_58 = arith.constant 0 : index
    %120 = vector.load %arg12[%c1_57, %c0_58] : memref<2x128xf32, #tpu.memory_space<vmem>>, vector<1x128xf32>
    %121 = arith.mulf %109, %109 : vector<32x128xf32>
    %cst_59 = arith.constant dense<0.000000e+00> : vector<128xf32>
    %122 = vector.multi_reduction <add>, %121, %cst_59 [0] : vector<32x128xf32> to vector<128xf32>
    %123 = vector.shape_cast %122 : vector<128xf32> to vector<1x128xf32>
    %124 = arith.addf %120, %123 : vector<1x128xf32>
    %c1_60 = arith.constant 1 : index
    %c0_61 = arith.constant 0 : index
    %125 = vector.load %arg12[%c1_60, %c0_61] : memref<2x128xf32, #tpu.memory_space<vmem>>, vector<1x128xf32>
    tpu.vector_store %arg12[%c1_60, %c0_61], %124 {strides = array<i32>} : memref<2x128xf32, #tpu.memory_space<vmem>>, vector<1x128xf32>,
    %126 = vector.shape_cast %109 : vector<32x128xf32> to vector<1x4x8x128xf32>
    %c0_62 = arith.constant 0 : index
    %c0_63 = arith.constant 0 : index
    %c0_64 = arith.constant 0 : index
    %c0_65 = arith.constant 0 : index
    %127 = vector.load %arg11[%c0_62, %c0_63, %c0_64, %c0_65] : memref<1x4x8x128xf32, #tpu.memory_space<vmem>>, vector<1x4x8x128xf32>
    tpu.vector_store %arg11[%c0_62, %c0_63, %c0_64, %c0_65], %126 {strides = array<i32>} : memref<1x4x8x128xf32, #tpu.memory_space<vmem>>, vector<1x4x8x128xf32>,
    return
  }
  func.func @transform_0(%arg0: i32, %arg1: i32) -> (i32, i32, i32, i32) {
    %c0_i32 = arith.constant 0 : i32
    %c0_i32_0 = arith.constant 0 : i32
    %c0_i32_1 = arith.constant 0 : i32
    %c0_i32_2 = arith.constant 0 : i32
    return %arg0, %c0_i32, %c0_i32_0, %c0_i32_1 : i32, i32, i32, i32
  }
  func.func @transform_1(%arg0: i32, %arg1: i32) -> (i32, i32, i32, i32) {
    %c0_i32 = arith.constant 0 : i32
    %c0_i32_0 = arith.constant 0 : i32
    %c0_i32_1 = arith.constant 0 : i32
    %c0_i32_2 = arith.constant 0 : i32
    return %arg0, %c0_i32, %c0_i32_0, %c0_i32_1 : i32, i32, i32, i32
  }
  func.func @transform_2(%arg0: i32, %arg1: i32) -> (i32, i32, i32, i32) {
    %c0_i32 = arith.constant 0 : i32
    %c0_i32_0 = arith.constant 0 : i32
    %c0_i32_1 = arith.constant 0 : i32
    %c0_i32_2 = arith.constant 0 : i32
    return %arg0, %c0_i32, %c0_i32_0, %c0_i32_1 : i32, i32, i32, i32
  }
  func.func @transform_3(%arg0: i32, %arg1: i32) -> (i32, i32, i32, i32) {
    %c0_i32 = arith.constant 0 : i32
    %c0_i32_0 = arith.constant 0 : i32
    %c0_i32_1 = arith.constant 0 : i32
    %c0_i32_2 = arith.constant 0 : i32
    return %arg0, %c0_i32, %c0_i32_0, %c0_i32_1 : i32, i32, i32, i32
  }
  func.func @transform_4(%arg0: i32, %arg1: i32) -> (i32, i32) {
    %c0_i32 = arith.constant 0 : i32
    %c0_i32_0 = arith.constant 0 : i32
    %c0_i32_1 = arith.constant 0 : i32
    return %c0_i32, %c0_i32_0 : i32, i32
  }
  func.func @transform_5(%arg0: i32, %arg1: i32) -> (i32, i32) {
    %c0_i32 = arith.constant 0 : i32
    %c0_i32_0 = arith.constant 0 : i32
    %c0_i32_1 = arith.constant 0 : i32
    return %c0_i32, %c0_i32_0 : i32, i32
  }
  func.func @transform_6(%arg0: i32, %arg1: i32) -> (i32, i32) {
    %c0_i32 = arith.constant 0 : i32
    %c0_i32_0 = arith.constant 0 : i32
    %c0_i32_1 = arith.constant 0 : i32
    return %c0_i32, %c0_i32_0 : i32, i32
  }
  func.func @transform_7(%arg0: i32, %arg1: i32) -> (i32, i32) {
    %c0_i32 = arith.constant 0 : i32
    %c0_i32_0 = arith.constant 0 : i32
    %c0_i32_1 = arith.constant 0 : i32
    return %c0_i32, %c0_i32_0 : i32, i32
  }
  func.func @transform_8(%arg0: i32, %arg1: i32) -> (i32, i32) {
    %c0_i32 = arith.constant 0 : i32
    %c0_i32_0 = arith.constant 0 : i32
    %c0_i32_1 = arith.constant 0 : i32
    return %c0_i32, %c0_i32_0 : i32, i32
  }
  func.func @transform_9(%arg0: i32, %arg1: i32) -> (i32, i32, i32, i32) {
    %c0_i32 = arith.constant 0 : i32
    %c0_i32_0 = arith.constant 0 : i32
    %c0_i32_1 = arith.constant 0 : i32
    return %arg0, %arg1, %c0_i32, %c0_i32_0 : i32, i32, i32, i32
  }
  func.func @transform_10(%arg0: i32, %arg1: i32) -> (i32, i32) {
    %c0_i32 = arith.constant 0 : i32
    %c0_i32_0 = arith.constant 0 : i32
    %c0_i32_1 = arith.constant 0 : i32
    return %c0_i32, %c0_i32_0 : i32, i32
  }
}

module attributes {stable_mosaic.version = 11 : i64} {
  func.func @bn3_kernel(%arg0: i32, %arg1: i32, %arg2: memref<1x4x8x128xf32, #tpu.memory_space<vmem>>, %arg3: memref<2x128xf32, #tpu.memory_space<vmem>>, %arg4: memref<1x128xf32, #tpu.memory_space<vmem>>, %arg5: memref<1x128xf32, #tpu.memory_space<vmem>>, %arg6: memref<1x4x8x128xf32, #tpu.memory_space<vmem>>) attributes {dimension_semantics = [#tpu.dimension_semantics<parallel>, #tpu.dimension_semantics<parallel>], iteration_bounds = array<i64: 2, 2>, scalar_prefetch = 0 : i64, scratch_operands = 0 : i64, tpu.core_type = #tpu.core_type<tc>, window_params = [{transform_indices = @transform_0, window_bounds = array<i64: 1, 4, 8, 128>}, {pipeline_mode = #tpu.pipeline_mode<synchronous>, transform_indices = @transform_1, window_bounds = array<i64: 2, 128>}, {pipeline_mode = #tpu.pipeline_mode<synchronous>, transform_indices = @transform_2, window_bounds = array<i64: 1, 128>}, {pipeline_mode = #tpu.pipeline_mode<synchronous>, transform_indices = @transform_3, window_bounds = array<i64: 1, 128>}, {transform_indices = @transform_4, window_bounds = array<i64: 1, 4, 8, 128>}]} {
    %c0 = arith.constant 0 : index
    %c0_0 = arith.constant 0 : index
    %c0_1 = arith.constant 0 : index
    %c0_2 = arith.constant 0 : index
    %0 = vector.load %arg2[%c0, %c0_0, %c0_1, %c0_2] : memref<1x4x8x128xf32, #tpu.memory_space<vmem>>, vector<1x4x8x128xf32>
    %1 = vector.shape_cast %0 : vector<1x4x8x128xf32> to vector<32x128xf32>
    %c0_3 = arith.constant 0 : index
    %c0_4 = arith.constant 0 : index
    %2 = vector.load %arg3[%c0_3, %c0_4] : memref<2x128xf32, #tpu.memory_space<vmem>>, vector<1x128xf32>
    %cst = arith.constant 7.812500e-03 : f32
    %3 = vector.broadcast %cst : f32 to vector<1x128xf32>
    %4 = arith.mulf %2, %3 : vector<1x128xf32>
    %c1 = arith.constant 1 : index
    %c0_5 = arith.constant 0 : index
    %5 = vector.load %arg3[%c1, %c0_5] : memref<2x128xf32, #tpu.memory_space<vmem>>, vector<1x128xf32>
    %cst_6 = arith.constant 7.812500e-03 : f32
    %6 = vector.broadcast %cst_6 : f32 to vector<1x128xf32>
    %7 = arith.mulf %5, %6 : vector<1x128xf32>
    %8 = arith.mulf %4, %4 : vector<1x128xf32>
    %9 = arith.subf %7, %8 : vector<1x128xf32>
    %cst_7 = arith.constant 9.99999974E-6 : f32
    %10 = vector.broadcast %cst_7 : f32 to vector<1x128xf32>
    %11 = arith.addf %9, %10 : vector<1x128xf32>
    %12 = math.rsqrt %11 : vector<1x128xf32>
    %c0_8 = arith.constant 0 : index
    %c0_9 = arith.constant 0 : index
    %13 = vector.load %arg4[%c0_8, %c0_9] : memref<1x128xf32, #tpu.memory_space<vmem>>, vector<1x128xf32>
    %14 = arith.mulf %12, %13 : vector<1x128xf32>
    %15 = vector.broadcast %4 : vector<1x128xf32> to vector<32x128xf32>
    %16 = arith.subf %1, %15 : vector<32x128xf32>
    %17 = vector.broadcast %14 : vector<1x128xf32> to vector<32x128xf32>
    %18 = arith.mulf %16, %17 : vector<32x128xf32>
    %c0_10 = arith.constant 0 : index
    %c0_11 = arith.constant 0 : index
    %19 = vector.load %arg5[%c0_10, %c0_11] : memref<1x128xf32, #tpu.memory_space<vmem>>, vector<1x128xf32>
    %20 = vector.broadcast %19 : vector<1x128xf32> to vector<32x128xf32>
    %21 = arith.addf %18, %20 : vector<32x128xf32>
    %22 = vector.shape_cast %21 : vector<32x128xf32> to vector<1x4x8x128xf32>
    %c0_12 = arith.constant 0 : index
    %c0_13 = arith.constant 0 : index
    %c0_14 = arith.constant 0 : index
    %c0_15 = arith.constant 0 : index
    %23 = vector.load %arg6[%c0_12, %c0_13, %c0_14, %c0_15] : memref<1x4x8x128xf32, #tpu.memory_space<vmem>>, vector<1x4x8x128xf32>
    tpu.vector_store %arg6[%c0_12, %c0_13, %c0_14, %c0_15], %22 {strides = array<i32>} : memref<1x4x8x128xf32, #tpu.memory_space<vmem>>, vector<1x4x8x128xf32>,
    return
  }
  func.func @transform_0(%arg0: i32, %arg1: i32) -> (i32, i32, i32, i32) {
    %c0_i32 = arith.constant 0 : i32
    %c0_i32_0 = arith.constant 0 : i32
    %c0_i32_1 = arith.constant 0 : i32
    return %arg0, %arg1, %c0_i32, %c0_i32_0 : i32, i32, i32, i32
  }
  func.func @transform_1(%arg0: i32, %arg1: i32) -> (i32, i32) {
    %c0_i32 = arith.constant 0 : i32
    %c0_i32_0 = arith.constant 0 : i32
    %c0_i32_1 = arith.constant 0 : i32
    return %c0_i32, %c0_i32_0 : i32, i32
  }
  func.func @transform_2(%arg0: i32, %arg1: i32) -> (i32, i32) {
    %c0_i32 = arith.constant 0 : i32
    %c0_i32_0 = arith.constant 0 : i32
    %c0_i32_1 = arith.constant 0 : i32
    return %c0_i32, %c0_i32_0 : i32, i32
  }
  func.func @transform_3(%arg0: i32, %arg1: i32) -> (i32, i32) {
    %c0_i32 = arith.constant 0 : i32
    %c0_i32_0 = arith.constant 0 : i32
    %c0_i32_1 = arith.constant 0 : i32
    return %c0_i32, %c0_i32_0 : i32, i32
  }
  func.func @transform_4(%arg0: i32, %arg1: i32) -> (i32, i32, i32, i32) {
    %c0_i32 = arith.constant 0 : i32
    %c0_i32_0 = arith.constant 0 : i32
    %c0_i32_1 = arith.constant 0 : i32
    return %arg0, %arg1, %c0_i32, %c0_i32_0 : i32, i32, i32, i32
  }
}

</mosaic_0001>

<llo_original>
// kernel: inverted_residual_forward.7
$region0: #{inverted_residual_forward.7}
  #allocation0 [shape = 'u32[]', space=smem, size = 0x4, offset = 0x4, fixed_abs, tag = 'smem constant byte address 0x4 - core index']
  #allocation1 [shape = 'u32[144,128]{1,0:T(1,128)}', space=vmem, size = 0x12000, scoped, tag = 'internal scratch']
  %s0 = inlined_call_operand.vmem [shape: f32[2,9,9,128], index: 0, kind: input, shape index: {}]
  %s1 = inlined_call_operand.vmem [shape: f32[2,9,9,128], index: 1, kind: input, shape index: {}]
  %s2 = inlined_call_operand.vmem [shape: f32[2,9,9,128], index: 2, kind: input, shape index: {}]
  %s3 = inlined_call_operand.vmem [shape: f32[2,9,9,128], index: 3, kind: input, shape index: {}]
  %s4 = inlined_call_operand.vmem [shape: f32[9,128], index: 4, kind: input, shape index: {}]
  %s5 = inlined_call_operand.vmem [shape: f32[2,128], index: 5, kind: output, shape index: {}]
  %s6 = sld [smem:[#allocation0]]
  $region57: #{inverted_residual_forward.7} parent=0
    _
  %s8 = ssub.s32 1, %s6
  %s9 = scalar_select 0, %s8, %s6
  loop: start=0, step=1, limit=6
  $region2: #{inverted_residual_forward.7} parent=0 // loop_pre_header
    _
  $region3: #{inverted_residual_forward.7} parent=0 // loop_header
    %s11 = sphi 0, %s15
    %p12 = scmp.ge.s32.totalorder %s11, 6
    %s18 = sphi 0, %s30
    %s19 = sphi 0, %s26
    %s20 = sphi 0, %s18
    %s21 = sphi 0, %s19
    %s22 = sphi 0, %s20
    %s23 = sphi 0, %s21
    %s33 = sphi 0, %s35
    %s36 = sphi 0, %s33
    %s37 = sphi 0, %s36
    %s53 = sphi 0, %s37
    %s59 = sphi 0, %s61
    %s62 = sphi 0, %s59
    %s63 = sphi 0, %s62
    %s79 = sphi 0, %s63
    %s85 = sphi 0, %s87
    %s88 = sphi 0, %s85
    %s89 = sphi 0, %s88
    %s105 = sphi 0, %s89
    %s111 = sphi 0, %s113
    %s114 = sphi 0, %s111
    %s115 = sphi 0, %s114
    %s131 = sphi 0, %s115
    %s135 = sphi 0, %s135
    %s137 = sphi 0, %s135
    %s138 = sphi 0, %s137
    %s152 = sphi 0, %s138
    %s156 = sphi 0, %s156
    %s158 = sphi 0, %s156
    %s159 = sphi 0, %s158
    %s173 = sphi 0, %s159
  $region4: #{inverted_residual_forward.7} parent=0 // loop_header_branch
    %14 = sbr.rel (%p12) target = $region8
  $region5: #{inverted_residual_forward.7} parent=0 // loop_body
    %s16 = ssub.s32 %s11, 1
    %s17 = ssub.s32 %s11, 2
    %s24 = sadd.s32 1, %s19
    %p25 = scmp.ge.s32.totalorder %s24, 2
    %s26 = scalar_select %p25, 0, %s24
    %s27 = sadd.s32 1, %s18
    %s28 = scalar_select %p25, %s27, %s18
    %p29 = scmp.ge.s32.totalorder %s28, 2
    %s30 = scalar_select %p29, 0, %s28
    %s31 = ssub.s32 %s18, %s30
    %p32 = scmp.eq.s32.totalorder %s31, 0
    %s34 = sadd.s32 %s33, 1
    %s35 = scalar_select %p32, %s33, %s34
    %p38 = pneg %p32
    %p39 = scmp.eq.s32.totalorder %s11, 3
    %p40 = por %p38, %p39
    %p41 = scmp.ne.s32.totalorder %s33, %s36
    %p42 = scmp.eq.s32.totalorder %s11, 0
    %p43 = por %p41, %p42
    %p44 = scmp.ne.s32.totalorder %s33, %s36
    %p45 = scmp.eq.s32.totalorder %s16, 3
    %p46 = por %p44, %p45
    %p47 = scmp.ne.s32.totalorder %s36, %s37
    %p48 = scmp.eq.s32.totalorder %s16, 0
    %p49 = por %p47, %p48
    %p50 = scmp.ne.s32.totalorder %s36, %s37
    %p51 = scmp.eq.s32.totalorder %s17, 3
    %p52 = por %p50, %p51
    %p54 = scmp.ne.s32.totalorder %s37, %s53
    %p55 = scmp.eq.s32.totalorder %s17, 0
    %p56 = por %p54, %p55
    %s57 = ssub.s32 %s18, %s30
    %p58 = scmp.eq.s32.totalorder %s57, 0
    %s60 = sadd.s32 %s59, 1
    %s61 = scalar_select %p58, %s59, %s60
    %p64 = pneg %p58
    %p65 = scmp.eq.s32.totalorder %s11, 3
    %p66 = por %p64, %p65
    %p67 = scmp.ne.s32.totalorder %s59, %s62
    %p68 = scmp.eq.s32.totalorder %s11, 0
    %p69 = por %p67, %p68
    %p70 = scmp.ne.s32.totalorder %s59, %s62
    %p71 = scmp.eq.s32.totalorder %s16, 3
    %p72 = por %p70, %p71
    %p73 = scmp.ne.s32.totalorder %s62, %s63
    %p74 = scmp.eq.s32.totalorder %s16, 0
    %p75 = por %p73, %p74
    %p76 = scmp.ne.s32.totalorder %s62, %s63
    %p77 = scmp.eq.s32.totalorder %s17, 3
    %p78 = por %p76, %p77
    %p80 = scmp.ne.s32.totalorder %s63, %s79
    %p81 = scmp.eq.s32.totalorder %s17, 0
    %p82 = por %p80, %p81
    %s83 = ssub.s32 %s18, %s30
    %p84 = scmp.eq.s32.totalorder %s83, 0
    %s86 = sadd.s32 %s85, 1
    %s87 = scalar_select %p84, %s85, %s86
    %p90 = pneg %p84
    %p91 = scmp.eq.s32.totalorder %s11, 3
    %p92 = por %p90, %p91
    %p93 = scmp.ne.s32.totalorder %s85, %s88
    %p94 = scmp.eq.s32.totalorder %s11, 0
    %p95 = por %p93, %p94
    %p96 = scmp.ne.s32.totalorder %s85, %s88
    %p97 = scmp.eq.s32.totalorder %s16, 3
    %p98 = por %p96, %p97
    %p99 = scmp.ne.s32.totalorder %s88, %s89
    %p100 = scmp.eq.s32.totalorder %s16, 0
    %p101 = por %p99, %p100
    %p102 = scmp.ne.s32.totalorder %s88, %s89
    %p103 = scmp.eq.s32.totalorder %s17, 3
    %p104 = por %p102, %p103
    %p106 = scmp.ne.s32.totalorder %s89, %s105
    %p107 = scmp.eq.s32.totalorder %s17, 0
    %p108 = por %p106, %p107
    %s109 = ssub.s32 %s18, %s30
    %p110 = scmp.eq.s32.totalorder %s109, 0
    %s112 = sadd.s32 %s111, 1
    %s113 = scalar_select %p110, %s111, %s112
    %p116 = pneg %p110
    %p117 = scmp.eq.s32.totalorder %s11, 3
    %p118 = por %p116, %p117
    %p119 = scmp.ne.s32.totalorder %s111, %s114
    %p120 = scmp.eq.s32.totalorder %s11, 0
    %p121 = por %p119, %p120
    %p122 = scmp.ne.s32.totalorder %s111, %s114
    %p123 = scmp.eq.s32.totalorder %s16, 3
    %p124 = por %p122, %p123
    %p125 = scmp.ne.s32.totalorder %s114, %s115
    %p126 = scmp.eq.s32.totalorder %s16, 0
    %p127 = por %p125, %p126
    %p128 = scmp.ne.s32.totalorder %s114, %s115
    %p129 = scmp.eq.s32.totalorder %s17, 3
    %p130 = por %p128, %p129
    %p132 = scmp.ne.s32.totalorder %s115, %s131
    %p133 = scmp.eq.s32.totalorder %s17, 0
    %p134 = por %p132, %p133
    %s136 = sadd.s32 %s135, 1
    %p139 = scmp.eq.s32.totalorder %s11, 3
    %p140 = scmp.ne.s32.totalorder %s135, %s137
    %p141 = scmp.eq.s32.totalorder %s11, 0
    %p142 = por %p140, %p141
    %p143 = scmp.ne.s32.totalorder %s135, %s137
    %p144 = scmp.eq.s32.totalorder %s16, 3
    %p145 = por %p143, %p144
    %p146 = scmp.ne.s32.totalorder %s137, %s138
    %p147 = scmp.eq.s32.totalorder %s16, 0
    %p148 = por %p146, %p147
    %p149 = scmp.ne.s32.totalorder %s137, %s138
    %p150 = scmp.eq.s32.totalorder %s17, 3
    %p151 = por %p149, %p150
    %p153 = scmp.ne.s32.totalorder %s138, %s152
    %p154 = scmp.eq.s32.totalorder %s17, 0
    %p155 = por %p153, %p154
    %s157 = sadd.s32 %s156, 1
    %p160 = scmp.eq.s32.totalorder %s11, 3
    %p161 = scmp.ne.s32.totalorder %s156, %s158
    %p162 = scmp.eq.s32.totalorder %s11, 0
    %p163 = por %p161, %p162
    %p164 = scmp.ne.s32.totalorder %s156, %s158
    %p165 = scmp.eq.s32.totalorder %s16, 3
    %p166 = por %p164, %p165
    %p167 = scmp.ne.s32.totalorder %s158, %s159
    %p168 = scmp.eq.s32.totalorder %s16, 0
    %p169 = por %p167, %p168
    %p170 = scmp.ne.s32.totalorder %s158, %s159
    %p171 = scmp.eq.s32.totalorder %s17, 3
    %p172 = por %p170, %p171
    %p174 = scmp.ne.s32.totalorder %s159, %s173
    %p175 = scmp.eq.s32.totalorder %s17, 0
    %p176 = por %p174, %p175
    %p177 = scmp.le.s32.totalorder 1, %s11
    %p178 = scmp.lt.s32.totalorder %s11, 5
    %p179 = pnand %p177, %p178
    %p180 = pneg %p179
    // Predicated region
    $region9: #{inverted_residual_forward.7} parent=5 // pred_check
      _
    $region10: #{inverted_residual_forward.7} parent=5 // pred_check_branch
      %182 = sbr.rel (%p179) target = $region12
    $region11: #{inverted_residual_forward.7} parent=5 // pred_region
      %s183 = ssub.s32 %s11, 1
      // Predicated region
      $region13: #{inverted_residual_forward.7} parent=11 // pred_check
        %p184 = pneg %p148
      $region14: #{inverted_residual_forward.7} parent=11 // pred_check_branch
        %186 = sbr.rel (%p184) target = $region16
      $region15: #{inverted_residual_forward.7} parent=11 // pred_region
        _
      $region16: #{inverted_residual_forward.7} parent=11 // pred_fallthru
        _
    $region12: #{inverted_residual_forward.7} parent=5 // pred_fallthru
      _
    %p187 = scmp.lt.s32.totalorder %s11, 4
    // Predicated region
    $region17: #{inverted_residual_forward.7} parent=5 // pred_check
      %p188 = pneg %p187
    $region18: #{inverted_residual_forward.7} parent=5 // pred_check_branch
      %190 = sbr.rel (%p188) target = $region20
    $region19: #{inverted_residual_forward.7} parent=5 // pred_region
      // Predicated region
      $region21: #{inverted_residual_forward.7} parent=19 // pred_check
        %p191 = pneg %p43
      $region22: #{inverted_residual_forward.7} parent=19 // pred_check_branch
        %193 = sbr.rel (%p191) target = $region24
      $region23: #{inverted_residual_forward.7} parent=19 // pred_region
        %p194 = scmp.lt.s32.totalorder %s18, 1
        %s195 = scalar_select %p194, %s18, 1
        %s196 = smul.addr %s195, 18
        %s197 = smul.addr %s196, 8
        %s198 = scalar_lea.vmem %s0, %s197
      $region24: #{inverted_residual_forward.7} parent=19 // pred_fallthru
        _
      // Predicated region
      $region25: #{inverted_residual_forward.7} parent=19 // pred_check
        %p199 = pneg %p69
      $region26: #{inverted_residual_forward.7} parent=19 // pred_check_branch
        %201 = sbr.rel (%p199) target = $region28
      $region27: #{inverted_residual_forward.7} parent=19 // pred_region
        %p202 = scmp.lt.s32.totalorder %s18, 1
        %s203 = scalar_select %p202, %s18, 1
        %s204 = smul.addr %s203, 18
        %s205 = smul.addr %s204, 8
        %s206 = scalar_lea.vmem %s1, %s205
      $region28: #{inverted_residual_forward.7} parent=19 // pred_fallthru
        _
      // Predicated region
      $region29: #{inverted_residual_forward.7} parent=19 // pred_check
        %p207 = pneg %p95
      $region30: #{inverted_residual_forward.7} parent=19 // pred_check_branch
        %209 = sbr.rel (%p207) target = $region32
      $region31: #{inverted_residual_forward.7} parent=19 // pred_region
        %p210 = scmp.lt.s32.totalorder %s18, 1
        %s211 = scalar_select %p210, %s18, 1
        %s212 = smul.addr %s211, 18
        %s213 = smul.addr %s212, 8
        %s214 = scalar_lea.vmem %s2, %s213
      $region32: #{inverted_residual_forward.7} parent=19 // pred_fallthru
        _
      // Predicated region
      $region33: #{inverted_residual_forward.7} parent=19 // pred_check
        %p215 = pneg %p121
      $region34: #{inverted_residual_forward.7} parent=19 // pred_check_branch
        %217 = sbr.rel (%p215) target = $region36
      $region35: #{inverted_residual_forward.7} parent=19 // pred_region
        %p218 = scmp.lt.s32.totalorder %s18, 1
        %s219 = scalar_select %p218, %s18, 1
        %s220 = smul.addr %s219, 18
        %s221 = smul.addr %s220, 8
        %s222 = scalar_lea.vmem %s3, %s221
      $region36: #{inverted_residual_forward.7} parent=19 // pred_fallthru
        _
    $region20: #{inverted_residual_forward.7} parent=5 // pred_fallthru
      _
    %p223 = scmp.le.s32.totalorder 1, %s11
    %p224 = scmp.lt.s32.totalorder %s11, 5
    %p225 = pnand %p223, %p224
    %p226 = pneg %p225
    // Predicated region
    $region37: #{inverted_residual_forward.7} parent=5 // pred_check
      _
    $region38: #{inverted_residual_forward.7} parent=5 // pred_check_branch
      %228 = sbr.rel (%p225) target = $region40
    $region39: #{inverted_residual_forward.7} parent=5 // pred_region
      %s229 = ssub.s32 %s11, 1
      %p230 = scmp.lt.s32.totalorder %s20, 1
      %s231 = scalar_select %p230, %s20, 1
      %s232 = smul.addr %s231, 18
      %s233 = smul.addr %s232, 8
      %s234 = scalar_lea.vmem %s0, %s233
      %p235 = pneg %p49
      %p236 = pneg %p46
      %p237 = scmp.lt.s32.totalorder %s20, 1
      %s238 = scalar_select %p237, %s20, 1
      %s239 = smul.addr %s238, 18
      %s240 = smul.addr %s239, 8
      %s241 = scalar_lea.vmem %s1, %s240
      %p242 = pneg %p75
      %p243 = pneg %p72
      %p244 = scmp.lt.s32.totalorder %s20, 1
      %s245 = scalar_select %p244, %s20, 1
      %s246 = smul.addr %s245, 18
      %s247 = smul.addr %s246, 8
      %s248 = scalar_lea.vmem %s2, %s247
      %p249 = pneg %p101
      %p250 = pneg %p98
      %p251 = scmp.lt.s32.totalorder %s20, 1
      %s252 = scalar_select %p251, %s20, 1
      %s253 = smul.addr %s252, 18
      %s254 = smul.addr %s253, 8
      %s255 = scalar_lea.vmem %s3, %s254
      %p256 = pneg %p127
      %p257 = pneg %p124
      %p258 = pneg %p148
      %p259 = pneg %p145
      %p260 = pneg %p169
      %p261 = pneg %p166
      %p262 = scmp.lt.s32.totalorder %s20, 1
      %s263 = scalar_select %p262, %s20, 1
      %s264 = smul.addr %s263, 18
      %s265 = smul.addr %s264, 8
      %s266 = scalar_lea.vmem %s0, %s265
      %p267 = scmp.lt.s32.totalorder %s20, 1
      %s268 = scalar_select %p267, %s20, 1
      %s269 = smul.addr %s268, 18
      %s270 = smul.addr %s269, 8
      %s271 = scalar_lea.vmem %s1, %s270
      %p272 = scmp.lt.s32.totalorder %s20, 1
      %s273 = scalar_select %p272, %s20, 1
      %s274 = smul.addr %s273, 18
      %s275 = smul.addr %s274, 8
      %s276 = scalar_lea.vmem %s2, %s275
      %p277 = scmp.lt.s32.totalorder %s20, 1
      %s278 = scalar_select %p277, %s20, 1
      %s279 = smul.addr %s278, 18
      %s280 = smul.addr %s279, 8
      %s281 = scalar_lea.vmem %s3, %s280
      %s282 = smul.u32 %s21, 4
      %v283 = vld [vmem:[%s4] sm:$0xff]
      %v284 = vld [vmem:[%s4 + $0x8] sm:$0x1]
      %s285 = smul.u32 %s282, 16
      %s286 = scalar_lea.vmem %s266, %s285
      %v287 = vld [vmem:[%s286] sm:$0xff]
      %v288 = vld [vmem:[%s286 + $0x10] sm:$0xff]
      %v289 = vld [vmem:[%s286 + $0x20] sm:$0xff]
      %v290 = vld [vmem:[%s286 + $0x30] sm:$0xff]
      %v291 = vlaneseq
      %v292 = vshrl.u32 %v291, 7
      %v293 = vsub.s32 0, %v292
      %v294 = vrot.slane %v283, %v293
      %v295 = vmul.f32 %v287, %v294
      %v296 = vmul.f32 %v288, %v294
      %v297 = vmul.f32 %v289, %v294
      %v298 = vmul.f32 %v290, %v294
      %s299 = scalar_lea.vmem %s271, %s285
      %v300 = vld [vmem:[%s299] sm:$0xff]
      %v301 = vld [vmem:[%s299 + $0x10] sm:$0xff]
      %v302 = vld [vmem:[%s299 + $0x20] sm:$0xff]
      %v303 = vld [vmem:[%s299 + $0x30] sm:$0xff]
      %v304 = vlaneseq
      %v305 = vshrl.u32 %v304, 7
      %v306 = vsub.s32 1, %v305
      %v307 = vrot.slane %v283, %v306
      %v308 = vmul.f32 %v300, %v307
      %v309 = vmul.f32 %v301, %v307
      %v310 = vmul.f32 %v302, %v307
      %v311 = vmul.f32 %v303, %v307
      %v312 = vadd.f32 %v295, %v308
      %v313 = vadd.f32 %v296, %v309
      %v314 = vadd.f32 %v297, %v310
      %v315 = vadd.f32 %v298, %v311
      %v316 = vld [vmem:[%s286 + $0x1] sm:$0xff]
      %v317 = vld [vmem:[%s286 + $0x11] sm:$0xff]
      %v318 = vld [vmem:[%s286 + $0x21] sm:$0xff]
      %v319 = vld [vmem:[%s286 + $0x31] sm:$0xff]
      %v320 = vlaneseq
      %v321 = vshrl.u32 %v320, 7
      %v322 = vsub.s32 2, %v321
      %v323 = vrot.slane %v283, %v322
      %v324 = vmul.f32 %v316, %v323
      %v325 = vmul.f32 %v317, %v323
      %v326 = vmul.f32 %v318, %v323
      %v327 = vmul.f32 %v319, %v323
      %v328 = vadd.f32 %v312, %v324
      %v329 = vadd.f32 %v313, %v325
      %v330 = vadd.f32 %v314, %v326
      %v331 = vadd.f32 %v315, %v327
      %s332 = scalar_lea.vmem %s276, %s285
      %v333 = vld [vmem:[%s332] sm:$0xff]
      %v334 = vld [vmem:[%s332 + $0x10] sm:$0xff]
      %v335 = vld [vmem:[%s332 + $0x20] sm:$0xff]
      %v336 = vld [vmem:[%s332 + $0x30] sm:$0xff]
      %v337 = vlaneseq
      %v338 = vshrl.u32 %v337, 7
      %v339 = vsub.s32 3, %v338
      %v340 = vrot.slane %v283, %v339
      %v341 = vmul.f32 %v333, %v340
      %v342 = vmul.f32 %v334, %v340
      %v343 = vmul.f32 %v335, %v340
      %v344 = vmul.f32 %v336, %v340
      %v345 = vadd.f32 %v328, %v341
      %v346 = vadd.f32 %v329, %v342
      %v347 = vadd.f32 %v330, %v343
      %v348 = vadd.f32 %v331, %v344
      %s349 = scalar_lea.vmem %s281, %s285
      %v350 = vld [vmem:[%s349] sm:$0xff]
      %v351 = vld [vmem:[%s349 + $0x10] sm:$0xff]
      %v352 = vld [vmem:[%s349 + $0x20] sm:$0xff]
      %v353 = vld [vmem:[%s349 + $0x30] sm:$0xff]
      %v354 = vlaneseq
      %v355 = vshrl.u32 %v354, 7
      %v356 = vsub.s32 4, %v355
      %v357 = vrot.slane %v283, %v356
      %v358 = vmul.f32 %v350, %v357
      %v359 = vmul.f32 %v351, %v357
      %v360 = vmul.f32 %v352, %v357
      %v361 = vmul.f32 %v353, %v357
      %v362 = vadd.f32 %v345, %v358
      %v363 = vadd.f32 %v346, %v359
      %v364 = vadd.f32 %v347, %v360
      %v365 = vadd.f32 %v348, %v361
      %v366 = vld [vmem:[%s332 + $0x1] sm:$0xff]
      %v367 = vld [vmem:[%s332 + $0x11] sm:$0xff]
      %v368 = vld [vmem:[%s332 + $0x21] sm:$0xff]
      %v369 = vld [vmem:[%s332 + $0x31] sm:$0xff]
      %v370 = vlaneseq
      %v371 = vshrl.u32 %v370, 7
      %v372 = vsub.s32 5, %v371
      %v373 = vrot.slane %v283, %v372
      %v374 = vmul.f32 %v366, %v373
      %v375 = vmul.f32 %v367, %v373
      %v376 = vmul.f32 %v368, %v373
      %v377 = vmul.f32 %v369, %v373
      %v378 = vadd.f32 %v362, %v374
      %v379 = vadd.f32 %v363, %v375
      %v380 = vadd.f32 %v364, %v376
      %v381 = vadd.f32 %v365, %v377
      %s382 = sadd.s32 %s282, 1
      %s383 = smul.u32 %s382, 16
      %s384 = scalar_lea.vmem %s266, %s383
      %v385 = vld [vmem:[%s384] sm:$0xff]
      %v386 = vld [vmem:[%s384 + $0x10] sm:$0xff]
      %v387 = vld [vmem:[%s384 + $0x20] sm:$0xff]
      %v388 = vld [vmem:[%s384 + $0x30] sm:$0xff]
      %v389 = vlaneseq
      %v390 = vshrl.u32 %v389, 7
      %v391 = vsub.s32 6, %v390
      %v392 = vrot.slane %v283, %v391
      %v393 = vmul.f32 %v385, %v392
      %v394 = vmul.f32 %v386, %v392
      %v395 = vmul.f32 %v387, %v392
      %v396 = vmul.f32 %v388, %v392
      %v397 = vadd.f32 %v378, %v393
      %v398 = vadd.f32 %v379, %v394
      %v399 = vadd.f32 %v380, %v395
      %v400 = vadd.f32 %v381, %v396
      %s401 = scalar_lea.vmem %s271, %s383
      %v402 = vld [vmem:[%s401] sm:$0xff]
      %v403 = vld [vmem:[%s401 + $0x10] sm:$0xff]
      %v404 = vld [vmem:[%s401 + $0x20] sm:$0xff]
      %v405 = vld [vmem:[%s401 + $0x30] sm:$0xff]
      %v406 = vlaneseq
      %v407 = vshrl.u32 %v406, 7
      %v408 = vsub.s32 7, %v407
      %v409 = vrot.slane %v283, %v408
      %v410 = vmul.f32 %v402, %v409
      %v411 = vmul.f32 %v403, %v409
      %v412 = vmul.f32 %v404, %v409
      %v413 = vmul.f32 %v405, %v409
      %v414 = vadd.f32 %v397, %v410
      %v415 = vadd.f32 %v398, %v411
      %v416 = vadd.f32 %v399, %v412
      %v417 = vadd.f32 %v400, %v413
      %v418 = vld [vmem:[%s384 + $0x1] sm:$0xff]
      %v419 = vld [vmem:[%s384 + $0x11] sm:$0xff]
      %v420 = vld [vmem:[%s384 + $0x21] sm:$0xff]
      %v421 = vld [vmem:[%s384 + $0x31] sm:$0xff]
      %v422 = vlaneseq
      %v423 = vshrl.u32 %v422, 7
      %v424 = vsub.s32 0, %v423
      %v425 = vrot.slane %v284, %v424
      %v426 = vmul.f32 %v418, %v425
      %v427 = vmul.f32 %v419, %v425
      %v428 = vmul.f32 %v420, %v425
      %v429 = vmul.f32 %v421, %v425
      %v430 = vadd.f32 %v414, %v426
      %v431 = vadd.f32 %v415, %v427
      %v432 = vadd.f32 %v416, %v428
      %v433 = vadd.f32 %v417, %v429
      %p434 = scmp.eq.s32.totalorder %s20, 0
      %p435 = scmp.eq.s32.totalorder %s21, 0
      %p436 = pnand %p434, %p435
      %p437 = pneg %p436
      // Predicated region
      $region41: #{inverted_residual_forward.7} parent=39 // pred_check
        _
      $region42: #{inverted_residual_forward.7} parent=39 // pred_check_branch
        %439 = sbr.rel (%p436) target = $region44
      $region43: #{inverted_residual_forward.7} parent=39 // pred_region
        %440 = vst [vmem:[%s5] sm:$0x3] 0.0
      $region44: #{inverted_residual_forward.7} parent=39 // pred_fallthru
        _
      %v441 = vld [vmem:[%s5] sm:$0x1]
      %v442 = vadd.f32 %v430, %v431
      %v443 = vadd.f32 %v442, %v432
      %v444 = vadd.f32 %v443, %v433
      %v445 = vrot.slane %v444, 4
      %v446 = vadd.f32 %v444, %v445
      %v447 = vrot.slane %v446, 2
      %v448 = vadd.f32 %v446, %v447
      %v449 = vrot.slane %v448, 1
      %v450 = vadd.f32 %v448, %v449
      %v451 = vadd.f32 %v441, %v450
      %452 = vst [vmem:[%s5] sm:$0x1] %v451
      %v453 = vld [vmem:[%s5 + $0x1] sm:$0x1]
      %v454 = vmul.f32 %v430, %v430
      %v455 = vmul.f32 %v431, %v431
      %v456 = vmul.f32 %v432, %v432
      %v457 = vmul.f32 %v433, %v433
      %v458 = vadd.f32 %v454, %v455
      %v459 = vadd.f32 %v458, %v456
      %v460 = vadd.f32 %v459, %v457
      %v461 = vrot.slane %v460, 4
      %v462 = vadd.f32 %v460, %v461
      %v463 = vrot.slane %v462, 2
      %v464 = vadd.f32 %v462, %v463
      %v465 = vrot.slane %v464, 1
      %v466 = vadd.f32 %v464, %v465
      %v467 = vadd.f32 %v453, %v466
      %468 = vst [vmem:[%s5 + $0x1] sm:$0x1] %v467
      // Predicated region
      $region45: #{inverted_residual_forward.7} parent=39 // pred_check
        %p469 = pneg %p166
      $region46: #{inverted_residual_forward.7} parent=39 // pred_check_branch
        %471 = sbr.rel (%p469) target = $region48
      $region47: #{inverted_residual_forward.7} parent=39 // pred_region
        _
      $region48: #{inverted_residual_forward.7} parent=39 // pred_fallthru
        _
      // Predicated region
      $region49: #{inverted_residual_forward.7} parent=39 // pred_check
        %p472 = pneg %p166
      $region50: #{inverted_residual_forward.7} parent=39 // pred_check_branch
        %474 = sbr.rel (%p472) target = $region52
      $region51: #{inverted_residual_forward.7} parent=39 // pred_region
        _
      $region52: #{inverted_residual_forward.7} parent=39 // pred_fallthru
        _
    $region40: #{inverted_residual_forward.7} parent=5 // pred_fallthru
      _
    %p475 = scmp.le.s32.totalorder 2, %s11
    // Predicated region
    $region53: #{inverted_residual_forward.7} parent=5 // pred_check
      %p476 = pneg %p475
    $region54: #{inverted_residual_forward.7} parent=5 // pred_check_branch
      %478 = sbr.rel (%p476) target = $region56
    $region55: #{inverted_residual_forward.7} parent=5 // pred_region
      %s479 = ssub.s32 %s11, 2
    $region56: #{inverted_residual_forward.7} parent=5 // pred_fallthru
      _
  $region6: #{inverted_residual_forward.7} parent=0 // loop_footer
    %s15 = sadd.s32 1, %s11
  $region7: #{inverted_residual_forward.7} parent=0 // loop_footer_branch
    %10 = sbr.rel target = $region3
  $region8: #{inverted_residual_forward.7} parent=0 // loop_exit
    _

// kernel: inverted_residual_forward.6
$region0: #{inverted_residual_forward.6}
  #allocation0 [shape = 'u32[]', space=smem, size = 0x4, offset = 0x4, fixed_abs, tag = 'smem constant byte address 0x4 - core index']
  #allocation1 [shape = 'u32[144,128]{1,0:T(1,128)}', space=vmem, size = 0x12000, scoped, tag = 'internal scratch']
  %s0 = inlined_call_operand.vmem [shape: f32[512,4], index: 0, kind: input, shape index: {}]
  %s1 = inlined_call_operand.vmem [shape: f32[4,128], index: 1, kind: input, shape index: {}]
  %s2 = inlined_call_operand.vmem [shape: f32[2,128], index: 2, kind: input, shape index: {}]
  %s3 = inlined_call_operand.vmem [shape: f32[1,128], index: 3, kind: input, shape index: {}]
  %s4 = inlined_call_operand.vmem [shape: f32[1,128], index: 4, kind: input, shape index: {}]
  %s5 = inlined_call_operand.vmem [shape: f32[512,128], index: 5, kind: output, shape index: {}]
  %s6 = sld [smem:[#allocation0]]
  $region53: #{inverted_residual_forward.6} parent=0
    _
  %s8 = ssub.s32 1, %s6
  %s9 = scalar_select 0, %s8, %s6
  loop: start=0, step=1, limit=4
  $region2: #{inverted_residual_forward.6} parent=0 // loop_pre_header
    _
  $region3: #{inverted_residual_forward.6} parent=0 // loop_header
    %s11 = sphi 0, %s15
    %p12 = scmp.ge.s32.totalorder %s11, 4
    %s21 = sphi 0, %s23
    %s24 = sphi 0, %s21
    %s25 = sphi 0, %s24
    %s41 = sphi 0, %s25
    %s45 = sphi 0, %s45
    %s47 = sphi 0, %s45
    %s48 = sphi 0, %s47
    %s62 = sphi 0, %s48
    %s66 = sphi 0, %s66
    %s68 = sphi 0, %s66
    %s69 = sphi 0, %s68
    %s83 = sphi 0, %s69
    %s87 = sphi 0, %s87
    %s89 = sphi 0, %s87
    %s90 = sphi 0, %s89
    %s104 = sphi 0, %s90
    %s108 = sphi 0, %s108
    %s110 = sphi 0, %s108
    %s111 = sphi 0, %s110
    %s125 = sphi 0, %s111
    %s131 = sphi 0, %s133
    %s134 = sphi 0, %s131
    %s135 = sphi 0, %s134
    %s151 = sphi 0, %s135
  $region4: #{inverted_residual_forward.6} parent=0 // loop_header_branch
    %14 = sbr.rel (%p12) target = $region8
  $region5: #{inverted_residual_forward.6} parent=0 // loop_body
    %s16 = ssub.s32 %s11, 1
    %s17 = ssub.s32 %s11, 2
    %s18 = sadd.s32 %s11, 1
    %s19 = ssub.s32 %s11, %s18
    %p20 = scmp.eq.s32.totalorder %s19, 0
    %s22 = sadd.s32 %s21, 1
    %s23 = scalar_select %p20, %s21, %s22
    %p26 = pneg %p20
    %p27 = scmp.eq.s32.totalorder %s11, 1
    %p28 = por %p26, %p27
    %p29 = scmp.ne.s32.totalorder %s21, %s24
    %p30 = scmp.eq.s32.totalorder %s11, 0
    %p31 = por %p29, %p30
    %p32 = scmp.ne.s32.totalorder %s21, %s24
    %p33 = scmp.eq.s32.totalorder %s16, 1
    %p34 = por %p32, %p33
    %p35 = scmp.ne.s32.totalorder %s24, %s25
    %p36 = scmp.eq.s32.totalorder %s16, 0
    %p37 = por %p35, %p36
    %p38 = scmp.ne.s32.totalorder %s24, %s25
    %p39 = scmp.eq.s32.totalorder %s17, 1
    %p40 = por %p38, %p39
    %p42 = scmp.ne.s32.totalorder %s25, %s41
    %p43 = scmp.eq.s32.totalorder %s17, 0
    %p44 = por %p42, %p43
    %s46 = sadd.s32 %s45, 1
    %p49 = scmp.eq.s32.totalorder %s11, 1
    %p50 = scmp.ne.s32.totalorder %s45, %s47
    %p51 = scmp.eq.s32.totalorder %s11, 0
    %p52 = por %p50, %p51
    %p53 = scmp.ne.s32.totalorder %s45, %s47
    %p54 = scmp.eq.s32.totalorder %s16, 1
    %p55 = por %p53, %p54
    %p56 = scmp.ne.s32.totalorder %s47, %s48
    %p57 = scmp.eq.s32.totalorder %s16, 0
    %p58 = por %p56, %p57
    %p59 = scmp.ne.s32.totalorder %s47, %s48
    %p60 = scmp.eq.s32.totalorder %s17, 1
    %p61 = por %p59, %p60
    %p63 = scmp.ne.s32.totalorder %s48, %s62
    %p64 = scmp.eq.s32.totalorder %s17, 0
    %p65 = por %p63, %p64
    %s67 = sadd.s32 %s66, 1
    %p70 = scmp.eq.s32.totalorder %s11, 1
    %p71 = scmp.ne.s32.totalorder %s66, %s68
    %p72 = scmp.eq.s32.totalorder %s11, 0
    %p73 = por %p71, %p72
    %p74 = scmp.ne.s32.totalorder %s66, %s68
    %p75 = scmp.eq.s32.totalorder %s16, 1
    %p76 = por %p74, %p75
    %p77 = scmp.ne.s32.totalorder %s68, %s69
    %p78 = scmp.eq.s32.totalorder %s16, 0
    %p79 = por %p77, %p78
    %p80 = scmp.ne.s32.totalorder %s68, %s69
    %p81 = scmp.eq.s32.totalorder %s17, 1
    %p82 = por %p80, %p81
    %p84 = scmp.ne.s32.totalorder %s69, %s83
    %p85 = scmp.eq.s32.totalorder %s17, 0
    %p86 = por %p84, %p85
    %s88 = sadd.s32 %s87, 1
    %p91 = scmp.eq.s32.totalorder %s11, 1
    %p92 = scmp.ne.s32.totalorder %s87, %s89
    %p93 = scmp.eq.s32.totalorder %s11, 0
    %p94 = por %p92, %p93
    %p95 = scmp.ne.s32.totalorder %s87, %s89
    %p96 = scmp.eq.s32.totalorder %s16, 1
    %p97 = por %p95, %p96
    %p98 = scmp.ne.s32.totalorder %s89, %s90
    %p99 = scmp.eq.s32.totalorder %s16, 0
    %p100 = por %p98, %p99
    %p101 = scmp.ne.s32.totalorder %s89, %s90
    %p102 = scmp.eq.s32.totalorder %s17, 1
    %p103 = por %p101, %p102
    %p105 = scmp.ne.s32.totalorder %s90, %s104
    %p106 = scmp.eq.s32.totalorder %s17, 0
    %p107 = por %p105, %p106
    %s109 = sadd.s32 %s108, 1
    %p112 = scmp.eq.s32.totalorder %s11, 1
    %p113 = scmp.ne.s32.totalorder %s108, %s110
    %p114 = scmp.eq.s32.totalorder %s11, 0
    %p115 = por %p113, %p114
    %p116 = scmp.ne.s32.totalorder %s108, %s110
    %p117 = scmp.eq.s32.totalorder %s16, 1
    %p118 = por %p116, %p117
    %p119 = scmp.ne.s32.totalorder %s110, %s111
    %p120 = scmp.eq.s32.totalorder %s16, 0
    %p121 = por %p119, %p120
    %p122 = scmp.ne.s32.totalorder %s110, %s111
    %p123 = scmp.eq.s32.totalorder %s17, 1
    %p124 = por %p122, %p123
    %p126 = scmp.ne.s32.totalorder %s111, %s125
    %p127 = scmp.eq.s32.totalorder %s17, 0
    %p128 = por %p126, %p127
    %s129 = ssub.s32 %s11, %s18
    %p130 = scmp.eq.s32.totalorder %s129, 0
    %s132 = sadd.s32 %s131, 1
    %s133 = scalar_select %p130, %s131, %s132
    %p136 = pneg %p130
    %p137 = scmp.eq.s32.totalorder %s11, 1
    %p138 = por %p136, %p137
    %p139 = scmp.ne.s32.totalorder %s131, %s134
    %p140 = scmp.eq.s32.totalorder %s11, 0
    %p141 = por %p139, %p140
    %p142 = scmp.ne.s32.totalorder %s131, %s134
    %p143 = scmp.eq.s32.totalorder %s16, 1
    %p144 = por %p142, %p143
    %p145 = scmp.ne.s32.totalorder %s134, %s135
    %p146 = scmp.eq.s32.totalorder %s16, 0
    %p147 = por %p145, %p146
    %p148 = scmp.ne.s32.totalorder %s134, %s135
    %p149 = scmp.eq.s32.totalorder %s17, 1
    %p150 = por %p148, %p149
    %p152 = scmp.ne.s32.totalorder %s135, %s151
    %p153 = scmp.eq.s32.totalorder %s17, 0
    %p154 = por %p152, %p153
    %p155 = scmp.le.s32.totalorder 1, %s11
    %p156 = scmp.lt.s32.totalorder %s11, 3
    %p157 = pnand %p155, %p156
    %p158 = pneg %p157
    // Predicated region
    $region9: #{inverted_residual_forward.6} parent=5 // pred_check
      _
    $region10: #{inverted_residual_forward.6} parent=5 // pred_check_branch
      %160 = sbr.rel (%p157) target = $region12
    $region11: #{inverted_residual_forward.6} parent=5 // pred_region
      %s161 = ssub.s32 %s11, 1
      // Predicated region
      $region13: #{inverted_residual_forward.6} parent=11 // pred_check
        %p162 = pneg %p58
      $region14: #{inverted_residual_forward.6} parent=11 // pred_check_branch
        %164 = sbr.rel (%p162) target = $region16
      $region15: #{inverted_residual_forward.6} parent=11 // pred_region
        _
      $region16: #{inverted_residual_forward.6} parent=11 // pred_fallthru
        _
      // Predicated region
      $region17: #{inverted_residual_forward.6} parent=11 // pred_check
        %p165 = pneg %p79
      $region18: #{inverted_residual_forward.6} parent=11 // pred_check_branch
        %167 = sbr.rel (%p165) target = $region20
      $region19: #{inverted_residual_forward.6} parent=11 // pred_region
        _
      $region20: #{inverted_residual_forward.6} parent=11 // pred_fallthru
        _
      // Predicated region
      $region21: #{inverted_residual_forward.6} parent=11 // pred_check
        %p168 = pneg %p100
      $region22: #{inverted_residual_forward.6} parent=11 // pred_check_branch
        %170 = sbr.rel (%p168) target = $region24
      $region23: #{inverted_residual_forward.6} parent=11 // pred_region
        _
      $region24: #{inverted_residual_forward.6} parent=11 // pred_fallthru
        _
      // Predicated region
      $region25: #{inverted_residual_forward.6} parent=11 // pred_check
        %p171 = pneg %p121
      $region26: #{inverted_residual_forward.6} parent=11 // pred_check_branch
        %173 = sbr.rel (%p171) target = $region28
      $region27: #{inverted_residual_forward.6} parent=11 // pred_region
        _
      $region28: #{inverted_residual_forward.6} parent=11 // pred_fallthru
        _
    $region12: #{inverted_residual_forward.6} parent=5 // pred_fallthru
      _
    %p174 = scmp.lt.s32.totalorder %s11, 2
    // Predicated region
    $region29: #{inverted_residual_forward.6} parent=5 // pred_check
      %p175 = pneg %p174
    $region30: #{inverted_residual_forward.6} parent=5 // pred_check_branch
      %177 = sbr.rel (%p175) target = $region32
    $region31: #{inverted_residual_forward.6} parent=5 // pred_region
      // Predicated region
      $region33: #{inverted_residual_forward.6} parent=31 // pred_check
        %p178 = pneg %p31
      $region34: #{inverted_residual_forward.6} parent=31 // pred_check_branch
        %180 = sbr.rel (%p178) target = $region36
      $region35: #{inverted_residual_forward.6} parent=31 // pred_region
        %s181 = smul.u32 32, %s11
        %p182 = scmp.lt.s32.totalorder %s181, 63
        %s183 = scalar_select %p182, %s181, 63
        %s184 = smul.addr %s183, 8
        %s185 = scalar_lea.vmem %s0, %s184
        %s186 = smul.u32 32, %s11
      $region36: #{inverted_residual_forward.6} parent=31 // pred_fallthru
        _
    $region32: #{inverted_residual_forward.6} parent=5 // pred_fallthru
      _
    %p187 = scmp.le.s32.totalorder 1, %s11
    %p188 = scmp.lt.s32.totalorder %s11, 3
    %p189 = pnand %p187, %p188
    %p190 = pneg %p189
    // Predicated region
    $region37: #{inverted_residual_forward.6} parent=5 // pred_check
      _
    $region38: #{inverted_residual_forward.6} parent=5 // pred_check_branch
      %192 = sbr.rel (%p189) target = $region40
    $region39: #{inverted_residual_forward.6} parent=5 // pred_region
      %s193 = ssub.s32 %s11, 1
      %s194 = smul.u32 32, %s16
      %p195 = scmp.lt.s32.totalorder %s194, 63
      %s196 = scalar_select %p195, %s194, 63
      %s197 = smul.addr %s196, 8
      %s198 = scalar_lea.vmem %s0, %s197
      %p199 = pneg %p37
      %p200 = pneg %p34
      %p201 = pneg %p58
      %p202 = pneg %p55
      %p203 = pneg %p79
      %p204 = pneg %p76
      %p205 = pneg %p100
      %p206 = pneg %p97
      %p207 = pneg %p121
      %p208 = pneg %p118
      %p209 = pneg %p147
      %p210 = pneg %p144
      %s211 = smul.u32 32, %s16
      %p212 = scmp.lt.s32.totalorder %s211, 63
      %s213 = scalar_select %p212, %s211, 63
      %s214 = smul.addr %s213, 8
      %s215 = scalar_lea.vmem %s5, %s214
      %s216 = smul.u32 32, %s16
      %p217 = scmp.lt.s32.totalorder %s216, 63
      %s218 = scalar_select %p217, %s216, 63
      %s219 = smul.addr %s218, 8
      %s220 = scalar_lea.vmem %s0, %s219
      %s221 = smul.u32 32, %s16
      %s222 = smul.u32 32, %s16
      %p223 = scmp.lt.s32.totalorder %s222, 63
      %s224 = scalar_select %p223, %s222, 63
      %s225 = smul.addr %s224, 8
      %s226 = scalar_lea.vmem %s5, %s225
      %s227 = smul.u32 32, %s16
      %v228 = vld [vmem:[%s220] sm:$0xff]
      %v229 = vld [vmem:[%s220 + $0x8] sm:$0xff]
      %v230 = vld [vmem:[%s220 + $0x10] sm:$0xff]
      %v231 = vld [vmem:[%s220 + $0x18] sm:$0xff]
      %v232 = vld [vmem:[%s220 + $0x20] sm:$0xff]
      %v233 = vld [vmem:[%s220 + $0x28] sm:$0xff]
      %v234 = vld [vmem:[%s220 + $0x30] sm:$0xff]
      %v235 = vld [vmem:[%s220 + $0x38] sm:$0xff]
      %v236 = vld [vmem:[%s220 + $0x40] sm:$0xff]
      %v237 = vld [vmem:[%s220 + $0x48] sm:$0xff]
      %v238 = vld [vmem:[%s220 + $0x50] sm:$0xff]
      %v239 = vld [vmem:[%s220 + $0x58] sm:$0xff]
      %v240 = vld [vmem:[%s220 + $0x60] sm:$0xff]
      %v241 = vld [vmem:[%s220 + $0x68] sm:$0xff]
      %v242 = vld [vmem:[%s220 + $0x70] sm:$0xff]
      %v243 = vld [vmem:[%s220 + $0x78] sm:$0xff]
      %v244 = vld [vmem:[%s220 + $0x80] sm:$0xff]
      %v245 = vld [vmem:[%s220 + $0x88] sm:$0xff]
      %v246 = vld [vmem:[%s220 + $0x90] sm:$0xff]
      %v247 = vld [vmem:[%s220 + $0x98] sm:$0xff]
      %v248 = vld [vmem:[%s220 + $0xa0] sm:$0xff]
      %v249 = vld [vmem:[%s220 + $0xa8] sm:$0xff]
      %v250 = vld [vmem:[%s220 + $0xb0] sm:$0xff]
      %v251 = vld [vmem:[%s220 + $0xb8] sm:$0xff]
      %v252 = vld [vmem:[%s220 + $0xc0] sm:$0xff]
      %v253 = vld [vmem:[%s220 + $0xc8] sm:$0xff]
      %v254 = vld [vmem:[%s220 + $0xd0] sm:$0xff]
      %v255 = vld [vmem:[%s220 + $0xd8] sm:$0xff]
      %v256 = vld [vmem:[%s220 + $0xe0] sm:$0xff]
      %v257 = vld [vmem:[%s220 + $0xe8] sm:$0xff]
      %v258 = vld [vmem:[%s220 + $0xf0] sm:$0xff]
      %v259 = vld [vmem:[%s220 + $0xf8] sm:$0xff]
      %v260 = vld [vmem:[%s1] sm:$0xf]
      %262 = vset.pattern.permute.xlu0 0
      %263 = vperm.xlu0 %262, %v228
      %v264 = vpop.permute.xlu0 %263
      %267 = vset.pattern.permute.xlu0 0
      %268 = vperm.xlu0 %267, %v229
      %v269 = vpop.permute.xlu0 %268
      %272 = vset.pattern.permute.xlu0 0
      %273 = vperm.xlu0 %272, %v230
      %v274 = vpop.permute.xlu0 %273
      %277 = vset.pattern.permute.xlu0 0
      %278 = vperm.xlu0 %277, %v231
      %v279 = vpop.permute.xlu0 %278
      %282 = vset.pattern.permute.xlu0 0
      %283 = vperm.xlu0 %282, %v232
      %v284 = vpop.permute.xlu0 %283
      %287 = vset.pattern.permute.xlu0 0
      %288 = vperm.xlu0 %287, %v233
      %v289 = vpop.permute.xlu0 %288
      %292 = vset.pattern.permute.xlu0 0
      %293 = vperm.xlu0 %292, %v234
      %v294 = vpop.permute.xlu0 %293
      %297 = vset.pattern.permute.xlu0 0
      %298 = vperm.xlu0 %297, %v235
      %v299 = vpop.permute.xlu0 %298
      %302 = vset.pattern.permute.xlu0 0
      %303 = vperm.xlu0 %302, %v236
      %v304 = vpop.permute.xlu0 %303
      %307 = vset.pattern.permute.xlu0 0
      %308 = vperm.xlu0 %307, %v237
      %v309 = vpop.permute.xlu0 %308
      %312 = vset.pattern.permute.xlu0 0
      %313 = vperm.xlu0 %312, %v238
      %v314 = vpop.permute.xlu0 %313
      %317 = vset.pattern.permute.xlu0 0
      %318 = vperm.xlu0 %317, %v239
      %v319 = vpop.permute.xlu0 %318
      %322 = vset.pattern.permute.xlu0 0
      %323 = vperm.xlu0 %322, %v240
      %v324 = vpop.permute.xlu0 %323
      %327 = vset.pattern.permute.xlu0 0
      %328 = vperm.xlu0 %327, %v241
      %v329 = vpop.permute.xlu0 %328
      %332 = vset.pattern.permute.xlu0 0
      %333 = vperm.xlu0 %332, %v242
      %v334 = vpop.permute.xlu0 %333
      %337 = vset.pattern.permute.xlu0 0
      %338 = vperm.xlu0 %337, %v243
      %v339 = vpop.permute.xlu0 %338
      %342 = vset.pattern.permute.xlu0 0
      %343 = vperm.xlu0 %342, %v244
      %v344 = vpop.permute.xlu0 %343
      %347 = vset.pattern.permute.xlu0 0
      %348 = vperm.xlu0 %347, %v245
      %v349 = vpop.permute.xlu0 %348
      %352 = vset.pattern.permute.xlu0 0
      %353 = vperm.xlu0 %352, %v246
      %v354 = vpop.permute.xlu0 %353
      %357 = vset.pattern.permute.xlu0 0
      %358 = vperm.xlu0 %357, %v247
      %v359 = vpop.permute.xlu0 %358
      %362 = vset.pattern.permute.xlu0 0
      %363 = vperm.xlu0 %362, %v248
      %v364 = vpop.permute.xlu0 %363
      %367 = vset.pattern.permute.xlu0 0
      %368 = vperm.xlu0 %367, %v249
      %v369 = vpop.permute.xlu0 %368
      %372 = vset.pattern.permute.xlu0 0
      %373 = vperm.xlu0 %372, %v250
      %v374 = vpop.permute.xlu0 %373
      %377 = vset.pattern.permute.xlu0 0
      %378 = vperm.xlu0 %377, %v251
      %v379 = vpop.permute.xlu0 %378
      %382 = vset.pattern.permute.xlu0 0
      %383 = vperm.xlu0 %382, %v252
      %v384 = vpop.permute.xlu0 %383
      %387 = vset.pattern.permute.xlu0 0
      %388 = vperm.xlu0 %387, %v253
      %v389 = vpop.permute.xlu0 %388
      %392 = vset.pattern.permute.xlu0 0
      %393 = vperm.xlu0 %392, %v254
      %v394 = vpop.permute.xlu0 %393
      %397 = vset.pattern.permute.xlu0 0
      %398 = vperm.xlu0 %397, %v255
      %v399 = vpop.permute.xlu0 %398
      %402 = vset.pattern.permute.xlu0 0
      %403 = vperm.xlu0 %402, %v256
      %v404 = vpop.permute.xlu0 %403
      %407 = vset.pattern.permute.xlu0 0
      %408 = vperm.xlu0 %407, %v257
      %v409 = vpop.permute.xlu0 %408
      %412 = vset.pattern.permute.xlu0 0
      %413 = vperm.xlu0 %412, %v258
      %v414 = vpop.permute.xlu0 %413
      %417 = vset.pattern.permute.xlu0 0
      %418 = vperm.xlu0 %417, %v259
      %v419 = vpop.permute.xlu0 %418
      %v421 = vlaneseq
      %v422 = vshrl.u32 %v421, 7
      %v423 = vsub.s32 0, %v422
      %v424 = vrot.slane %v260, %v423
      %v425 = vmul.f32 %v264, %v424
      %v426 = vmul.f32 %v269, %v424
      %v427 = vmul.f32 %v274, %v424
      %v428 = vmul.f32 %v279, %v424
      %v429 = vmul.f32 %v284, %v424
      %v430 = vmul.f32 %v289, %v424
      %v431 = vmul.f32 %v294, %v424
      %v432 = vmul.f32 %v299, %v424
      %v433 = vmul.f32 %v304, %v424
      %v434 = vmul.f32 %v309, %v424
      %v435 = vmul.f32 %v314, %v424
      %v436 = vmul.f32 %v319, %v424
      %v437 = vmul.f32 %v324, %v424
      %v438 = vmul.f32 %v329, %v424
      %v439 = vmul.f32 %v334, %v424
      %v440 = vmul.f32 %v339, %v424
      %v441 = vmul.f32 %v344, %v424
      %v442 = vmul.f32 %v349, %v424
      %v443 = vmul.f32 %v354, %v424
      %v444 = vmul.f32 %v359, %v424
      %v445 = vmul.f32 %v364, %v424
      %v446 = vmul.f32 %v369, %v424
      %v447 = vmul.f32 %v374, %v424
      %v448 = vmul.f32 %v379, %v424
      %v449 = vmul.f32 %v384, %v424
      %v450 = vmul.f32 %v389, %v424
      %v451 = vmul.f32 %v394, %v424
      %v452 = vmul.f32 %v399, %v424
      %v453 = vmul.f32 %v404, %v424
      %v454 = vmul.f32 %v409, %v424
      %v455 = vmul.f32 %v414, %v424
      %v456 = vmul.f32 %v419, %v424
      %457 = vset.pattern.permute.xlu0 1
      %458 = vperm.xlu0 %457, %v228
      %v459 = vpop.permute.xlu0 %458
      %461 = vset.pattern.permute.xlu0 1
      %462 = vperm.xlu0 %461, %v229
      %v463 = vpop.permute.xlu0 %462
      %465 = vset.pattern.permute.xlu0 1
      %466 = vperm.xlu0 %465, %v230
      %v467 = vpop.permute.xlu0 %466
      %469 = vset.pattern.permute.xlu0 1
      %470 = vperm.xlu0 %469, %v231
      %v471 = vpop.permute.xlu0 %470
      %473 = vset.pattern.permute.xlu0 1
      %474 = vperm.xlu0 %473, %v232
      %v475 = vpop.permute.xlu0 %474
      %477 = vset.pattern.permute.xlu0 1
      %478 = vperm.xlu0 %477, %v233
      %v479 = vpop.permute.xlu0 %478
      %481 = vset.pattern.permute.xlu0 1
      %482 = vperm.xlu0 %481, %v234
      %v483 = vpop.permute.xlu0 %482
      %485 = vset.pattern.permute.xlu0 1
      %486 = vperm.xlu0 %485, %v235
      %v487 = vpop.permute.xlu0 %486
      %489 = vset.pattern.permute.xlu0 1
      %490 = vperm.xlu0 %489, %v236
      %v491 = vpop.permute.xlu0 %490
      %493 = vset.pattern.permute.xlu0 1
      %494 = vperm.xlu0 %493, %v237
      %v495 = vpop.permute.xlu0 %494
      %497 = vset.pattern.permute.xlu0 1
      %498 = vperm.xlu0 %497, %v238
      %v499 = vpop.permute.xlu0 %498
      %501 = vset.pattern.permute.xlu0 1
      %502 = vperm.xlu0 %501, %v239
      %v503 = vpop.permute.xlu0 %502
      %505 = vset.pattern.permute.xlu0 1
      %506 = vperm.xlu0 %505, %v240
      %v507 = vpop.permute.xlu0 %506
      %509 = vset.pattern.permute.xlu0 1
      %510 = vperm.xlu0 %509, %v241
      %v511 = vpop.permute.xlu0 %510
      %513 = vset.pattern.permute.xlu0 1
      %514 = vperm.xlu0 %513, %v242
      %v515 = vpop.permute.xlu0 %514
      %517 = vset.pattern.permute.xlu0 1
      %518 = vperm.xlu0 %517, %v243
      %v519 = vpop.permute.xlu0 %518
      %521 = vset.pattern.permute.xlu0 1
      %522 = vperm.xlu0 %521, %v244
      %v523 = vpop.permute.xlu0 %522
      %525 = vset.pattern.permute.xlu0 1
      %526 = vperm.xlu0 %525, %v245
      %v527 = vpop.permute.xlu0 %526
      %529 = vset.pattern.permute.xlu0 1
      %530 = vperm.xlu0 %529, %v246
      %v531 = vpop.permute.xlu0 %530
      %533 = vset.pattern.permute.xlu0 1
      %534 = vperm.xlu0 %533, %v247
      %v535 = vpop.permute.xlu0 %534
      %537 = vset.pattern.permute.xlu0 1
      %538 = vperm.xlu0 %537, %v248
      %v539 = vpop.permute.xlu0 %538
      %541 = vset.pattern.permute.xlu0 1
      %542 = vperm.xlu0 %541, %v249
      %v543 = vpop.permute.xlu0 %542
      %545 = vset.pattern.permute.xlu0 1
      %546 = vperm.xlu0 %545, %v250
      %v547 = vpop.permute.xlu0 %546
      %549 = vset.pattern.permute.xlu0 1
      %550 = vperm.xlu0 %549, %v251
      %v551 = vpop.permute.xlu0 %550
      %553 = vset.pattern.permute.xlu0 1
      %554 = vperm.xlu0 %553, %v252
      %v555 = vpop.permute.xlu0 %554
      %557 = vset.pattern.permute.xlu0 1
      %558 = vperm.xlu0 %557, %v253
      %v559 = vpop.permute.xlu0 %558
      %561 = vset.pattern.permute.xlu0 1
      %562 = vperm.xlu0 %561, %v254
      %v563 = vpop.permute.xlu0 %562
      %565 = vset.pattern.permute.xlu0 1
      %566 = vperm.xlu0 %565, %v255
      %v567 = vpop.permute.xlu0 %566
      %569 = vset.pattern.permute.xlu0 1
      %570 = vperm.xlu0 %569, %v256
      %v571 = vpop.permute.xlu0 %570
      %573 = vset.pattern.permute.xlu0 1
      %574 = vperm.xlu0 %573, %v257
      %v575 = vpop.permute.xlu0 %574
      %577 = vset.pattern.permute.xlu0 1
      %578 = vperm.xlu0 %577, %v258
      %v579 = vpop.permute.xlu0 %578
      %581 = vset.pattern.permute.xlu0 1
      %582 = vperm.xlu0 %581, %v259
      %v583 = vpop.permute.xlu0 %582
      %v585 = vlaneseq
      %v586 = vshrl.u32 %v585, 7
      %v587 = vsub.s32 1, %v586
      %v588 = vrot.slane %v260, %v587
      %v589 = vmul.f32 %v459, %v588
      %v590 = vmul.f32 %v463, %v588
      %v591 = vmul.f32 %v467, %v588
      %v592 = vmul.f32 %v471, %v588
      %v593 = vmul.f32 %v475, %v588
      %v594 = vmul.f32 %v479, %v588
      %v595 = vmul.f32 %v483, %v588
      %v596 = vmul.f32 %v487, %v588
      %v597 = vmul.f32 %v491, %v588
      %v598 = vmul.f32 %v495, %v588
      %v599 = vmul.f32 %v499, %v588
      %v600 = vmul.f32 %v503, %v588
      %v601 = vmul.f32 %v507, %v588
      %v602 = vmul.f32 %v511, %v588
      %v603 = vmul.f32 %v515, %v588
      %v604 = vmul.f32 %v519, %v588
      %v605 = vmul.f32 %v523, %v588
      %v606 = vmul.f32 %v527, %v588
      %v607 = vmul.f32 %v531, %v588
      %v608 = vmul.f32 %v535, %v588
      %v609 = vmul.f32 %v539, %v588
      %v610 = vmul.f32 %v543, %v588
      %v611 = vmul.f32 %v547, %v588
      %v612 = vmul.f32 %v551, %v588
      %v613 = vmul.f32 %v555, %v588
      %v614 = vmul.f32 %v559, %v588
      %v615 = vmul.f32 %v563, %v588
      %v616 = vmul.f32 %v567, %v588
      %v617 = vmul.f32 %v571, %v588
      %v618 = vmul.f32 %v575, %v588
      %v619 = vmul.f32 %v579, %v588
      %v620 = vmul.f32 %v583, %v588
      %v621 = vadd.f32 %v425, %v589
      %v622 = vadd.f32 %v426, %v590
      %v623 = vadd.f32 %v427, %v591
      %v624 = vadd.f32 %v428, %v592
      %v625 = vadd.f32 %v429, %v593
      %v626 = vadd.f32 %v430, %v594
      %v627 = vadd.f32 %v431, %v595
      %v628 = vadd.f32 %v432, %v596
      %v629 = vadd.f32 %v433, %v597
      %v630 = vadd.f32 %v434, %v598
      %v631 = vadd.f32 %v435, %v599
      %v632 = vadd.f32 %v436, %v600
      %v633 = vadd.f32 %v437, %v601
      %v634 = vadd.f32 %v438, %v602
      %v635 = vadd.f32 %v439, %v603
      %v636 = vadd.f32 %v440, %v604
      %v637 = vadd.f32 %v441, %v605
      %v638 = vadd.f32 %v442, %v606
      %v639 = vadd.f32 %v443, %v607
      %v640 = vadd.f32 %v444, %v608
      %v641 = vadd.f32 %v445, %v609
      %v642 = vadd.f32 %v446, %v610
      %v643 = vadd.f32 %v447, %v611
      %v644 = vadd.f32 %v448, %v612
      %v645 = vadd.f32 %v449, %v613
      %v646 = vadd.f32 %v450, %v614
      %v647 = vadd.f32 %v451, %v615
      %v648 = vadd.f32 %v452, %v616
      %v649 = vadd.f32 %v453, %v617
      %v650 = vadd.f32 %v454, %v618
      %v651 = vadd.f32 %v455, %v619
      %v652 = vadd.f32 %v456, %v620
      %653 = vset.pattern.permute.xlu0 2
      %654 = vperm.xlu0 %653, %v228
      %v655 = vpop.permute.xlu0 %654
      %657 = vset.pattern.permute.xlu0 2
      %658 = vperm.xlu0 %657, %v229
      %v659 = vpop.permute.xlu0 %658
      %661 = vset.pattern.permute.xlu0 2
      %662 = vperm.xlu0 %661, %v230
      %v663 = vpop.permute.xlu0 %662
      %665 = vset.pattern.permute.xlu0 2
      %666 = vperm.xlu0 %665, %v231
      %v667 = vpop.permute.xlu0 %666
      %669 = vset.pattern.permute.xlu0 2
      %670 = vperm.xlu0 %669, %v232
      %v671 = vpop.permute.xlu0 %670
      %673 = vset.pattern.permute.xlu0 2
      %674 = vperm.xlu0 %673, %v233
      %v675 = vpop.permute.xlu0 %674
      %677 = vset.pattern.permute.xlu0 2
      %678 = vperm.xlu0 %677, %v234
      %v679 = vpop.permute.xlu0 %678
      %681 = vset.pattern.permute.xlu0 2
      %682 = vperm.xlu0 %681, %v235
      %v683 = vpop.permute.xlu0 %682
      %685 = vset.pattern.permute.xlu0 2
      %686 = vperm.xlu0 %685, %v236
      %v687 = vpop.permute.xlu0 %686
      %689 = vset.pattern.permute.xlu0 2
      %690 = vperm.xlu0 %689, %v237
      %v691 = vpop.permute.xlu0 %690
      %693 = vset.pattern.permute.xlu0 2
      %694 = vperm.xlu0 %693, %v238
      %v695 = vpop.permute.xlu0 %694
      %697 = vset.pattern.permute.xlu0 2
      %698 = vperm.xlu0 %697, %v239
      %v699 = vpop.permute.xlu0 %698
      %701 = vset.pattern.permute.xlu0 2
      %702 = vperm.xlu0 %701, %v240
      %v703 = vpop.permute.xlu0 %702
      %705 = vset.pattern.permute.xlu0 2
      %706 = vperm.xlu0 %705, %v241
      %v707 = vpop.permute.xlu0 %706
      %709 = vset.pattern.permute.xlu0 2
      %710 = vperm.xlu0 %709, %v242
      %v711 = vpop.permute.xlu0 %710
      %713 = vset.pattern.permute.xlu0 2
      %714 = vperm.xlu0 %713, %v243
      %v715 = vpop.permute.xlu0 %714
      %717 = vset.pattern.permute.xlu0 2
      %718 = vperm.xlu0 %717, %v244
      %v719 = vpop.permute.xlu0 %718
      %721 = vset.pattern.permute.xlu0 2
      %722 = vperm.xlu0 %721, %v245
      %v723 = vpop.permute.xlu0 %722
      %725 = vset.pattern.permute.xlu0 2
      %726 = vperm.xlu0 %725, %v246
      %v727 = vpop.permute.xlu0 %726
      %729 = vset.pattern.permute.xlu0 2
      %730 = vperm.xlu0 %729, %v247
      %v731 = vpop.permute.xlu0 %730
      %733 = vset.pattern.permute.xlu0 2
      %734 = vperm.xlu0 %733, %v248
      %v735 = vpop.permute.xlu0 %734
      %737 = vset.pattern.permute.xlu0 2
      %738 = vperm.xlu0 %737, %v249
      %v739 = vpop.permute.xlu0 %738
      %741 = vset.pattern.permute.xlu0 2
      %742 = vperm.xlu0 %741, %v250
      %v743 = vpop.permute.xlu0 %742
      %745 = vset.pattern.permute.xlu0 2
      %746 = vperm.xlu0 %745, %v251
      %v747 = vpop.permute.xlu0 %746
      %749 = vset.pattern.permute.xlu0 2
      %750 = vperm.xlu0 %749, %v252
      %v751 = vpop.permute.xlu0 %750
      %753 = vset.pattern.permute.xlu0 2
      %754 = vperm.xlu0 %753, %v253
      %v755 = vpop.permute.xlu0 %754
      %757 = vset.pattern.permute.xlu0 2
      %758 = vperm.xlu0 %757, %v254
      %v759 = vpop.permute.xlu0 %758
      %761 = vset.pattern.permute.xlu0 2
      %762 = vperm.xlu0 %761, %v255
      %v763 = vpop.permute.xlu0 %762
      %765 = vset.pattern.permute.xlu0 2
      %766 = vperm.xlu0 %765, %v256
      %v767 = vpop.permute.xlu0 %766
      %769 = vset.pattern.permute.xlu0 2
      %770 = vperm.xlu0 %769, %v257
      %v771 = vpop.permute.xlu0 %770
      %773 = vset.pattern.permute.xlu0 2
      %774 = vperm.xlu0 %773, %v258
      %v775 = vpop.permute.xlu0 %774
      %777 = vset.pattern.permute.xlu0 2
      %778 = vperm.xlu0 %777, %v259
      %v779 = vpop.permute.xlu0 %778
      %v781 = vlaneseq
      %v782 = vshrl.u32 %v781, 7
      %v783 = vsub.s32 2, %v782
      %v784 = vrot.slane %v260, %v783
      %v785 = vmul.f32 %v655, %v784
      %v786 = vmul.f32 %v659, %v784
      %v787 = vmul.f32 %v663, %v784
      %v788 = vmul.f32 %v667, %v784
      %v789 = vmul.f32 %v671, %v784
      %v790 = vmul.f32 %v675, %v784
      %v791 = vmul.f32 %v679, %v784
      %v792 = vmul.f32 %v683, %v784
      %v793 = vmul.f32 %v687, %v784
      %v794 = vmul.f32 %v691, %v784
      %v795 = vmul.f32 %v695, %v784
      %v796 = vmul.f32 %v699, %v784
      %v797 = vmul.f32 %v703, %v784
      %v798 = vmul.f32 %v707, %v784
      %v799 = vmul.f32 %v711, %v784
      %v800 = vmul.f32 %v715, %v784
      %v801 = vmul.f32 %v719, %v784
      %v802 = vmul.f32 %v723, %v784
      %v803 = vmul.f32 %v727, %v784
      %v804 = vmul.f32 %v731, %v784
      %v805 = vmul.f32 %v735, %v784
      %v806 = vmul.f32 %v739, %v784
      %v807 = vmul.f32 %v743, %v784
      %v808 = vmul.f32 %v747, %v784
      %v809 = vmul.f32 %v751, %v784
      %v810 = vmul.f32 %v755, %v784
      %v811 = vmul.f32 %v759, %v784
      %v812 = vmul.f32 %v763, %v784
      %v813 = vmul.f32 %v767, %v784
      %v814 = vmul.f32 %v771, %v784
      %v815 = vmul.f32 %v775, %v784
      %v816 = vmul.f32 %v779, %v784
      %v817 = vadd.f32 %v621, %v785
      %v818 = vadd.f32 %v622, %v786
      %v819 = vadd.f32 %v623, %v787
      %v820 = vadd.f32 %v624, %v788
      %v821 = vadd.f32 %v625, %v789
      %v822 = vadd.f32 %v626, %v790
      %v823 = vadd.f32 %v627, %v791
      %v824 = vadd.f32 %v628, %v792
      %v825 = vadd.f32 %v629, %v793
      %v826 = vadd.f32 %v630, %v794
      %v827 = vadd.f32 %v631, %v795
      %v828 = vadd.f32 %v632, %v796
      %v829 = vadd.f32 %v633, %v797
      %v830 = vadd.f32 %v634, %v798
      %v831 = vadd.f32 %v635, %v799
      %v832 = vadd.f32 %v636, %v800
      %v833 = vadd.f32 %v637, %v801
      %v834 = vadd.f32 %v638, %v802
      %v835 = vadd.f32 %v639, %v803
      %v836 = vadd.f32 %v640, %v804
      %v837 = vadd.f32 %v641, %v805
      %v838 = vadd.f32 %v642, %v806
      %v839 = vadd.f32 %v643, %v807
      %v840 = vadd.f32 %v644, %v808
      %v841 = vadd.f32 %v645, %v809
      %v842 = vadd.f32 %v646, %v810
      %v843 = vadd.f32 %v647, %v811
      %v844 = vadd.f32 %v648, %v812
      %v845 = vadd.f32 %v649, %v813
      %v846 = vadd.f32 %v650, %v814
      %v847 = vadd.f32 %v651, %v815
      %v848 = vadd.f32 %v652, %v816
      %849 = vset.pattern.permute.xlu0 3
      %850 = vperm.xlu0 %849, %v228
      %v851 = vpop.permute.xlu0 %850
      %853 = vset.pattern.permute.xlu0 3
      %854 = vperm.xlu0 %853, %v229
      %v855 = vpop.permute.xlu0 %854
      %857 = vset.pattern.permute.xlu0 3
      %858 = vperm.xlu0 %857, %v230
      %v859 = vpop.permute.xlu0 %858
      %861 = vset.pattern.permute.xlu0 3
      %862 = vperm.xlu0 %861, %v231
      %v863 = vpop.permute.xlu0 %862
      %865 = vset.pattern.permute.xlu0 3
      %866 = vperm.xlu0 %865, %v232
      %v867 = vpop.permute.xlu0 %866
      %869 = vset.pattern.permute.xlu0 3
      %870 = vperm.xlu0 %869, %v233
      %v871 = vpop.permute.xlu0 %870
      %873 = vset.pattern.permute.xlu0 3
      %874 = vperm.xlu0 %873, %v234
      %v875 = vpop.permute.xlu0 %874
      %877 = vset.pattern.permute.xlu0 3
      %878 = vperm.xlu0 %877, %v235
      %v879 = vpop.permute.xlu0 %878
      %881 = vset.pattern.permute.xlu0 3
      %882 = vperm.xlu0 %881, %v236
      %v883 = vpop.permute.xlu0 %882
      %885 = vset.pattern.permute.xlu0 3
      %886 = vperm.xlu0 %885, %v237
      %v887 = vpop.permute.xlu0 %886
      %889 = vset.pattern.permute.xlu0 3
      %890 = vperm.xlu0 %889, %v238
      %v891 = vpop.permute.xlu0 %890
      %893 = vset.pattern.permute.xlu0 3
      %894 = vperm.xlu0 %893, %v239
      %v895 = vpop.permute.xlu0 %894
      %897 = vset.pattern.permute.xlu0 3
      %898 = vperm.xlu0 %897, %v240
      %v899 = vpop.permute.xlu0 %898
      %901 = vset.pattern.permute.xlu0 3
      %902 = vperm.xlu0 %901, %v241
      %v903 = vpop.permute.xlu0 %902
      %905 = vset.pattern.permute.xlu0 3
      %906 = vperm.xlu0 %905, %v242
      %v907 = vpop.permute.xlu0 %906
      %909 = vset.pattern.permute.xlu0 3
      %910 = vperm.xlu0 %909, %v243
      %v911 = vpop.permute.xlu0 %910
      %913 = vset.pattern.permute.xlu0 3
      %914 = vperm.xlu0 %913, %v244
      %v915 = vpop.permute.xlu0 %914
      %917 = vset.pattern.permute.xlu0 3
      %918 = vperm.xlu0 %917, %v245
      %v919 = vpop.permute.xlu0 %918
      %921 = vset.pattern.permute.xlu0 3
      %922 = vperm.xlu0 %921, %v246
      %v923 = vpop.permute.xlu0 %922
      %925 = vset.pattern.permute.xlu0 3
      %926 = vperm.xlu0 %925, %v247
      %v927 = vpop.permute.xlu0 %926
      %929 = vset.pattern.permute.xlu0 3
      %930 = vperm.xlu0 %929, %v248
      %v931 = vpop.permute.xlu0 %930
      %933 = vset.pattern.permute.xlu0 3
      %934 = vperm.xlu0 %933, %v249
      %v935 = vpop.permute.xlu0 %934
      %937 = vset.pattern.permute.xlu0 3
      %938 = vperm.xlu0 %937, %v250
      %v939 = vpop.permute.xlu0 %938
      %941 = vset.pattern.permute.xlu0 3
      %942 = vperm.xlu0 %941, %v251
      %v943 = vpop.permute.xlu0 %942
      %945 = vset.pattern.permute.xlu0 3
      %946 = vperm.xlu0 %945, %v252
      %v947 = vpop.permute.xlu0 %946
      %949 = vset.pattern.permute.xlu0 3
      %950 = vperm.xlu0 %949, %v253
      %v951 = vpop.permute.xlu0 %950
      %953 = vset.pattern.permute.xlu0 3
      %954 = vperm.xlu0 %953, %v254
      %v955 = vpop.permute.xlu0 %954
      %957 = vset.pattern.permute.xlu0 3
      %958 = vperm.xlu0 %957, %v255
      %v959 = vpop.permute.xlu0 %958
      %961 = vset.pattern.permute.xlu0 3
      %962 = vperm.xlu0 %961, %v256
      %v963 = vpop.permute.xlu0 %962
      %965 = vset.pattern.permute.xlu0 3
      %966 = vperm.xlu0 %965, %v257
      %v967 = vpop.permute.xlu0 %966
      %969 = vset.pattern.permute.xlu0 3
      %970 = vperm.xlu0 %969, %v258
      %v971 = vpop.permute.xlu0 %970
      %973 = vset.pattern.permute.xlu0 3
      %974 = vperm.xlu0 %973, %v259
      %v975 = vpop.permute.xlu0 %974
      %v977 = vlaneseq
      %v978 = vshrl.u32 %v977, 7
      %v979 = vsub.s32 3, %v978
      %v980 = vrot.slane %v260, %v979
      %v981 = vmul.f32 %v851, %v980
      %v982 = vmul.f32 %v855, %v980
      %v983 = vmul.f32 %v859, %v980
      %v984 = vmul.f32 %v863, %v980
      %v985 = vmul.f32 %v867, %v980
      %v986 = vmul.f32 %v871, %v980
      %v987 = vmul.f32 %v875, %v980
      %v988 = vmul.f32 %v879, %v980
      %v989 = vmul.f32 %v883, %v980
      %v990 = vmul.f32 %v887, %v980
      %v991 = vmul.f32 %v891, %v980
      %v992 = vmul.f32 %v895, %v980
      %v993 = vmul.f32 %v899, %v980
      %v994 = vmul.f32 %v903, %v980
      %v995 = vmul.f32 %v907, %v980
      %v996 = vmul.f32 %v911, %v980
      %v997 = vmul.f32 %v915, %v980
      %v998 = vmul.f32 %v919, %v980
      %v999 = vmul.f32 %v923, %v980
      %v1000 = vmul.f32 %v927, %v980
      %v1001 = vmul.f32 %v931, %v980
      %v1002 = vmul.f32 %v935, %v980
      %v1003 = vmul.f32 %v939, %v980
      %v1004 = vmul.f32 %v943, %v980
      %v1005 = vmul.f32 %v947, %v980
      %v1006 = vmul.f32 %v951, %v980
      %v1007 = vmul.f32 %v955, %v980
      %v1008 = vmul.f32 %v959, %v980
      %v1009 = vmul.f32 %v963, %v980
      %v1010 = vmul.f32 %v967, %v980
      %v1011 = vmul.f32 %v971, %v980
      %v1012 = vmul.f32 %v975, %v980
      %v1013 = vadd.f32 %v817, %v981
      %v1014 = vadd.f32 %v818, %v982
      %v1015 = vadd.f32 %v819, %v983
      %v1016 = vadd.f32 %v820, %v984
      %v1017 = vadd.f32 %v821, %v985
      %v1018 = vadd.f32 %v822, %v986
      %v1019 = vadd.f32 %v823, %v987
      %v1020 = vadd.f32 %v824, %v988
      %v1021 = vadd.f32 %v825, %v989
      %v1022 = vadd.f32 %v826, %v990
      %v1023 = vadd.f32 %v827, %v991
      %v1024 = vadd.f32 %v828, %v992
      %v1025 = vadd.f32 %v829, %v993
      %v1026 = vadd.f32 %v830, %v994
      %v1027 = vadd.f32 %v831, %v995
      %v1028 = vadd.f32 %v832, %v996
      %v1029 = vadd.f32 %v833, %v997
      %v1030 = vadd.f32 %v834, %v998
      %v1031 = vadd.f32 %v835, %v999
      %v1032 = vadd.f32 %v836, %v1000
      %v1033 = vadd.f32 %v837, %v1001
      %v1034 = vadd.f32 %v838, %v1002
      %v1035 = vadd.f32 %v839, %v1003
      %v1036 = vadd.f32 %v840, %v1004
      %v1037 = vadd.f32 %v841, %v1005
      %v1038 = vadd.f32 %v842, %v1006
      %v1039 = vadd.f32 %v843, %v1007
      %v1040 = vadd.f32 %v844, %v1008
      %v1041 = vadd.f32 %v845, %v1009
      %v1042 = vadd.f32 %v846, %v1010
      %v1043 = vadd.f32 %v847, %v1011
      %v1044 = vadd.f32 %v848, %v1012
      %v1045 = vld [vmem:[%s2] sm:$0x1]
      %v1046 = vmul.f32 %v1045, 0.001953125
      %v1047 = vld [vmem:[%s2 + $0x1] sm:$0x1]
      %v1048 = vmul.f32 %v1047, 0.001953125
      %v1049 = vmul.f32 %v1046, %v1046
      %v1050 = vsub.f32 %v1048, %v1049
      %v1051 = vadd.f32 %v1050, 1e-05
      %v1052 = vrsqrt.pop %v1051
      %v1053 = vld [vmem:[%s3] sm:$0x1]
      %v1054 = vmul.f32 %v1052, %v1053
      %v1055 = vlaneseq
      %v1056 = vshrl.u32 %v1055, 7
      %v1057 = vsub.s32 0, %v1056
      %v1058 = vrot.slane %v1046, %v1057
      %v1059 = vsub.f32 %v1013, %v1058
      %v1060 = vsub.f32 %v1014, %v1058
      %v1061 = vsub.f32 %v1015, %v1058
      %v1062 = vsub.f32 %v1016, %v1058
      %v1063 = vsub.f32 %v1017, %v1058
      %v1064 = vsub.f32 %v1018, %v1058
      %v1065 = vsub.f32 %v1019, %v1058
      %v1066 = vsub.f32 %v1020, %v1058
      %v1067 = vsub.f32 %v1021, %v1058
      %v1068 = vsub.f32 %v1022, %v1058
      %v1069 = vsub.f32 %v1023, %v1058
      %v1070 = vsub.f32 %v1024, %v1058
      %v1071 = vsub.f32 %v1025, %v1058
      %v1072 = vsub.f32 %v1026, %v1058
      %v1073 = vsub.f32 %v1027, %v1058
      %v1074 = vsub.f32 %v1028, %v1058
      %v1075 = vsub.f32 %v1029, %v1058
      %v1076 = vsub.f32 %v1030, %v1058
      %v1077 = vsub.f32 %v1031, %v1058
      %v1078 = vsub.f32 %v1032, %v1058
      %v1079 = vsub.f32 %v1033, %v1058
      %v1080 = vsub.f32 %v1034, %v1058
      %v1081 = vsub.f32 %v1035, %v1058
      %v1082 = vsub.f32 %v1036, %v1058
      %v1083 = vsub.f32 %v1037, %v1058
      %v1084 = vsub.f32 %v1038, %v1058
      %v1085 = vsub.f32 %v1039, %v1058
      %v1086 = vsub.f32 %v1040, %v1058
      %v1087 = vsub.f32 %v1041, %v1058
      %v1088 = vsub.f32 %v1042, %v1058
      %v1089 = vsub.f32 %v1043, %v1058
      %v1090 = vsub.f32 %v1044, %v1058
      %v1091 = vlaneseq
      %v1092 = vshrl.u32 %v1091, 7
      %v1093 = vsub.s32 0, %v1092
      %v1094 = vrot.slane %v1054, %v1093
      %v1095 = vmul.f32 %v1059, %v1094
      %v1096 = vmul.f32 %v1060, %v1094
      %v1097 = vmul.f32 %v1061, %v1094
      %v1098 = vmul.f32 %v1062, %v1094
      %v1099 = vmul.f32 %v1063, %v1094
      %v1100 = vmul.f32 %v1064, %v1094
      %v1101 = vmul.f32 %v1065, %v1094
      %v1102 = vmul.f32 %v1066, %v1094
      %v1103 = vmul.f32 %v1067, %v1094
      %v1104 = vmul.f32 %v1068, %v1094
      %v1105 = vmul.f32 %v1069, %v1094
      %v1106 = vmul.f32 %v1070, %v1094
      %v1107 = vmul.f32 %v1071, %v1094
      %v1108 = vmul.f32 %v1072, %v1094
      %v1109 = vmul.f32 %v1073, %v1094
      %v1110 = vmul.f32 %v1074, %v1094
      %v1111 = vmul.f32 %v1075, %v1094
      %v1112 = vmul.f32 %v1076, %v1094
      %v1113 = vmul.f32 %v1077, %v1094
      %v1114 = vmul.f32 %v1078, %v1094
      %v1115 = vmul.f32 %v1079, %v1094
      %v1116 = vmul.f32 %v1080, %v1094
      %v1117 = vmul.f32 %v1081, %v1094
      %v1118 = vmul.f32 %v1082, %v1094
      %v1119 = vmul.f32 %v1083, %v1094
      %v1120 = vmul.f32 %v1084, %v1094
      %v1121 = vmul.f32 %v1085, %v1094
      %v1122 = vmul.f32 %v1086, %v1094
      %v1123 = vmul.f32 %v1087, %v1094
      %v1124 = vmul.f32 %v1088, %v1094
      %v1125 = vmul.f32 %v1089, %v1094
      %v1126 = vmul.f32 %v1090, %v1094
      %v1127 = vld [vmem:[%s4] sm:$0x1]
      %v1129 = vlaneseq
      %v1130 = vshrl.u32 %v1129, 7
      %v1131 = vsub.s32 0, %v1130
      %v1132 = vrot.slane %v1127, %v1131
      %v1134 = vadd.f32 %v1095, %v1132
      %v1135 = vadd.f32 %v1096, %v1132
      %v1136 = vadd.f32 %v1097, %v1132
      %v1137 = vadd.f32 %v1098, %v1132
      %v1138 = vadd.f32 %v1099, %v1132
      %v1139 = vadd.f32 %v1100, %v1132
      %v1140 = vadd.f32 %v1101, %v1132
      %v1141 = vadd.f32 %v1102, %v1132
      %v1142 = vadd.f32 %v1103, %v1132
      %v1143 = vadd.f32 %v1104, %v1132
      %v1144 = vadd.f32 %v1105, %v1132
      %v1145 = vadd.f32 %v1106, %v1132
      %v1146 = vadd.f32 %v1107, %v1132
      %v1147 = vadd.f32 %v1108, %v1132
      %v1148 = vadd.f32 %v1109, %v1132
      %v1149 = vadd.f32 %v1110, %v1132
      %v1150 = vadd.f32 %v1111, %v1132
      %v1151 = vadd.f32 %v1112, %v1132
      %v1152 = vadd.f32 %v1113, %v1132
      %v1153 = vadd.f32 %v1114, %v1132
      %v1154 = vadd.f32 %v1115, %v1132
      %v1155 = vadd.f32 %v1116, %v1132
      %v1156 = vadd.f32 %v1117, %v1132
      %v1157 = vadd.f32 %v1118, %v1132
      %v1158 = vadd.f32 %v1119, %v1132
      %v1159 = vadd.f32 %v1120, %v1132
      %v1160 = vadd.f32 %v1121, %v1132
      %v1161 = vadd.f32 %v1122, %v1132
      %v1162 = vadd.f32 %v1123, %v1132
      %v1163 = vadd.f32 %v1124, %v1132
      %v1164 = vadd.f32 %v1125, %v1132
      %v1165 = vadd.f32 %v1126, %v1132
      %v1166 = vmax.f32 %v1134, 0.0
      %v1167 = vmax.f32 %v1135, 0.0
      %v1168 = vmax.f32 %v1136, 0.0
      %v1169 = vmax.f32 %v1137, 0.0
      %v1170 = vmax.f32 %v1138, 0.0
      %v1171 = vmax.f32 %v1139, 0.0
      %v1172 = vmax.f32 %v1140, 0.0
      %v1173 = vmax.f32 %v1141, 0.0
      %v1174 = vmax.f32 %v1142, 0.0
      %v1175 = vmax.f32 %v1143, 0.0
      %v1176 = vmax.f32 %v1144, 0.0
      %v1177 = vmax.f32 %v1145, 0.0
      %v1178 = vmax.f32 %v1146, 0.0
      %v1179 = vmax.f32 %v1147, 0.0
      %v1180 = vmax.f32 %v1148, 0.0
      %v1181 = vmax.f32 %v1149, 0.0
      %v1182 = vmax.f32 %v1150, 0.0
      %v1183 = vmax.f32 %v1151, 0.0
      %v1184 = vmax.f32 %v1152, 0.0
      %v1185 = vmax.f32 %v1153, 0.0
      %v1186 = vmax.f32 %v1154, 0.0
      %v1187 = vmax.f32 %v1155, 0.0
      %v1188 = vmax.f32 %v1156, 0.0
      %v1189 = vmax.f32 %v1157, 0.0
      %v1190 = vmax.f32 %v1158, 0.0
      %v1191 = vmax.f32 %v1159, 0.0
      %v1192 = vmax.f32 %v1160, 0.0
      %v1193 = vmax.f32 %v1161, 0.0
      %v1194 = vmax.f32 %v1162, 0.0
      %v1195 = vmax.f32 %v1163, 0.0
      %v1196 = vmax.f32 %v1164, 0.0
      %v1197 = vmax.f32 %v1165, 0.0
      %v1198 = vmin.f32 %v1166, 6.0
      %v1199 = vmin.f32 %v1167, 6.0
      %v1200 = vmin.f32 %v1168, 6.0
      %v1201 = vmin.f32 %v1169, 6.0
      %v1202 = vmin.f32 %v1170, 6.0
      %v1203 = vmin.f32 %v1171, 6.0
      %v1204 = vmin.f32 %v1172, 6.0
      %v1205 = vmin.f32 %v1173, 6.0
      %v1206 = vmin.f32 %v1174, 6.0
      %v1207 = vmin.f32 %v1175, 6.0
      %v1208 = vmin.f32 %v1176, 6.0
      %v1209 = vmin.f32 %v1177, 6.0
      %v1210 = vmin.f32 %v1178, 6.0
      %v1211 = vmin.f32 %v1179, 6.0
      %v1212 = vmin.f32 %v1180, 6.0
      %v1213 = vmin.f32 %v1181, 6.0
      %v1214 = vmin.f32 %v1182, 6.0
      %v1215 = vmin.f32 %v1183, 6.0
      %v1216 = vmin.f32 %v1184, 6.0
      %v1217 = vmin.f32 %v1185, 6.0
      %v1218 = vmin.f32 %v1186, 6.0
      %v1219 = vmin.f32 %v1187, 6.0
      %v1220 = vmin.f32 %v1188, 6.0
      %v1221 = vmin.f32 %v1189, 6.0
      %v1222 = vmin.f32 %v1190, 6.0
      %v1223 = vmin.f32 %v1191, 6.0
      %v1224 = vmin.f32 %v1192, 6.0
      %v1225 = vmin.f32 %v1193, 6.0
      %v1226 = vmin.f32 %v1194, 6.0
      %v1227 = vmin.f32 %v1195, 6.0
      %v1228 = vmin.f32 %v1196, 6.0
      %v1229 = vmin.f32 %v1197, 6.0
      %1230 = vst [vmem:[%s226] sm:$0xff] %v1198
      %1231 = vst [vmem:[%s226 + $0x8] sm:$0xff] %v1199
      %1232 = vst [vmem:[%s226 + $0x10] sm:$0xff] %v1200
      %1233 = vst [vmem:[%s226 + $0x18] sm:$0xff] %v1201
      %1234 = vst [vmem:[%s226 + $0x20] sm:$0xff] %v1202
      %1235 = vst [vmem:[%s226 + $0x28] sm:$0xff] %v1203
      %1236 = vst [vmem:[%s226 + $0x30] sm:$0xff] %v1204
      %1237 = vst [vmem:[%s226 + $0x38] sm:$0xff] %v1205
      %1238 = vst [vmem:[%s226 + $0x40] sm:$0xff] %v1206
      %1239 = vst [vmem:[%s226 + $0x48] sm:$0xff] %v1207
      %1240 = vst [vmem:[%s226 + $0x50] sm:$0xff] %v1208
      %1241 = vst [vmem:[%s226 + $0x58] sm:$0xff] %v1209
      %1242 = vst [vmem:[%s226 + $0x60] sm:$0xff] %v1210
      %1243 = vst [vmem:[%s226 + $0x68] sm:$0xff] %v1211
      %1244 = vst [vmem:[%s226 + $0x70] sm:$0xff] %v1212
      %1245 = vst [vmem:[%s226 + $0x78] sm:$0xff] %v1213
      %1246 = vst [vmem:[%s226 + $0x80] sm:$0xff] %v1214
      %1247 = vst [vmem:[%s226 + $0x88] sm:$0xff] %v1215
      %1248 = vst [vmem:[%s226 + $0x90] sm:$0xff] %v1216
      %1249 = vst [vmem:[%s226 + $0x98] sm:$0xff] %v1217
      %1250 = vst [vmem:[%s226 + $0xa0] sm:$0xff] %v1218
      %1251 = vst [vmem:[%s226 + $0xa8] sm:$0xff] %v1219
      %1252 = vst [vmem:[%s226 + $0xb0] sm:$0xff] %v1220
      %1253 = vst [vmem:[%s226 + $0xb8] sm:$0xff] %v1221
      %1254 = vst [vmem:[%s226 + $0xc0] sm:$0xff] %v1222
      %1255 = vst [vmem:[%s226 + $0xc8] sm:$0xff] %v1223
      %1256 = vst [vmem:[%s226 + $0xd0] sm:$0xff] %v1224
      %1257 = vst [vmem:[%s226 + $0xd8] sm:$0xff] %v1225
      %1258 = vst [vmem:[%s226 + $0xe0] sm:$0xff] %v1226
      %1259 = vst [vmem:[%s226 + $0xe8] sm:$0xff] %v1227
      %1260 = vst [vmem:[%s226 + $0xf0] sm:$0xff] %v1228
      %1261 = vst [vmem:[%s226 + $0xf8] sm:$0xff] %v1229
      %s1262 = smul.u32 32, %s16
      %p1263 = scmp.lt.s32.totalorder %s1262, 63
      %s1264 = scalar_select %p1263, %s1262, 63
      %s1265 = smul.addr %s1264, 8
      %s1266 = scalar_lea.vmem %s5, %s1265
      // Predicated region
      $region41: #{inverted_residual_forward.6} parent=39 // pred_check
        %p1267 = pneg %p144
      $region42: #{inverted_residual_forward.6} parent=39 // pred_check_branch
        %1269 = sbr.rel (%p1267) target = $region44
      $region43: #{inverted_residual_forward.6} parent=39 // pred_region
        %s1270 = smul.u32 32, %s16
      $region44: #{inverted_residual_forward.6} parent=39 // pred_fallthru
        _
    $region40: #{inverted_residual_forward.6} parent=5 // pred_fallthru
      _
    %p1271 = scmp.le.s32.totalorder 2, %s11
    // Predicated region
    $region45: #{inverted_residual_forward.6} parent=5 // pred_check
      %p1272 = pneg %p1271
    $region46: #{inverted_residual_forward.6} parent=5 // pred_check_branch
      %1274 = sbr.rel (%p1272) target = $region48
    $region47: #{inverted_residual_forward.6} parent=5 // pred_region
      %s1275 = ssub.s32 %s11, 2
      // Predicated region
      $region49: #{inverted_residual_forward.6} parent=47 // pred_check
        %p1276 = pneg %p150
      $region50: #{inverted_residual_forward.6} parent=47 // pred_check_branch
        %1278 = sbr.rel (%p1276) target = $region52
      $region51: #{inverted_residual_forward.6} parent=47 // pred_region
        %s1279 = smul.u32 32, %s17
        %p1280 = scmp.lt.s32.totalorder %s1279, 63
        %s1281 = scalar_select %p1280, %s1279, 63
        %s1282 = smul.addr %s1281, 8
        %s1283 = scalar_lea.vmem %s5, %s1282
      $region52: #{inverted_residual_forward.6} parent=47 // pred_fallthru
        _
    $region48: #{inverted_residual_forward.6} parent=5 // pred_fallthru
      _
  $region6: #{inverted_residual_forward.6} parent=0 // loop_footer
    %s15 = sadd.s32 1, %s11
  $region7: #{inverted_residual_forward.6} parent=0 // loop_footer_branch
    %10 = sbr.rel target = $region3
  $region8: #{inverted_residual_forward.6} parent=0 // loop_exit
    _

// kernel: inverted_residual_forward.5
$region0: #{inverted_residual_forward.5}
  #allocation0 [shape = 'u32[]', space=smem, size = 0x4, offset = 0x4, fixed_abs, tag = 'smem constant byte address 0x4 - core index']
  #allocation1 [shape = 'u32[144,128]{1,0:T(1,128)}', space=vmem, size = 0x12000, scoped, tag = 'internal scratch']
  %s0 = inlined_call_operand.vmem [shape: f32[512,4], index: 0, kind: input, shape index: {}]
  %s1 = inlined_call_operand.vmem [shape: f32[4,128], index: 1, kind: input, shape index: {}]
  %s2 = inlined_call_operand.vmem [shape: f32[2,128], index: 2, kind: output, shape index: {}]
  %s3 = sld [smem:[#allocation0]]
  $region45: #{inverted_residual_forward.5} parent=0
    _
  %s5 = ssub.s32 1, %s3
  %s6 = scalar_select 0, %s5, %s3
  loop: start=0, step=1, limit=4
  $region2: #{inverted_residual_forward.5} parent=0 // loop_pre_header
    _
  $region3: #{inverted_residual_forward.5} parent=0 // loop_header
    %s8 = sphi 0, %s12
    %p9 = scmp.ge.s32.totalorder %s8, 4
    %s18 = sphi 0, %s20
    %s21 = sphi 0, %s18
    %s22 = sphi 0, %s21
    %s38 = sphi 0, %s22
    %s42 = sphi 0, %s42
    %s44 = sphi 0, %s42
    %s45 = sphi 0, %s44
    %s59 = sphi 0, %s45
    %s63 = sphi 0, %s63
    %s65 = sphi 0, %s63
    %s66 = sphi 0, %s65
    %s80 = sphi 0, %s66
  $region4: #{inverted_residual_forward.5} parent=0 // loop_header_branch
    %11 = sbr.rel (%p9) target = $region8
  $region5: #{inverted_residual_forward.5} parent=0 // loop_body
    %s13 = ssub.s32 %s8, 1
    %s14 = ssub.s32 %s8, 2
    %s15 = sadd.s32 %s8, 1
    %s16 = ssub.s32 %s8, %s15
    %p17 = scmp.eq.s32.totalorder %s16, 0
    %s19 = sadd.s32 %s18, 1
    %s20 = scalar_select %p17, %s18, %s19
    %p23 = pneg %p17
    %p24 = scmp.eq.s32.totalorder %s8, 1
    %p25 = por %p23, %p24
    %p26 = scmp.ne.s32.totalorder %s18, %s21
    %p27 = scmp.eq.s32.totalorder %s8, 0
    %p28 = por %p26, %p27
    %p29 = scmp.ne.s32.totalorder %s18, %s21
    %p30 = scmp.eq.s32.totalorder %s13, 1
    %p31 = por %p29, %p30
    %p32 = scmp.ne.s32.totalorder %s21, %s22
    %p33 = scmp.eq.s32.totalorder %s13, 0
    %p34 = por %p32, %p33
    %p35 = scmp.ne.s32.totalorder %s21, %s22
    %p36 = scmp.eq.s32.totalorder %s14, 1
    %p37 = por %p35, %p36
    %p39 = scmp.ne.s32.totalorder %s22, %s38
    %p40 = scmp.eq.s32.totalorder %s14, 0
    %p41 = por %p39, %p40
    %s43 = sadd.s32 %s42, 1
    %p46 = scmp.eq.s32.totalorder %s8, 1
    %p47 = scmp.ne.s32.totalorder %s42, %s44
    %p48 = scmp.eq.s32.totalorder %s8, 0
    %p49 = por %p47, %p48
    %p50 = scmp.ne.s32.totalorder %s42, %s44
    %p51 = scmp.eq.s32.totalorder %s13, 1
    %p52 = por %p50, %p51
    %p53 = scmp.ne.s32.totalorder %s44, %s45
    %p54 = scmp.eq.s32.totalorder %s13, 0
    %p55 = por %p53, %p54
    %p56 = scmp.ne.s32.totalorder %s44, %s45
    %p57 = scmp.eq.s32.totalorder %s14, 1
    %p58 = por %p56, %p57
    %p60 = scmp.ne.s32.totalorder %s45, %s59
    %p61 = scmp.eq.s32.totalorder %s14, 0
    %p62 = por %p60, %p61
    %s64 = sadd.s32 %s63, 1
    %p67 = scmp.eq.s32.totalorder %s8, 1
    %p68 = scmp.ne.s32.totalorder %s63, %s65
    %p69 = scmp.eq.s32.totalorder %s8, 0
    %p70 = por %p68, %p69
    %p71 = scmp.ne.s32.totalorder %s63, %s65
    %p72 = scmp.eq.s32.totalorder %s13, 1
    %p73 = por %p71, %p72
    %p74 = scmp.ne.s32.totalorder %s65, %s66
    %p75 = scmp.eq.s32.totalorder %s13, 0
    %p76 = por %p74, %p75
    %p77 = scmp.ne.s32.totalorder %s65, %s66
    %p78 = scmp.eq.s32.totalorder %s14, 1
    %p79 = por %p77, %p78
    %p81 = scmp.ne.s32.totalorder %s66, %s80
    %p82 = scmp.eq.s32.totalorder %s14, 0
    %p83 = por %p81, %p82
    %p84 = scmp.le.s32.totalorder 1, %s8
    %p85 = scmp.lt.s32.totalorder %s8, 3
    %p86 = pnand %p84, %p85
    %p87 = pneg %p86
    // Predicated region
    $region9: #{inverted_residual_forward.5} parent=5 // pred_check
      _
    $region10: #{inverted_residual_forward.5} parent=5 // pred_check_branch
      %89 = sbr.rel (%p86) target = $region12
    $region11: #{inverted_residual_forward.5} parent=5 // pred_region
      %s90 = ssub.s32 %s8, 1
      // Predicated region
      $region13: #{inverted_residual_forward.5} parent=11 // pred_check
        %p91 = pneg %p55
      $region14: #{inverted_residual_forward.5} parent=11 // pred_check_branch
        %93 = sbr.rel (%p91) target = $region16
      $region15: #{inverted_residual_forward.5} parent=11 // pred_region
        _
      $region16: #{inverted_residual_forward.5} parent=11 // pred_fallthru
        _
    $region12: #{inverted_residual_forward.5} parent=5 // pred_fallthru
      _
    %p94 = scmp.lt.s32.totalorder %s8, 2
    // Predicated region
    $region17: #{inverted_residual_forward.5} parent=5 // pred_check
      %p95 = pneg %p94
    $region18: #{inverted_residual_forward.5} parent=5 // pred_check_branch
      %97 = sbr.rel (%p95) target = $region20
    $region19: #{inverted_residual_forward.5} parent=5 // pred_region
      // Predicated region
      $region21: #{inverted_residual_forward.5} parent=19 // pred_check
        %p98 = pneg %p28
      $region22: #{inverted_residual_forward.5} parent=19 // pred_check_branch
        %100 = sbr.rel (%p98) target = $region24
      $region23: #{inverted_residual_forward.5} parent=19 // pred_region
        %s101 = smul.u32 32, %s8
        %p102 = scmp.lt.s32.totalorder %s101, 63
        %s103 = scalar_select %p102, %s101, 63
        %s104 = smul.addr %s103, 8
        %s105 = scalar_lea.vmem %s0, %s104
        %s106 = smul.u32 32, %s8
      $region24: #{inverted_residual_forward.5} parent=19 // pred_fallthru
        _
    $region20: #{inverted_residual_forward.5} parent=5 // pred_fallthru
      _
    %p107 = scmp.le.s32.totalorder 1, %s8
    %p108 = scmp.lt.s32.totalorder %s8, 3
    %p109 = pnand %p107, %p108
    %p110 = pneg %p109
    // Predicated region
    $region25: #{inverted_residual_forward.5} parent=5 // pred_check
      _
    $region26: #{inverted_residual_forward.5} parent=5 // pred_check_branch
      %112 = sbr.rel (%p109) target = $region28
    $region27: #{inverted_residual_forward.5} parent=5 // pred_region
      %s113 = ssub.s32 %s8, 1
      %s114 = smul.u32 32, %s13
      %p115 = scmp.lt.s32.totalorder %s114, 63
      %s116 = scalar_select %p115, %s114, 63
      %s117 = smul.addr %s116, 8
      %s118 = scalar_lea.vmem %s0, %s117
      %p119 = pneg %p34
      %p120 = pneg %p31
      %p121 = pneg %p55
      %p122 = pneg %p52
      %p123 = pneg %p76
      %p124 = pneg %p73
      %s125 = smul.u32 32, %s13
      %p126 = scmp.lt.s32.totalorder %s125, 63
      %s127 = scalar_select %p126, %s125, 63
      %s128 = smul.addr %s127, 8
      %s129 = scalar_lea.vmem %s0, %s128
      %s130 = smul.u32 32, %s13
      %v131 = vld [vmem:[%s129] sm:$0xff]
      %v132 = vld [vmem:[%s129 + $0x8] sm:$0xff]
      %v133 = vld [vmem:[%s129 + $0x10] sm:$0xff]
      %v134 = vld [vmem:[%s129 + $0x18] sm:$0xff]
      %v135 = vld [vmem:[%s129 + $0x20] sm:$0xff]
      %v136 = vld [vmem:[%s129 + $0x28] sm:$0xff]
      %v137 = vld [vmem:[%s129 + $0x30] sm:$0xff]
      %v138 = vld [vmem:[%s129 + $0x38] sm:$0xff]
      %v139 = vld [vmem:[%s129 + $0x40] sm:$0xff]
      %v140 = vld [vmem:[%s129 + $0x48] sm:$0xff]
      %v141 = vld [vmem:[%s129 + $0x50] sm:$0xff]
      %v142 = vld [vmem:[%s129 + $0x58] sm:$0xff]
      %v143 = vld [vmem:[%s129 + $0x60] sm:$0xff]
      %v144 = vld [vmem:[%s129 + $0x68] sm:$0xff]
      %v145 = vld [vmem:[%s129 + $0x70] sm:$0xff]
      %v146 = vld [vmem:[%s129 + $0x78] sm:$0xff]
      %v147 = vld [vmem:[%s129 + $0x80] sm:$0xff]
      %v148 = vld [vmem:[%s129 + $0x88] sm:$0xff]
      %v149 = vld [vmem:[%s129 + $0x90] sm:$0xff]
      %v150 = vld [vmem:[%s129 + $0x98] sm:$0xff]
      %v151 = vld [vmem:[%s129 + $0xa0] sm:$0xff]
      %v152 = vld [vmem:[%s129 + $0xa8] sm:$0xff]
      %v153 = vld [vmem:[%s129 + $0xb0] sm:$0xff]
      %v154 = vld [vmem:[%s129 + $0xb8] sm:$0xff]
      %v155 = vld [vmem:[%s129 + $0xc0] sm:$0xff]
      %v156 = vld [vmem:[%s129 + $0xc8] sm:$0xff]
      %v157 = vld [vmem:[%s129 + $0xd0] sm:$0xff]
      %v158 = vld [vmem:[%s129 + $0xd8] sm:$0xff]
      %v159 = vld [vmem:[%s129 + $0xe0] sm:$0xff]
      %v160 = vld [vmem:[%s129 + $0xe8] sm:$0xff]
      %v161 = vld [vmem:[%s129 + $0xf0] sm:$0xff]
      %v162 = vld [vmem:[%s129 + $0xf8] sm:$0xff]
      %v163 = vld [vmem:[%s1] sm:$0xf]
      %165 = vset.pattern.permute.xlu0 0
      %166 = vperm.xlu0 %165, %v131
      %v167 = vpop.permute.xlu0 %166
      %170 = vset.pattern.permute.xlu0 0
      %171 = vperm.xlu0 %170, %v132
      %v172 = vpop.permute.xlu0 %171
      %175 = vset.pattern.permute.xlu0 0
      %176 = vperm.xlu0 %175, %v133
      %v177 = vpop.permute.xlu0 %176
      %180 = vset.pattern.permute.xlu0 0
      %181 = vperm.xlu0 %180, %v134
      %v182 = vpop.permute.xlu0 %181
      %185 = vset.pattern.permute.xlu0 0
      %186 = vperm.xlu0 %185, %v135
      %v187 = vpop.permute.xlu0 %186
      %190 = vset.pattern.permute.xlu0 0
      %191 = vperm.xlu0 %190, %v136
      %v192 = vpop.permute.xlu0 %191
      %195 = vset.pattern.permute.xlu0 0
      %196 = vperm.xlu0 %195, %v137
      %v197 = vpop.permute.xlu0 %196
      %200 = vset.pattern.permute.xlu0 0
      %201 = vperm.xlu0 %200, %v138
      %v202 = vpop.permute.xlu0 %201
      %205 = vset.pattern.permute.xlu0 0
      %206 = vperm.xlu0 %205, %v139
      %v207 = vpop.permute.xlu0 %206
      %210 = vset.pattern.permute.xlu0 0
      %211 = vperm.xlu0 %210, %v140
      %v212 = vpop.permute.xlu0 %211
      %215 = vset.pattern.permute.xlu0 0
      %216 = vperm.xlu0 %215, %v141
      %v217 = vpop.permute.xlu0 %216
      %220 = vset.pattern.permute.xlu0 0
      %221 = vperm.xlu0 %220, %v142
      %v222 = vpop.permute.xlu0 %221
      %225 = vset.pattern.permute.xlu0 0
      %226 = vperm.xlu0 %225, %v143
      %v227 = vpop.permute.xlu0 %226
      %230 = vset.pattern.permute.xlu0 0
      %231 = vperm.xlu0 %230, %v144
      %v232 = vpop.permute.xlu0 %231
      %235 = vset.pattern.permute.xlu0 0
      %236 = vperm.xlu0 %235, %v145
      %v237 = vpop.permute.xlu0 %236
      %240 = vset.pattern.permute.xlu0 0
      %241 = vperm.xlu0 %240, %v146
      %v242 = vpop.permute.xlu0 %241
      %245 = vset.pattern.permute.xlu0 0
      %246 = vperm.xlu0 %245, %v147
      %v247 = vpop.permute.xlu0 %246
      %250 = vset.pattern.permute.xlu0 0
      %251 = vperm.xlu0 %250, %v148
      %v252 = vpop.permute.xlu0 %251
      %255 = vset.pattern.permute.xlu0 0
      %256 = vperm.xlu0 %255, %v149
      %v257 = vpop.permute.xlu0 %256
      %260 = vset.pattern.permute.xlu0 0
      %261 = vperm.xlu0 %260, %v150
      %v262 = vpop.permute.xlu0 %261
      %265 = vset.pattern.permute.xlu0 0
      %266 = vperm.xlu0 %265, %v151
      %v267 = vpop.permute.xlu0 %266
      %270 = vset.pattern.permute.xlu0 0
      %271 = vperm.xlu0 %270, %v152
      %v272 = vpop.permute.xlu0 %271
      %275 = vset.pattern.permute.xlu0 0
      %276 = vperm.xlu0 %275, %v153
      %v277 = vpop.permute.xlu0 %276
      %280 = vset.pattern.permute.xlu0 0
      %281 = vperm.xlu0 %280, %v154
      %v282 = vpop.permute.xlu0 %281
      %285 = vset.pattern.permute.xlu0 0
      %286 = vperm.xlu0 %285, %v155
      %v287 = vpop.permute.xlu0 %286
      %290 = vset.pattern.permute.xlu0 0
      %291 = vperm.xlu0 %290, %v156
      %v292 = vpop.permute.xlu0 %291
      %295 = vset.pattern.permute.xlu0 0
      %296 = vperm.xlu0 %295, %v157
      %v297 = vpop.permute.xlu0 %296
      %300 = vset.pattern.permute.xlu0 0
      %301 = vperm.xlu0 %300, %v158
      %v302 = vpop.permute.xlu0 %301
      %305 = vset.pattern.permute.xlu0 0
      %306 = vperm.xlu0 %305, %v159
      %v307 = vpop.permute.xlu0 %306
      %310 = vset.pattern.permute.xlu0 0
      %311 = vperm.xlu0 %310, %v160
      %v312 = vpop.permute.xlu0 %311
      %315 = vset.pattern.permute.xlu0 0
      %316 = vperm.xlu0 %315, %v161
      %v317 = vpop.permute.xlu0 %316
      %320 = vset.pattern.permute.xlu0 0
      %321 = vperm.xlu0 %320, %v162
      %v322 = vpop.permute.xlu0 %321
      %v324 = vlaneseq
      %v325 = vshrl.u32 %v324, 7
      %v326 = vsub.s32 0, %v325
      %v327 = vrot.slane %v163, %v326
      %v328 = vmul.f32 %v167, %v327
      %v329 = vmul.f32 %v172, %v327
      %v330 = vmul.f32 %v177, %v327
      %v331 = vmul.f32 %v182, %v327
      %v332 = vmul.f32 %v187, %v327
      %v333 = vmul.f32 %v192, %v327
      %v334 = vmul.f32 %v197, %v327
      %v335 = vmul.f32 %v202, %v327
      %v336 = vmul.f32 %v207, %v327
      %v337 = vmul.f32 %v212, %v327
      %v338 = vmul.f32 %v217, %v327
      %v339 = vmul.f32 %v222, %v327
      %v340 = vmul.f32 %v227, %v327
      %v341 = vmul.f32 %v232, %v327
      %v342 = vmul.f32 %v237, %v327
      %v343 = vmul.f32 %v242, %v327
      %v344 = vmul.f32 %v247, %v327
      %v345 = vmul.f32 %v252, %v327
      %v346 = vmul.f32 %v257, %v327
      %v347 = vmul.f32 %v262, %v327
      %v348 = vmul.f32 %v267, %v327
      %v349 = vmul.f32 %v272, %v327
      %v350 = vmul.f32 %v277, %v327
      %v351 = vmul.f32 %v282, %v327
      %v352 = vmul.f32 %v287, %v327
      %v353 = vmul.f32 %v292, %v327
      %v354 = vmul.f32 %v297, %v327
      %v355 = vmul.f32 %v302, %v327
      %v356 = vmul.f32 %v307, %v327
      %v357 = vmul.f32 %v312, %v327
      %v358 = vmul.f32 %v317, %v327
      %v359 = vmul.f32 %v322, %v327
      %360 = vset.pattern.permute.xlu0 1
      %361 = vperm.xlu0 %360, %v131
      %v362 = vpop.permute.xlu0 %361
      %364 = vset.pattern.permute.xlu0 1
      %365 = vperm.xlu0 %364, %v132
      %v366 = vpop.permute.xlu0 %365
      %368 = vset.pattern.permute.xlu0 1
      %369 = vperm.xlu0 %368, %v133
      %v370 = vpop.permute.xlu0 %369
      %372 = vset.pattern.permute.xlu0 1
      %373 = vperm.xlu0 %372, %v134
      %v374 = vpop.permute.xlu0 %373
      %376 = vset.pattern.permute.xlu0 1
      %377 = vperm.xlu0 %376, %v135
      %v378 = vpop.permute.xlu0 %377
      %380 = vset.pattern.permute.xlu0 1
      %381 = vperm.xlu0 %380, %v136
      %v382 = vpop.permute.xlu0 %381
      %384 = vset.pattern.permute.xlu0 1
      %385 = vperm.xlu0 %384, %v137
      %v386 = vpop.permute.xlu0 %385
      %388 = vset.pattern.permute.xlu0 1
      %389 = vperm.xlu0 %388, %v138
      %v390 = vpop.permute.xlu0 %389
      %392 = vset.pattern.permute.xlu0 1
      %393 = vperm.xlu0 %392, %v139
      %v394 = vpop.permute.xlu0 %393
      %396 = vset.pattern.permute.xlu0 1
      %397 = vperm.xlu0 %396, %v140
      %v398 = vpop.permute.xlu0 %397
      %400 = vset.pattern.permute.xlu0 1
      %401 = vperm.xlu0 %400, %v141
      %v402 = vpop.permute.xlu0 %401
      %404 = vset.pattern.permute.xlu0 1
      %405 = vperm.xlu0 %404, %v142
      %v406 = vpop.permute.xlu0 %405
      %408 = vset.pattern.permute.xlu0 1
      %409 = vperm.xlu0 %408, %v143
      %v410 = vpop.permute.xlu0 %409
      %412 = vset.pattern.permute.xlu0 1
      %413 = vperm.xlu0 %412, %v144
      %v414 = vpop.permute.xlu0 %413
      %416 = vset.pattern.permute.xlu0 1
      %417 = vperm.xlu0 %416, %v145
      %v418 = vpop.permute.xlu0 %417
      %420 = vset.pattern.permute.xlu0 1
      %421 = vperm.xlu0 %420, %v146
      %v422 = vpop.permute.xlu0 %421
      %424 = vset.pattern.permute.xlu0 1
      %425 = vperm.xlu0 %424, %v147
      %v426 = vpop.permute.xlu0 %425
      %428 = vset.pattern.permute.xlu0 1
      %429 = vperm.xlu0 %428, %v148
      %v430 = vpop.permute.xlu0 %429
      %432 = vset.pattern.permute.xlu0 1
      %433 = vperm.xlu0 %432, %v149
      %v434 = vpop.permute.xlu0 %433
      %436 = vset.pattern.permute.xlu0 1
      %437 = vperm.xlu0 %436, %v150
      %v438 = vpop.permute.xlu0 %437
      %440 = vset.pattern.permute.xlu0 1
      %441 = vperm.xlu0 %440, %v151
      %v442 = vpop.permute.xlu0 %441
      %444 = vset.pattern.permute.xlu0 1
      %445 = vperm.xlu0 %444, %v152
      %v446 = vpop.permute.xlu0 %445
      %448 = vset.pattern.permute.xlu0 1
      %449 = vperm.xlu0 %448, %v153
      %v450 = vpop.permute.xlu0 %449
      %452 = vset.pattern.permute.xlu0 1
      %453 = vperm.xlu0 %452, %v154
      %v454 = vpop.permute.xlu0 %453
      %456 = vset.pattern.permute.xlu0 1
      %457 = vperm.xlu0 %456, %v155
      %v458 = vpop.permute.xlu0 %457
      %460 = vset.pattern.permute.xlu0 1
      %461 = vperm.xlu0 %460, %v156
      %v462 = vpop.permute.xlu0 %461
      %464 = vset.pattern.permute.xlu0 1
      %465 = vperm.xlu0 %464, %v157
      %v466 = vpop.permute.xlu0 %465
      %468 = vset.pattern.permute.xlu0 1
      %469 = vperm.xlu0 %468, %v158
      %v470 = vpop.permute.xlu0 %469
      %472 = vset.pattern.permute.xlu0 1
      %473 = vperm.xlu0 %472, %v159
      %v474 = vpop.permute.xlu0 %473
      %476 = vset.pattern.permute.xlu0 1
      %477 = vperm.xlu0 %476, %v160
      %v478 = vpop.permute.xlu0 %477
      %480 = vset.pattern.permute.xlu0 1
      %481 = vperm.xlu0 %480, %v161
      %v482 = vpop.permute.xlu0 %481
      %484 = vset.pattern.permute.xlu0 1
      %485 = vperm.xlu0 %484, %v162
      %v486 = vpop.permute.xlu0 %485
      %v488 = vlaneseq
      %v489 = vshrl.u32 %v488, 7
      %v490 = vsub.s32 1, %v489
      %v491 = vrot.slane %v163, %v490
      %v492 = vmul.f32 %v362, %v491
      %v493 = vmul.f32 %v366, %v491
      %v494 = vmul.f32 %v370, %v491
      %v495 = vmul.f32 %v374, %v491
      %v496 = vmul.f32 %v378, %v491
      %v497 = vmul.f32 %v382, %v491
      %v498 = vmul.f32 %v386, %v491
      %v499 = vmul.f32 %v390, %v491
      %v500 = vmul.f32 %v394, %v491
      %v501 = vmul.f32 %v398, %v491
      %v502 = vmul.f32 %v402, %v491
      %v503 = vmul.f32 %v406, %v491
      %v504 = vmul.f32 %v410, %v491
      %v505 = vmul.f32 %v414, %v491
      %v506 = vmul.f32 %v418, %v491
      %v507 = vmul.f32 %v422, %v491
      %v508 = vmul.f32 %v426, %v491
      %v509 = vmul.f32 %v430, %v491
      %v510 = vmul.f32 %v434, %v491
      %v511 = vmul.f32 %v438, %v491
      %v512 = vmul.f32 %v442, %v491
      %v513 = vmul.f32 %v446, %v491
      %v514 = vmul.f32 %v450, %v491
      %v515 = vmul.f32 %v454, %v491
      %v516 = vmul.f32 %v458, %v491
      %v517 = vmul.f32 %v462, %v491
      %v518 = vmul.f32 %v466, %v491
      %v519 = vmul.f32 %v470, %v491
      %v520 = vmul.f32 %v474, %v491
      %v521 = vmul.f32 %v478, %v491
      %v522 = vmul.f32 %v482, %v491
      %v523 = vmul.f32 %v486, %v491
      %v524 = vadd.f32 %v328, %v492
      %v525 = vadd.f32 %v329, %v493
      %v526 = vadd.f32 %v330, %v494
      %v527 = vadd.f32 %v331, %v495
      %v528 = vadd.f32 %v332, %v496
      %v529 = vadd.f32 %v333, %v497
      %v530 = vadd.f32 %v334, %v498
      %v531 = vadd.f32 %v335, %v499
      %v532 = vadd.f32 %v336, %v500
      %v533 = vadd.f32 %v337, %v501
      %v534 = vadd.f32 %v338, %v502
      %v535 = vadd.f32 %v339, %v503
      %v536 = vadd.f32 %v340, %v504
      %v537 = vadd.f32 %v341, %v505
      %v538 = vadd.f32 %v342, %v506
      %v539 = vadd.f32 %v343, %v507
      %v540 = vadd.f32 %v344, %v508
      %v541 = vadd.f32 %v345, %v509
      %v542 = vadd.f32 %v346, %v510
      %v543 = vadd.f32 %v347, %v511
      %v544 = vadd.f32 %v348, %v512
      %v545 = vadd.f32 %v349, %v513
      %v546 = vadd.f32 %v350, %v514
      %v547 = vadd.f32 %v351, %v515
      %v548 = vadd.f32 %v352, %v516
      %v549 = vadd.f32 %v353, %v517
      %v550 = vadd.f32 %v354, %v518
      %v551 = vadd.f32 %v355, %v519
      %v552 = vadd.f32 %v356, %v520
      %v553 = vadd.f32 %v357, %v521
      %v554 = vadd.f32 %v358, %v522
      %v555 = vadd.f32 %v359, %v523
      %556 = vset.pattern.permute.xlu0 2
      %557 = vperm.xlu0 %556, %v131
      %v558 = vpop.permute.xlu0 %557
      %560 = vset.pattern.permute.xlu0 2
      %561 = vperm.xlu0 %560, %v132
      %v562 = vpop.permute.xlu0 %561
      %564 = vset.pattern.permute.xlu0 2
      %565 = vperm.xlu0 %564, %v133
      %v566 = vpop.permute.xlu0 %565
      %568 = vset.pattern.permute.xlu0 2
      %569 = vperm.xlu0 %568, %v134
      %v570 = vpop.permute.xlu0 %569
      %572 = vset.pattern.permute.xlu0 2
      %573 = vperm.xlu0 %572, %v135
      %v574 = vpop.permute.xlu0 %573
      %576 = vset.pattern.permute.xlu0 2
      %577 = vperm.xlu0 %576, %v136
      %v578 = vpop.permute.xlu0 %577
      %580 = vset.pattern.permute.xlu0 2
      %581 = vperm.xlu0 %580, %v137
      %v582 = vpop.permute.xlu0 %581
      %584 = vset.pattern.permute.xlu0 2
      %585 = vperm.xlu0 %584, %v138
      %v586 = vpop.permute.xlu0 %585
      %588 = vset.pattern.permute.xlu0 2
      %589 = vperm.xlu0 %588, %v139
      %v590 = vpop.permute.xlu0 %589
      %592 = vset.pattern.permute.xlu0 2
      %593 = vperm.xlu0 %592, %v140
      %v594 = vpop.permute.xlu0 %593
      %596 = vset.pattern.permute.xlu0 2
      %597 = vperm.xlu0 %596, %v141
      %v598 = vpop.permute.xlu0 %597
      %600 = vset.pattern.permute.xlu0 2
      %601 = vperm.xlu0 %600, %v142
      %v602 = vpop.permute.xlu0 %601
      %604 = vset.pattern.permute.xlu0 2
      %605 = vperm.xlu0 %604, %v143
      %v606 = vpop.permute.xlu0 %605
      %608 = vset.pattern.permute.xlu0 2
      %609 = vperm.xlu0 %608, %v144
      %v610 = vpop.permute.xlu0 %609
      %612 = vset.pattern.permute.xlu0 2
      %613 = vperm.xlu0 %612, %v145
      %v614 = vpop.permute.xlu0 %613
      %616 = vset.pattern.permute.xlu0 2
      %617 = vperm.xlu0 %616, %v146
      %v618 = vpop.permute.xlu0 %617
      %620 = vset.pattern.permute.xlu0 2
      %621 = vperm.xlu0 %620, %v147
      %v622 = vpop.permute.xlu0 %621
      %624 = vset.pattern.permute.xlu0 2
      %625 = vperm.xlu0 %624, %v148
      %v626 = vpop.permute.xlu0 %625
      %628 = vset.pattern.permute.xlu0 2
      %629 = vperm.xlu0 %628, %v149
      %v630 = vpop.permute.xlu0 %629
      %632 = vset.pattern.permute.xlu0 2
      %633 = vperm.xlu0 %632, %v150
      %v634 = vpop.permute.xlu0 %633
      %636 = vset.pattern.permute.xlu0 2
      %637 = vperm.xlu0 %636, %v151
      %v638 = vpop.permute.xlu0 %637
      %640 = vset.pattern.permute.xlu0 2
      %641 = vperm.xlu0 %640, %v152
      %v642 = vpop.permute.xlu0 %641
      %644 = vset.pattern.permute.xlu0 2
      %645 = vperm.xlu0 %644, %v153
      %v646 = vpop.permute.xlu0 %645
      %648 = vset.pattern.permute.xlu0 2
      %649 = vperm.xlu0 %648, %v154
      %v650 = vpop.permute.xlu0 %649
      %652 = vset.pattern.permute.xlu0 2
      %653 = vperm.xlu0 %652, %v155
      %v654 = vpop.permute.xlu0 %653
      %656 = vset.pattern.permute.xlu0 2
      %657 = vperm.xlu0 %656, %v156
      %v658 = vpop.permute.xlu0 %657
      %660 = vset.pattern.permute.xlu0 2
      %661 = vperm.xlu0 %660, %v157
      %v662 = vpop.permute.xlu0 %661
      %664 = vset.pattern.permute.xlu0 2
      %665 = vperm.xlu0 %664, %v158
      %v666 = vpop.permute.xlu0 %665
      %668 = vset.pattern.permute.xlu0 2
      %669 = vperm.xlu0 %668, %v159
      %v670 = vpop.permute.xlu0 %669
      %672 = vset.pattern.permute.xlu0 2
      %673 = vperm.xlu0 %672, %v160
      %v674 = vpop.permute.xlu0 %673
      %676 = vset.pattern.permute.xlu0 2
      %677 = vperm.xlu0 %676, %v161
      %v678 = vpop.permute.xlu0 %677
      %680 = vset.pattern.permute.xlu0 2
      %681 = vperm.xlu0 %680, %v162
      %v682 = vpop.permute.xlu0 %681
      %v684 = vlaneseq
      %v685 = vshrl.u32 %v684, 7
      %v686 = vsub.s32 2, %v685
      %v687 = vrot.slane %v163, %v686
      %v688 = vmul.f32 %v558, %v687
      %v689 = vmul.f32 %v562, %v687
      %v690 = vmul.f32 %v566, %v687
      %v691 = vmul.f32 %v570, %v687
      %v692 = vmul.f32 %v574, %v687
      %v693 = vmul.f32 %v578, %v687
      %v694 = vmul.f32 %v582, %v687
      %v695 = vmul.f32 %v586, %v687
      %v696 = vmul.f32 %v590, %v687
      %v697 = vmul.f32 %v594, %v687
      %v698 = vmul.f32 %v598, %v687
      %v699 = vmul.f32 %v602, %v687
      %v700 = vmul.f32 %v606, %v687
      %v701 = vmul.f32 %v610, %v687
      %v702 = vmul.f32 %v614, %v687
      %v703 = vmul.f32 %v618, %v687
      %v704 = vmul.f32 %v622, %v687
      %v705 = vmul.f32 %v626, %v687
      %v706 = vmul.f32 %v630, %v687
      %v707 = vmul.f32 %v634, %v687
      %v708 = vmul.f32 %v638, %v687
      %v709 = vmul.f32 %v642, %v687
      %v710 = vmul.f32 %v646, %v687
      %v711 = vmul.f32 %v650, %v687
      %v712 = vmul.f32 %v654, %v687
      %v713 = vmul.f32 %v658, %v687
      %v714 = vmul.f32 %v662, %v687
      %v715 = vmul.f32 %v666, %v687
      %v716 = vmul.f32 %v670, %v687
      %v717 = vmul.f32 %v674, %v687
      %v718 = vmul.f32 %v678, %v687
      %v719 = vmul.f32 %v682, %v687
      %v720 = vadd.f32 %v524, %v688
      %v721 = vadd.f32 %v525, %v689
      %v722 = vadd.f32 %v526, %v690
      %v723 = vadd.f32 %v527, %v691
      %v724 = vadd.f32 %v528, %v692
      %v725 = vadd.f32 %v529, %v693
      %v726 = vadd.f32 %v530, %v694
      %v727 = vadd.f32 %v531, %v695
      %v728 = vadd.f32 %v532, %v696
      %v729 = vadd.f32 %v533, %v697
      %v730 = vadd.f32 %v534, %v698
      %v731 = vadd.f32 %v535, %v699
      %v732 = vadd.f32 %v536, %v700
      %v733 = vadd.f32 %v537, %v701
      %v734 = vadd.f32 %v538, %v702
      %v735 = vadd.f32 %v539, %v703
      %v736 = vadd.f32 %v540, %v704
      %v737 = vadd.f32 %v541, %v705
      %v738 = vadd.f32 %v542, %v706
      %v739 = vadd.f32 %v543, %v707
      %v740 = vadd.f32 %v544, %v708
      %v741 = vadd.f32 %v545, %v709
      %v742 = vadd.f32 %v546, %v710
      %v743 = vadd.f32 %v547, %v711
      %v744 = vadd.f32 %v548, %v712
      %v745 = vadd.f32 %v549, %v713
      %v746 = vadd.f32 %v550, %v714
      %v747 = vadd.f32 %v551, %v715
      %v748 = vadd.f32 %v552, %v716
      %v749 = vadd.f32 %v553, %v717
      %v750 = vadd.f32 %v554, %v718
      %v751 = vadd.f32 %v555, %v719
      %752 = vset.pattern.permute.xlu0 3
      %753 = vperm.xlu0 %752, %v131
      %v754 = vpop.permute.xlu0 %753
      %756 = vset.pattern.permute.xlu0 3
      %757 = vperm.xlu0 %756, %v132
      %v758 = vpop.permute.xlu0 %757
      %760 = vset.pattern.permute.xlu0 3
      %761 = vperm.xlu0 %760, %v133
      %v762 = vpop.permute.xlu0 %761
      %764 = vset.pattern.permute.xlu0 3
      %765 = vperm.xlu0 %764, %v134
      %v766 = vpop.permute.xlu0 %765
      %768 = vset.pattern.permute.xlu0 3
      %769 = vperm.xlu0 %768, %v135
      %v770 = vpop.permute.xlu0 %769
      %772 = vset.pattern.permute.xlu0 3
      %773 = vperm.xlu0 %772, %v136
      %v774 = vpop.permute.xlu0 %773
      %776 = vset.pattern.permute.xlu0 3
      %777 = vperm.xlu0 %776, %v137
      %v778 = vpop.permute.xlu0 %777
      %780 = vset.pattern.permute.xlu0 3
      %781 = vperm.xlu0 %780, %v138
      %v782 = vpop.permute.xlu0 %781
      %784 = vset.pattern.permute.xlu0 3
      %785 = vperm.xlu0 %784, %v139
      %v786 = vpop.permute.xlu0 %785
      %788 = vset.pattern.permute.xlu0 3
      %789 = vperm.xlu0 %788, %v140
      %v790 = vpop.permute.xlu0 %789
      %792 = vset.pattern.permute.xlu0 3
      %793 = vperm.xlu0 %792, %v141
      %v794 = vpop.permute.xlu0 %793
      %796 = vset.pattern.permute.xlu0 3
      %797 = vperm.xlu0 %796, %v142
      %v798 = vpop.permute.xlu0 %797
      %800 = vset.pattern.permute.xlu0 3
      %801 = vperm.xlu0 %800, %v143
      %v802 = vpop.permute.xlu0 %801
      %804 = vset.pattern.permute.xlu0 3
      %805 = vperm.xlu0 %804, %v144
      %v806 = vpop.permute.xlu0 %805
      %808 = vset.pattern.permute.xlu0 3
      %809 = vperm.xlu0 %808, %v145
      %v810 = vpop.permute.xlu0 %809
      %812 = vset.pattern.permute.xlu0 3
      %813 = vperm.xlu0 %812, %v146
      %v814 = vpop.permute.xlu0 %813
      %816 = vset.pattern.permute.xlu0 3
      %817 = vperm.xlu0 %816, %v147
      %v818 = vpop.permute.xlu0 %817
      %820 = vset.pattern.permute.xlu0 3
      %821 = vperm.xlu0 %820, %v148
      %v822 = vpop.permute.xlu0 %821
      %824 = vset.pattern.permute.xlu0 3
      %825 = vperm.xlu0 %824, %v149
      %v826 = vpop.permute.xlu0 %825
      %828 = vset.pattern.permute.xlu0 3
      %829 = vperm.xlu0 %828, %v150
      %v830 = vpop.permute.xlu0 %829
      %832 = vset.pattern.permute.xlu0 3
      %833 = vperm.xlu0 %832, %v151
      %v834 = vpop.permute.xlu0 %833
      %836 = vset.pattern.permute.xlu0 3
      %837 = vperm.xlu0 %836, %v152
      %v838 = vpop.permute.xlu0 %837
      %840 = vset.pattern.permute.xlu0 3
      %841 = vperm.xlu0 %840, %v153
      %v842 = vpop.permute.xlu0 %841
      %844 = vset.pattern.permute.xlu0 3
      %845 = vperm.xlu0 %844, %v154
      %v846 = vpop.permute.xlu0 %845
      %848 = vset.pattern.permute.xlu0 3
      %849 = vperm.xlu0 %848, %v155
      %v850 = vpop.permute.xlu0 %849
      %852 = vset.pattern.permute.xlu0 3
      %853 = vperm.xlu0 %852, %v156
      %v854 = vpop.permute.xlu0 %853
      %856 = vset.pattern.permute.xlu0 3
      %857 = vperm.xlu0 %856, %v157
      %v858 = vpop.permute.xlu0 %857
      %860 = vset.pattern.permute.xlu0 3
      %861 = vperm.xlu0 %860, %v158
      %v862 = vpop.permute.xlu0 %861
      %864 = vset.pattern.permute.xlu0 3
      %865 = vperm.xlu0 %864, %v159
      %v866 = vpop.permute.xlu0 %865
      %868 = vset.pattern.permute.xlu0 3
      %869 = vperm.xlu0 %868, %v160
      %v870 = vpop.permute.xlu0 %869
      %872 = vset.pattern.permute.xlu0 3
      %873 = vperm.xlu0 %872, %v161
      %v874 = vpop.permute.xlu0 %873
      %876 = vset.pattern.permute.xlu0 3
      %877 = vperm.xlu0 %876, %v162
      %v878 = vpop.permute.xlu0 %877
      %v880 = vlaneseq
      %v881 = vshrl.u32 %v880, 7
      %v882 = vsub.s32 3, %v881
      %v883 = vrot.slane %v163, %v882
      %v884 = vmul.f32 %v754, %v883
      %v885 = vmul.f32 %v758, %v883
      %v886 = vmul.f32 %v762, %v883
      %v887 = vmul.f32 %v766, %v883
      %v888 = vmul.f32 %v770, %v883
      %v889 = vmul.f32 %v774, %v883
      %v890 = vmul.f32 %v778, %v883
      %v891 = vmul.f32 %v782, %v883
      %v892 = vmul.f32 %v786, %v883
      %v893 = vmul.f32 %v790, %v883
      %v894 = vmul.f32 %v794, %v883
      %v895 = vmul.f32 %v798, %v883
      %v896 = vmul.f32 %v802, %v883
      %v897 = vmul.f32 %v806, %v883
      %v898 = vmul.f32 %v810, %v883
      %v899 = vmul.f32 %v814, %v883
      %v900 = vmul.f32 %v818, %v883
      %v901 = vmul.f32 %v822, %v883
      %v902 = vmul.f32 %v826, %v883
      %v903 = vmul.f32 %v830, %v883
      %v904 = vmul.f32 %v834, %v883
      %v905 = vmul.f32 %v838, %v883
      %v906 = vmul.f32 %v842, %v883
      %v907 = vmul.f32 %v846, %v883
      %v908 = vmul.f32 %v850, %v883
      %v909 = vmul.f32 %v854, %v883
      %v910 = vmul.f32 %v858, %v883
      %v911 = vmul.f32 %v862, %v883
      %v912 = vmul.f32 %v866, %v883
      %v913 = vmul.f32 %v870, %v883
      %v914 = vmul.f32 %v874, %v883
      %v915 = vmul.f32 %v878, %v883
      %v916 = vadd.f32 %v720, %v884
      %v917 = vadd.f32 %v721, %v885
      %v918 = vadd.f32 %v722, %v886
      %v919 = vadd.f32 %v723, %v887
      %v920 = vadd.f32 %v724, %v888
      %v921 = vadd.f32 %v725, %v889
      %v922 = vadd.f32 %v726, %v890
      %v923 = vadd.f32 %v727, %v891
      %v924 = vadd.f32 %v728, %v892
      %v925 = vadd.f32 %v729, %v893
      %v926 = vadd.f32 %v730, %v894
      %v927 = vadd.f32 %v731, %v895
      %v928 = vadd.f32 %v732, %v896
      %v929 = vadd.f32 %v733, %v897
      %v930 = vadd.f32 %v734, %v898
      %v931 = vadd.f32 %v735, %v899
      %v932 = vadd.f32 %v736, %v900
      %v933 = vadd.f32 %v737, %v901
      %v934 = vadd.f32 %v738, %v902
      %v935 = vadd.f32 %v739, %v903
      %v936 = vadd.f32 %v740, %v904
      %v937 = vadd.f32 %v741, %v905
      %v938 = vadd.f32 %v742, %v906
      %v939 = vadd.f32 %v743, %v907
      %v940 = vadd.f32 %v744, %v908
      %v941 = vadd.f32 %v745, %v909
      %v942 = vadd.f32 %v746, %v910
      %v943 = vadd.f32 %v747, %v911
      %v944 = vadd.f32 %v748, %v912
      %v945 = vadd.f32 %v749, %v913
      %v946 = vadd.f32 %v750, %v914
      %v947 = vadd.f32 %v751, %v915
      %p948 = scmp.eq.s32.totalorder %s13, 0
      // Predicated region
      $region29: #{inverted_residual_forward.5} parent=27 // pred_check
        %p949 = pneg %p948
      $region30: #{inverted_residual_forward.5} parent=27 // pred_check_branch
        %951 = sbr.rel (%p949) target = $region32
      $region31: #{inverted_residual_forward.5} parent=27 // pred_region
        %952 = vst [vmem:[%s2] sm:$0x3] 0.0
      $region32: #{inverted_residual_forward.5} parent=27 // pred_fallthru
        _
      %v953 = vld [vmem:[%s2] sm:$0x1]
      %v954 = vadd.f32 %v916, %v917
      %v955 = vadd.f32 %v954, %v918
      %v956 = vadd.f32 %v955, %v919
      %v957 = vadd.f32 %v956, %v920
      %v958 = vadd.f32 %v957, %v921
      %v959 = vadd.f32 %v958, %v922
      %v960 = vadd.f32 %v959, %v923
      %v961 = vadd.f32 %v960, %v924
      %v962 = vadd.f32 %v961, %v925
      %v963 = vadd.f32 %v962, %v926
      %v964 = vadd.f32 %v963, %v927
      %v965 = vadd.f32 %v964, %v928
      %v966 = vadd.f32 %v965, %v929
      %v967 = vadd.f32 %v966, %v930
      %v968 = vadd.f32 %v967, %v931
      %v969 = vadd.f32 %v968, %v932
      %v970 = vadd.f32 %v969, %v933
      %v971 = vadd.f32 %v970, %v934
      %v972 = vadd.f32 %v971, %v935
      %v973 = vadd.f32 %v972, %v936
      %v974 = vadd.f32 %v973, %v937
      %v975 = vadd.f32 %v974, %v938
      %v976 = vadd.f32 %v975, %v939
      %v977 = vadd.f32 %v976, %v940
      %v978 = vadd.f32 %v977, %v941
      %v979 = vadd.f32 %v978, %v942
      %v980 = vadd.f32 %v979, %v943
      %v981 = vadd.f32 %v980, %v944
      %v982 = vadd.f32 %v981, %v945
      %v983 = vadd.f32 %v982, %v946
      %v984 = vadd.f32 %v983, %v947
      %v985 = vrot.slane %v984, 4
      %v986 = vadd.f32 %v984, %v985
      %v987 = vrot.slane %v986, 2
      %v988 = vadd.f32 %v986, %v987
      %v989 = vrot.slane %v988, 1
      %v990 = vadd.f32 %v988, %v989
      %v991 = vadd.f32 %v953, %v990
      %992 = vst [vmem:[%s2] sm:$0x1] %v991
      %v993 = vld [vmem:[%s2 + $0x1] sm:$0x1]
      %v994 = vmul.f32 %v916, %v916
      %v995 = vmul.f32 %v917, %v917
      %v996 = vmul.f32 %v918, %v918
      %v997 = vmul.f32 %v919, %v919
      %v998 = vmul.f32 %v920, %v920
      %v999 = vmul.f32 %v921, %v921
      %v1000 = vmul.f32 %v922, %v922
      %v1001 = vmul.f32 %v923, %v923
      %v1002 = vmul.f32 %v924, %v924
      %v1003 = vmul.f32 %v925, %v925
      %v1004 = vmul.f32 %v926, %v926
      %v1005 = vmul.f32 %v927, %v927
      %v1006 = vmul.f32 %v928, %v928
      %v1007 = vmul.f32 %v929, %v929
      %v1008 = vmul.f32 %v930, %v930
      %v1009 = vmul.f32 %v931, %v931
      %v1010 = vmul.f32 %v932, %v932
      %v1011 = vmul.f32 %v933, %v933
      %v1012 = vmul.f32 %v934, %v934
      %v1013 = vmul.f32 %v935, %v935
      %v1014 = vmul.f32 %v936, %v936
      %v1015 = vmul.f32 %v937, %v937
      %v1016 = vmul.f32 %v938, %v938
      %v1017 = vmul.f32 %v939, %v939
      %v1018 = vmul.f32 %v940, %v940
      %v1019 = vmul.f32 %v941, %v941
      %v1020 = vmul.f32 %v942, %v942
      %v1021 = vmul.f32 %v943, %v943
      %v1022 = vmul.f32 %v944, %v944
      %v1023 = vmul.f32 %v945, %v945
      %v1024 = vmul.f32 %v946, %v946
      %v1025 = vmul.f32 %v947, %v947
      %v1026 = vadd.f32 %v994, %v995
      %v1027 = vadd.f32 %v1026, %v996
      %v1028 = vadd.f32 %v1027, %v997
      %v1029 = vadd.f32 %v1028, %v998
      %v1030 = vadd.f32 %v1029, %v999
      %v1031 = vadd.f32 %v1030, %v1000
      %v1032 = vadd.f32 %v1031, %v1001
      %v1033 = vadd.f32 %v1032, %v1002
      %v1034 = vadd.f32 %v1033, %v1003
      %v1035 = vadd.f32 %v1034, %v1004
      %v1036 = vadd.f32 %v1035, %v1005
      %v1037 = vadd.f32 %v1036, %v1006
      %v1038 = vadd.f32 %v1037, %v1007
      %v1039 = vadd.f32 %v1038, %v1008
      %v1040 = vadd.f32 %v1039, %v1009
      %v1041 = vadd.f32 %v1040, %v1010
      %v1042 = vadd.f32 %v1041, %v1011
      %v1043 = vadd.f32 %v1042, %v1012
      %v1044 = vadd.f32 %v1043, %v1013
      %v1045 = vadd.f32 %v1044, %v1014
      %v1046 = vadd.f32 %v1045, %v1015
      %v1047 = vadd.f32 %v1046, %v1016
      %v1048 = vadd.f32 %v1047, %v1017
      %v1049 = vadd.f32 %v1048, %v1018
      %v1050 = vadd.f32 %v1049, %v1019
      %v1051 = vadd.f32 %v1050, %v1020
      %v1052 = vadd.f32 %v1051, %v1021
      %v1053 = vadd.f32 %v1052, %v1022
      %v1054 = vadd.f32 %v1053, %v1023
      %v1055 = vadd.f32 %v1054, %v1024
      %v1056 = vadd.f32 %v1055, %v1025
      %v1057 = vrot.slane %v1056, 4
      %v1058 = vadd.f32 %v1056, %v1057
      %v1059 = vrot.slane %v1058, 2
      %v1060 = vadd.f32 %v1058, %v1059
      %v1061 = vrot.slane %v1060, 1
      %v1062 = vadd.f32 %v1060, %v1061
      %v1063 = vadd.f32 %v993, %v1062
      %1064 = vst [vmem:[%s2 + $0x1] sm:$0x1] %v1063
      // Predicated region
      $region33: #{inverted_residual_forward.5} parent=27 // pred_check
        %p1065 = pneg %p73
      $region34: #{inverted_residual_forward.5} parent=27 // pred_check_branch
        %1067 = sbr.rel (%p1065) target = $region36
      $region35: #{inverted_residual_forward.5} parent=27 // pred_region
        _
      $region36: #{inverted_residual_forward.5} parent=27 // pred_fallthru
        _
      // Predicated region
      $region37: #{inverted_residual_forward.5} parent=27 // pred_check
        %p1068 = pneg %p73
      $region38: #{inverted_residual_forward.5} parent=27 // pred_check_branch
        %1070 = sbr.rel (%p1068) target = $region40
      $region39: #{inverted_residual_forward.5} parent=27 // pred_region
        _
      $region40: #{inverted_residual_forward.5} parent=27 // pred_fallthru
        _
    $region28: #{inverted_residual_forward.5} parent=5 // pred_fallthru
      _
    %p1071 = scmp.le.s32.totalorder 2, %s8
    // Predicated region
    $region41: #{inverted_residual_forward.5} parent=5 // pred_check
      %p1072 = pneg %p1071
    $region42: #{inverted_residual_forward.5} parent=5 // pred_check_branch
      %1074 = sbr.rel (%p1072) target = $region44
    $region43: #{inverted_residual_forward.5} parent=5 // pred_region
      %s1075 = ssub.s32 %s8, 2
    $region44: #{inverted_residual_forward.5} parent=5 // pred_fallthru
      _
  $region6: #{inverted_residual_forward.5} parent=0 // loop_footer
    %s12 = sadd.s32 1, %s8
  $region7: #{inverted_residual_forward.5} parent=0 // loop_footer_branch
    %7 = sbr.rel target = $region3
  $region8: #{inverted_residual_forward.5} parent=0 // loop_exit
    _

// kernel: inverted_residual_forward.8
$region0: #{inverted_residual_forward.8}
  #allocation0 [shape = 'u32[]', space=smem, size = 0x4, offset = 0x4, fixed_abs, tag = 'smem constant byte address 0x4 - core index']
  #allocation1 [shape = 'u32[144,128]{1,0:T(1,128)}', space=vmem, size = 0x12000, scoped, tag = 'internal scratch']
  %s0 = inlined_call_operand.vmem [shape: f32[2,9,9,128], index: 0, kind: input, shape index: {}]
  %s1 = inlined_call_operand.vmem [shape: f32[2,9,9,128], index: 1, kind: input, shape index: {}]
  %s2 = inlined_call_operand.vmem [shape: f32[2,9,9,128], index: 2, kind: input, shape index: {}]
  %s3 = inlined_call_operand.vmem [shape: f32[2,9,9,128], index: 3, kind: input, shape index: {}]
  %s4 = inlined_call_operand.vmem [shape: f32[9,128], index: 4, kind: input, shape index: {}]
  %s5 = inlined_call_operand.vmem [shape: f32[2,128], index: 5, kind: input, shape index: {}]
  %s6 = inlined_call_operand.vmem [shape: f32[1,128], index: 6, kind: input, shape index: {}]
  %s7 = inlined_call_operand.vmem [shape: f32[1,128], index: 7, kind: input, shape index: {}]
  %s8 = inlined_call_operand.vmem [shape: bf16[128,128], index: 8, kind: input, shape index: {}]
  %s9 = inlined_call_operand.vmem [shape: f32[2,8,8,128], index: 9, kind: output, shape index: {0}]
  %s10 = inlined_call_operand.vmem [shape: f32[2,128], index: 10, kind: output, shape index: {1}]
  %11 = xla_tuple %s9, %s10
  %s12 = sld [smem:[#allocation0]]
  $region81: #{inverted_residual_forward.8} parent=0
    _
  %s14 = ssub.s32 1, %s12
  %s15 = scalar_select 0, %s14, %s12
  loop: start=0, step=1, limit=6
  $region2: #{inverted_residual_forward.8} parent=0 // loop_pre_header
    _
  $region3: #{inverted_residual_forward.8} parent=0 // loop_header
    %s17 = sphi 0, %s21
    %p18 = scmp.ge.s32.totalorder %s17, 6
    %s24 = sphi 0, %s36
    %s25 = sphi 0, %s32
    %s26 = sphi 0, %s24
    %s27 = sphi 0, %s25
    %s28 = sphi 0, %s26
    %s29 = sphi 0, %s27
    %s39 = sphi 0, %s41
    %s42 = sphi 0, %s39
    %s43 = sphi 0, %s42
    %s59 = sphi 0, %s43
    %s65 = sphi 0, %s67
    %s68 = sphi 0, %s65
    %s69 = sphi 0, %s68
    %s85 = sphi 0, %s69
    %s91 = sphi 0, %s93
    %s94 = sphi 0, %s91
    %s95 = sphi 0, %s94
    %s111 = sphi 0, %s95
    %s117 = sphi 0, %s119
    %s120 = sphi 0, %s117
    %s121 = sphi 0, %s120
    %s137 = sphi 0, %s121
    %s141 = sphi 0, %s141
    %s143 = sphi 0, %s141
    %s144 = sphi 0, %s143
    %s158 = sphi 0, %s144
    %s162 = sphi 0, %s162
    %s164 = sphi 0, %s162
    %s165 = sphi 0, %s164
    %s179 = sphi 0, %s165
    %s183 = sphi 0, %s183
    %s185 = sphi 0, %s183
    %s186 = sphi 0, %s185
    %s200 = sphi 0, %s186
    %s204 = sphi 0, %s204
    %s206 = sphi 0, %s204
    %s207 = sphi 0, %s206
    %s221 = sphi 0, %s207
    %s225 = sphi 0, %s225
    %s227 = sphi 0, %s225
    %s228 = sphi 0, %s227
    %s242 = sphi 0, %s228
    %s250 = sphi 0, %s252
    %s253 = sphi 0, %s250
    %s254 = sphi 0, %s253
    %s270 = sphi 0, %s254
    %s274 = sphi 0, %s274
    %s276 = sphi 0, %s274
    %s277 = sphi 0, %s276
    %s291 = sphi 0, %s277
  $region4: #{inverted_residual_forward.8} parent=0 // loop_header_branch
    %20 = sbr.rel (%p18) target = $region8
  $region5: #{inverted_residual_forward.8} parent=0 // loop_body
    %s22 = ssub.s32 %s17, 1
    %s23 = ssub.s32 %s17, 2
    %s30 = sadd.s32 1, %s25
    %p31 = scmp.ge.s32.totalorder %s30, 2
    %s32 = scalar_select %p31, 0, %s30
    %s33 = sadd.s32 1, %s24
    %s34 = scalar_select %p31, %s33, %s24
    %p35 = scmp.ge.s32.totalorder %s34, 2
    %s36 = scalar_select %p35, 0, %s34
    %s37 = ssub.s32 %s24, %s36
    %p38 = scmp.eq.s32.totalorder %s37, 0
    %s40 = sadd.s32 %s39, 1
    %s41 = scalar_select %p38, %s39, %s40
    %p44 = pneg %p38
    %p45 = scmp.eq.s32.totalorder %s17, 3
    %p46 = por %p44, %p45
    %p47 = scmp.ne.s32.totalorder %s39, %s42
    %p48 = scmp.eq.s32.totalorder %s17, 0
    %p49 = por %p47, %p48
    %p50 = scmp.ne.s32.totalorder %s39, %s42
    %p51 = scmp.eq.s32.totalorder %s22, 3
    %p52 = por %p50, %p51
    %p53 = scmp.ne.s32.totalorder %s42, %s43
    %p54 = scmp.eq.s32.totalorder %s22, 0
    %p55 = por %p53, %p54
    %p56 = scmp.ne.s32.totalorder %s42, %s43
    %p57 = scmp.eq.s32.totalorder %s23, 3
    %p58 = por %p56, %p57
    %p60 = scmp.ne.s32.totalorder %s43, %s59
    %p61 = scmp.eq.s32.totalorder %s23, 0
    %p62 = por %p60, %p61
    %s63 = ssub.s32 %s24, %s36
    %p64 = scmp.eq.s32.totalorder %s63, 0
    %s66 = sadd.s32 %s65, 1
    %s67 = scalar_select %p64, %s65, %s66
    %p70 = pneg %p64
    %p71 = scmp.eq.s32.totalorder %s17, 3
    %p72 = por %p70, %p71
    %p73 = scmp.ne.s32.totalorder %s65, %s68
    %p74 = scmp.eq.s32.totalorder %s17, 0
    %p75 = por %p73, %p74
    %p76 = scmp.ne.s32.totalorder %s65, %s68
    %p77 = scmp.eq.s32.totalorder %s22, 3
    %p78 = por %p76, %p77
    %p79 = scmp.ne.s32.totalorder %s68, %s69
    %p80 = scmp.eq.s32.totalorder %s22, 0
    %p81 = por %p79, %p80
    %p82 = scmp.ne.s32.totalorder %s68, %s69
    %p83 = scmp.eq.s32.totalorder %s23, 3
    %p84 = por %p82, %p83
    %p86 = scmp.ne.s32.totalorder %s69, %s85
    %p87 = scmp.eq.s32.totalorder %s23, 0
    %p88 = por %p86, %p87
    %s89 = ssub.s32 %s24, %s36
    %p90 = scmp.eq.s32.totalorder %s89, 0
    %s92 = sadd.s32 %s91, 1
    %s93 = scalar_select %p90, %s91, %s92
    %p96 = pneg %p90
    %p97 = scmp.eq.s32.totalorder %s17, 3
    %p98 = por %p96, %p97
    %p99 = scmp.ne.s32.totalorder %s91, %s94
    %p100 = scmp.eq.s32.totalorder %s17, 0
    %p101 = por %p99, %p100
    %p102 = scmp.ne.s32.totalorder %s91, %s94
    %p103 = scmp.eq.s32.totalorder %s22, 3
    %p104 = por %p102, %p103
    %p105 = scmp.ne.s32.totalorder %s94, %s95
    %p106 = scmp.eq.s32.totalorder %s22, 0
    %p107 = por %p105, %p106
    %p108 = scmp.ne.s32.totalorder %s94, %s95
    %p109 = scmp.eq.s32.totalorder %s23, 3
    %p110 = por %p108, %p109
    %p112 = scmp.ne.s32.totalorder %s95, %s111
    %p113 = scmp.eq.s32.totalorder %s23, 0
    %p114 = por %p112, %p113
    %s115 = ssub.s32 %s24, %s36
    %p116 = scmp.eq.s32.totalorder %s115, 0
    %s118 = sadd.s32 %s117, 1
    %s119 = scalar_select %p116, %s117, %s118
    %p122 = pneg %p116
    %p123 = scmp.eq.s32.totalorder %s17, 3
    %p124 = por %p122, %p123
    %p125 = scmp.ne.s32.totalorder %s117, %s120
    %p126 = scmp.eq.s32.totalorder %s17, 0
    %p127 = por %p125, %p126
    %p128 = scmp.ne.s32.totalorder %s117, %s120
    %p129 = scmp.eq.s32.totalorder %s22, 3
    %p130 = por %p128, %p129
    %p131 = scmp.ne.s32.totalorder %s120, %s121
    %p132 = scmp.eq.s32.totalorder %s22, 0
    %p133 = por %p131, %p132
    %p134 = scmp.ne.s32.totalorder %s120, %s121
    %p135 = scmp.eq.s32.totalorder %s23, 3
    %p136 = por %p134, %p135
    %p138 = scmp.ne.s32.totalorder %s121, %s137
    %p139 = scmp.eq.s32.totalorder %s23, 0
    %p140 = por %p138, %p139
    %s142 = sadd.s32 %s141, 1
    %p145 = scmp.eq.s32.totalorder %s17, 3
    %p146 = scmp.ne.s32.totalorder %s141, %s143
    %p147 = scmp.eq.s32.totalorder %s17, 0
    %p148 = por %p146, %p147
    %p149 = scmp.ne.s32.totalorder %s141, %s143
    %p150 = scmp.eq.s32.totalorder %s22, 3
    %p151 = por %p149, %p150
    %p152 = scmp.ne.s32.totalorder %s143, %s144
    %p153 = scmp.eq.s32.totalorder %s22, 0
    %p154 = por %p152, %p153
    %p155 = scmp.ne.s32.totalorder %s143, %s144
    %p156 = scmp.eq.s32.totalorder %s23, 3
    %p157 = por %p155, %p156
    %p159 = scmp.ne.s32.totalorder %s144, %s158
    %p160 = scmp.eq.s32.totalorder %s23, 0
    %p161 = por %p159, %p160
    %s163 = sadd.s32 %s162, 1
    %p166 = scmp.eq.s32.totalorder %s17, 3
    %p167 = scmp.ne.s32.totalorder %s162, %s164
    %p168 = scmp.eq.s32.totalorder %s17, 0
    %p169 = por %p167, %p168
    %p170 = scmp.ne.s32.totalorder %s162, %s164
    %p171 = scmp.eq.s32.totalorder %s22, 3
    %p172 = por %p170, %p171
    %p173 = scmp.ne.s32.totalorder %s164, %s165
    %p174 = scmp.eq.s32.totalorder %s22, 0
    %p175 = por %p173, %p174
    %p176 = scmp.ne.s32.totalorder %s164, %s165
    %p177 = scmp.eq.s32.totalorder %s23, 3
    %p178 = por %p176, %p177
    %p180 = scmp.ne.s32.totalorder %s165, %s179
    %p181 = scmp.eq.s32.totalorder %s23, 0
    %p182 = por %p180, %p181
    %s184 = sadd.s32 %s183, 1
    %p187 = scmp.eq.s32.totalorder %s17, 3
    %p188 = scmp.ne.s32.totalorder %s183, %s185
    %p189 = scmp.eq.s32.totalorder %s17, 0
    %p190 = por %p188, %p189
    %p191 = scmp.ne.s32.totalorder %s183, %s185
    %p192 = scmp.eq.s32.totalorder %s22, 3
    %p193 = por %p191, %p192
    %p194 = scmp.ne.s32.totalorder %s185, %s186
    %p195 = scmp.eq.s32.totalorder %s22, 0
    %p196 = por %p194, %p195
    %p197 = scmp.ne.s32.totalorder %s185, %s186
    %p198 = scmp.eq.s32.totalorder %s23, 3
    %p199 = por %p197, %p198
    %p201 = scmp.ne.s32.totalorder %s186, %s200
    %p202 = scmp.eq.s32.totalorder %s23, 0
    %p203 = por %p201, %p202
    %s205 = sadd.s32 %s204, 1
    %p208 = scmp.eq.s32.totalorder %s17, 3
    %p209 = scmp.ne.s32.totalorder %s204, %s206
    %p210 = scmp.eq.s32.totalorder %s17, 0
    %p211 = por %p209, %p210
    %p212 = scmp.ne.s32.totalorder %s204, %s206
    %p213 = scmp.eq.s32.totalorder %s22, 3
    %p214 = por %p212, %p213
    %p215 = scmp.ne.s32.totalorder %s206, %s207
    %p216 = scmp.eq.s32.totalorder %s22, 0
    %p217 = por %p215, %p216
    %p218 = scmp.ne.s32.totalorder %s206, %s207
    %p219 = scmp.eq.s32.totalorder %s23, 3
    %p220 = por %p218, %p219
    %p222 = scmp.ne.s32.totalorder %s207, %s221
    %p223 = scmp.eq.s32.totalorder %s23, 0
    %p224 = por %p222, %p223
    %s226 = sadd.s32 %s225, 1
    %p229 = scmp.eq.s32.totalorder %s17, 3
    %p230 = scmp.ne.s32.totalorder %s225, %s227
    %p231 = scmp.eq.s32.totalorder %s17, 0
    %p232 = por %p230, %p231
    %p233 = scmp.ne.s32.totalorder %s225, %s227
    %p234 = scmp.eq.s32.totalorder %s22, 3
    %p235 = por %p233, %p234
    %p236 = scmp.ne.s32.totalorder %s227, %s228
    %p237 = scmp.eq.s32.totalorder %s22, 0
    %p238 = por %p236, %p237
    %p239 = scmp.ne.s32.totalorder %s227, %s228
    %p240 = scmp.eq.s32.totalorder %s23, 3
    %p241 = por %p239, %p240
    %p243 = scmp.ne.s32.totalorder %s228, %s242
    %p244 = scmp.eq.s32.totalorder %s23, 0
    %p245 = por %p243, %p244
    %s246 = ssub.s32 %s24, %s36
    %s247 = ssub.s32 %s25, %s32
    %s248 = sor.u32 %s246, %s247
    %p249 = scmp.eq.s32.totalorder %s248, 0
    %s251 = sadd.s32 %s250, 1
    %s252 = scalar_select %p249, %s250, %s251
    %p255 = pneg %p249
    %p256 = scmp.eq.s32.totalorder %s17, 3
    %p257 = por %p255, %p256
    %p258 = scmp.ne.s32.totalorder %s250, %s253
    %p259 = scmp.eq.s32.totalorder %s17, 0
    %p260 = por %p258, %p259
    %p261 = scmp.ne.s32.totalorder %s250, %s253
    %p262 = scmp.eq.s32.totalorder %s22, 3
    %p263 = por %p261, %p262
    %p264 = scmp.ne.s32.totalorder %s253, %s254
    %p265 = scmp.eq.s32.totalorder %s22, 0
    %p266 = por %p264, %p265
    %p267 = scmp.ne.s32.totalorder %s253, %s254
    %p268 = scmp.eq.s32.totalorder %s23, 3
    %p269 = por %p267, %p268
    %p271 = scmp.ne.s32.totalorder %s254, %s270
    %p272 = scmp.eq.s32.totalorder %s23, 0
    %p273 = por %p271, %p272
    %s275 = sadd.s32 %s274, 1
    %p278 = scmp.eq.s32.totalorder %s17, 3
    %p279 = scmp.ne.s32.totalorder %s274, %s276
    %p280 = scmp.eq.s32.totalorder %s17, 0
    %p281 = por %p279, %p280
    %p282 = scmp.ne.s32.totalorder %s274, %s276
    %p283 = scmp.eq.s32.totalorder %s22, 3
    %p284 = por %p282, %p283
    %p285 = scmp.ne.s32.totalorder %s276, %s277
    %p286 = scmp.eq.s32.totalorder %s22, 0
    %p287 = por %p285, %p286
    %p288 = scmp.ne.s32.totalorder %s276, %s277
    %p289 = scmp.eq.s32.totalorder %s23, 3
    %p290 = por %p288, %p289
    %p292 = scmp.ne.s32.totalorder %s277, %s291
    %p293 = scmp.eq.s32.totalorder %s23, 0
    %p294 = por %p292, %p293
    %p295 = scmp.le.s32.totalorder 1, %s17
    %p296 = scmp.lt.s32.totalorder %s17, 5
    %p297 = pnand %p295, %p296
    %p298 = pneg %p297
    // Predicated region
    $region9: #{inverted_residual_forward.8} parent=5 // pred_check
      _
    $region10: #{inverted_residual_forward.8} parent=5 // pred_check_branch
      %300 = sbr.rel (%p297) target = $region12
    $region11: #{inverted_residual_forward.8} parent=5 // pred_region
      %s301 = ssub.s32 %s17, 1
      // Predicated region
      $region13: #{inverted_residual_forward.8} parent=11 // pred_check
        %p302 = pneg %p154
      $region14: #{inverted_residual_forward.8} parent=11 // pred_check_branch
        %304 = sbr.rel (%p302) target = $region16
      $region15: #{inverted_residual_forward.8} parent=11 // pred_region
        _
      $region16: #{inverted_residual_forward.8} parent=11 // pred_fallthru
        _
      // Predicated region
      $region17: #{inverted_residual_forward.8} parent=11 // pred_check
        %p305 = pneg %p175
      $region18: #{inverted_residual_forward.8} parent=11 // pred_check_branch
        %307 = sbr.rel (%p305) target = $region20
      $region19: #{inverted_residual_forward.8} parent=11 // pred_region
        _
      $region20: #{inverted_residual_forward.8} parent=11 // pred_fallthru
        _
      // Predicated region
      $region21: #{inverted_residual_forward.8} parent=11 // pred_check
        %p308 = pneg %p196
      $region22: #{inverted_residual_forward.8} parent=11 // pred_check_branch
        %310 = sbr.rel (%p308) target = $region24
      $region23: #{inverted_residual_forward.8} parent=11 // pred_region
        _
      $region24: #{inverted_residual_forward.8} parent=11 // pred_fallthru
        _
      // Predicated region
      $region25: #{inverted_residual_forward.8} parent=11 // pred_check
        %p311 = pneg %p217
      $region26: #{inverted_residual_forward.8} parent=11 // pred_check_branch
        %313 = sbr.rel (%p311) target = $region28
      $region27: #{inverted_residual_forward.8} parent=11 // pred_region
        _
      $region28: #{inverted_residual_forward.8} parent=11 // pred_fallthru
        _
      // Predicated region
      $region29: #{inverted_residual_forward.8} parent=11 // pred_check
        %p314 = pneg %p238
      $region30: #{inverted_residual_forward.8} parent=11 // pred_check_branch
        %316 = sbr.rel (%p314) target = $region32
      $region31: #{inverted_residual_forward.8} parent=11 // pred_region
        _
      $region32: #{inverted_residual_forward.8} parent=11 // pred_fallthru
        _
    $region12: #{inverted_residual_forward.8} parent=5 // pred_fallthru
      _
    %p317 = scmp.lt.s32.totalorder %s17, 4
    // Predicated region
    $region33: #{inverted_residual_forward.8} parent=5 // pred_check
      %p318 = pneg %p317
    $region34: #{inverted_residual_forward.8} parent=5 // pred_check_branch
      %320 = sbr.rel (%p318) target = $region36
    $region35: #{inverted_residual_forward.8} parent=5 // pred_region
      // Predicated region
      $region37: #{inverted_residual_forward.8} parent=35 // pred_check
        %p321 = pneg %p49
      $region38: #{inverted_residual_forward.8} parent=35 // pred_check_branch
        %323 = sbr.rel (%p321) target = $region40
      $region39: #{inverted_residual_forward.8} parent=35 // pred_region
        %p324 = scmp.lt.s32.totalorder %s24, 1
        %s325 = scalar_select %p324, %s24, 1
        %s326 = smul.addr %s325, 18
        %s327 = smul.addr %s326, 8
        %s328 = scalar_lea.vmem %s0, %s327
      $region40: #{inverted_residual_forward.8} parent=35 // pred_fallthru
        _
      // Predicated region
      $region41: #{inverted_residual_forward.8} parent=35 // pred_check
        %p329 = pneg %p75
      $region42: #{inverted_residual_forward.8} parent=35 // pred_check_branch
        %331 = sbr.rel (%p329) target = $region44
      $region43: #{inverted_residual_forward.8} parent=35 // pred_region
        %p332 = scmp.lt.s32.totalorder %s24, 1
        %s333 = scalar_select %p332, %s24, 1
        %s334 = smul.addr %s333, 18
        %s335 = smul.addr %s334, 8
        %s336 = scalar_lea.vmem %s1, %s335
      $region44: #{inverted_residual_forward.8} parent=35 // pred_fallthru
        _
      // Predicated region
      $region45: #{inverted_residual_forward.8} parent=35 // pred_check
        %p337 = pneg %p101
      $region46: #{inverted_residual_forward.8} parent=35 // pred_check_branch
        %339 = sbr.rel (%p337) target = $region48
      $region47: #{inverted_residual_forward.8} parent=35 // pred_region
        %p340 = scmp.lt.s32.totalorder %s24, 1
        %s341 = scalar_select %p340, %s24, 1
        %s342 = smul.addr %s341, 18
        %s343 = smul.addr %s342, 8
        %s344 = scalar_lea.vmem %s2, %s343
      $region48: #{inverted_residual_forward.8} parent=35 // pred_fallthru
        _
      // Predicated region
      $region49: #{inverted_residual_forward.8} parent=35 // pred_check
        %p345 = pneg %p127
      $region50: #{inverted_residual_forward.8} parent=35 // pred_check_branch
        %347 = sbr.rel (%p345) target = $region52
      $region51: #{inverted_residual_forward.8} parent=35 // pred_region
        %p348 = scmp.lt.s32.totalorder %s24, 1
        %s349 = scalar_select %p348, %s24, 1
        %s350 = smul.addr %s349, 18
        %s351 = smul.addr %s350, 8
        %s352 = scalar_lea.vmem %s3, %s351
      $region52: #{inverted_residual_forward.8} parent=35 // pred_fallthru
        _
    $region36: #{inverted_residual_forward.8} parent=5 // pred_fallthru
      _
    %p353 = scmp.le.s32.totalorder 1, %s17
    %p354 = scmp.lt.s32.totalorder %s17, 5
    %p355 = pnand %p353, %p354
    %p356 = pneg %p355
    // Predicated region
    $region53: #{inverted_residual_forward.8} parent=5 // pred_check
      _
    $region54: #{inverted_residual_forward.8} parent=5 // pred_check_branch
      %358 = sbr.rel (%p355) target = $region56
    $region55: #{inverted_residual_forward.8} parent=5 // pred_region
      %s359 = ssub.s32 %s17, 1
      %p360 = scmp.lt.s32.totalorder %s26, 1
      %s361 = scalar_select %p360, %s26, 1
      %s362 = smul.addr %s361, 18
      %s363 = smul.addr %s362, 8
      %s364 = scalar_lea.vmem %s0, %s363
      %p365 = pneg %p55
      %p366 = pneg %p52
      %p367 = scmp.lt.s32.totalorder %s26, 1
      %s368 = scalar_select %p367, %s26, 1
      %s369 = smul.addr %s368, 18
      %s370 = smul.addr %s369, 8
      %s371 = scalar_lea.vmem %s1, %s370
      %p372 = pneg %p81
      %p373 = pneg %p78
      %p374 = scmp.lt.s32.totalorder %s26, 1
      %s375 = scalar_select %p374, %s26, 1
      %s376 = smul.addr %s375, 18
      %s377 = smul.addr %s376, 8
      %s378 = scalar_lea.vmem %s2, %s377
      %p379 = pneg %p107
      %p380 = pneg %p104
      %p381 = scmp.lt.s32.totalorder %s26, 1
      %s382 = scalar_select %p381, %s26, 1
      %s383 = smul.addr %s382, 18
      %s384 = smul.addr %s383, 8
      %s385 = scalar_lea.vmem %s3, %s384
      %p386 = pneg %p133
      %p387 = pneg %p130
      %p388 = pneg %p154
      %p389 = pneg %p151
      %p390 = pneg %p175
      %p391 = pneg %p172
      %p392 = pneg %p196
      %p393 = pneg %p193
      %p394 = pneg %p217
      %p395 = pneg %p214
      %p396 = pneg %p238
      %p397 = pneg %p235
      %p398 = pneg %p266
      %p399 = pneg %p263
      %s400 = smul.u32 4, %s27
      %p401 = scmp.lt.s32.totalorder %s26, 1
      %s402 = scalar_select %p401, %s26, 1
      %p403 = scmp.lt.s32.totalorder %s400, 7
      %s404 = scalar_select %p403, %s400, 7
      %s405 = smul.addr %s402, 8
      %s406 = sadd.s32 %s404, %s405
      %s407 = smul.addr %s406, 8
      %s408 = scalar_lea.vmem %s9, %s407
      %p409 = pneg %p287
      %p410 = pneg %p284
      %p411 = scmp.lt.s32.totalorder %s26, 1
      %s412 = scalar_select %p411, %s26, 1
      %s413 = smul.addr %s412, 18
      %s414 = smul.addr %s413, 8
      %s415 = scalar_lea.vmem %s0, %s414
      %p416 = scmp.lt.s32.totalorder %s26, 1
      %s417 = scalar_select %p416, %s26, 1
      %s418 = smul.addr %s417, 18
      %s419 = smul.addr %s418, 8
      %s420 = scalar_lea.vmem %s1, %s419
      %p421 = scmp.lt.s32.totalorder %s26, 1
      %s422 = scalar_select %p421, %s26, 1
      %s423 = smul.addr %s422, 18
      %s424 = smul.addr %s423, 8
      %s425 = scalar_lea.vmem %s2, %s424
      %p426 = scmp.lt.s32.totalorder %s26, 1
      %s427 = scalar_select %p426, %s26, 1
      %s428 = smul.addr %s427, 18
      %s429 = smul.addr %s428, 8
      %s430 = scalar_lea.vmem %s3, %s429
      %s431 = smul.u32 4, %s27
      %p432 = scmp.lt.s32.totalorder %s26, 1
      %s433 = scalar_select %p432, %s26, 1
      %p434 = scmp.lt.s32.totalorder %s431, 7
      %s435 = scalar_select %p434, %s431, 7
      %s436 = smul.addr %s433, 8
      %s437 = sadd.s32 %s435, %s436
      %s438 = smul.addr %s437, 8
      %s439 = scalar_lea.vmem %s9, %s438
      %s440 = smul.u32 4, %s27
      %s442 = smul.u32 %s27, 4
      %v443 = vld [vmem:[%s4] sm:$0xff]
      %v444 = vld [vmem:[%s4 + $0x8] sm:$0x1]
      %s445 = smul.u32 %s442, 16
      %s446 = scalar_lea.vmem %s415, %s445
      %v447 = vld [vmem:[%s446] sm:$0xff]
      %v448 = vld [vmem:[%s446 + $0x10] sm:$0xff]
      %v449 = vld [vmem:[%s446 + $0x20] sm:$0xff]
      %v450 = vld [vmem:[%s446 + $0x30] sm:$0xff]
      %v451 = vlaneseq
      %v452 = vshrl.u32 %v451, 7
      %v453 = vsub.s32 0, %v452
      %v454 = vrot.slane %v443, %v453
      %v455 = vmul.f32 %v447, %v454
      %v456 = vmul.f32 %v448, %v454
      %v457 = vmul.f32 %v449, %v454
      %v458 = vmul.f32 %v450, %v454
      %s459 = scalar_lea.vmem %s420, %s445
      %v460 = vld [vmem:[%s459] sm:$0xff]
      %v461 = vld [vmem:[%s459 + $0x10] sm:$0xff]
      %v462 = vld [vmem:[%s459 + $0x20] sm:$0xff]
      %v463 = vld [vmem:[%s459 + $0x30] sm:$0xff]
      %v464 = vlaneseq
      %v465 = vshrl.u32 %v464, 7
      %v466 = vsub.s32 1, %v465
      %v467 = vrot.slane %v443, %v466
      %v468 = vmul.f32 %v460, %v467
      %v469 = vmul.f32 %v461, %v467
      %v470 = vmul.f32 %v462, %v467
      %v471 = vmul.f32 %v463, %v467
      %v472 = vadd.f32 %v455, %v468
      %v473 = vadd.f32 %v456, %v469
      %v474 = vadd.f32 %v457, %v470
      %v475 = vadd.f32 %v458, %v471
      %v476 = vld [vmem:[%s446 + $0x1] sm:$0xff]
      %v477 = vld [vmem:[%s446 + $0x11] sm:$0xff]
      %v478 = vld [vmem:[%s446 + $0x21] sm:$0xff]
      %v479 = vld [vmem:[%s446 + $0x31] sm:$0xff]
      %v480 = vlaneseq
      %v481 = vshrl.u32 %v480, 7
      %v482 = vsub.s32 2, %v481
      %v483 = vrot.slane %v443, %v482
      %v484 = vmul.f32 %v476, %v483
      %v485 = vmul.f32 %v477, %v483
      %v486 = vmul.f32 %v478, %v483
      %v487 = vmul.f32 %v479, %v483
      %v488 = vadd.f32 %v472, %v484
      %v489 = vadd.f32 %v473, %v485
      %v490 = vadd.f32 %v474, %v486
      %v491 = vadd.f32 %v475, %v487
      %s492 = scalar_lea.vmem %s425, %s445
      %v493 = vld [vmem:[%s492] sm:$0xff]
      %v494 = vld [vmem:[%s492 + $0x10] sm:$0xff]
      %v495 = vld [vmem:[%s492 + $0x20] sm:$0xff]
      %v496 = vld [vmem:[%s492 + $0x30] sm:$0xff]
      %v497 = vlaneseq
      %v498 = vshrl.u32 %v497, 7
      %v499 = vsub.s32 3, %v498
      %v500 = vrot.slane %v443, %v499
      %v501 = vmul.f32 %v493, %v500
      %v502 = vmul.f32 %v494, %v500
      %v503 = vmul.f32 %v495, %v500
      %v504 = vmul.f32 %v496, %v500
      %v505 = vadd.f32 %v488, %v501
      %v506 = vadd.f32 %v489, %v502
      %v507 = vadd.f32 %v490, %v503
      %v508 = vadd.f32 %v491, %v504
      %s509 = scalar_lea.vmem %s430, %s445
      %v510 = vld [vmem:[%s509] sm:$0xff]
      %v511 = vld [vmem:[%s509 + $0x10] sm:$0xff]
      %v512 = vld [vmem:[%s509 + $0x20] sm:$0xff]
      %v513 = vld [vmem:[%s509 + $0x30] sm:$0xff]
      %v514 = vlaneseq
      %v515 = vshrl.u32 %v514, 7
      %v516 = vsub.s32 4, %v515
      %v517 = vrot.slane %v443, %v516
      %v518 = vmul.f32 %v510, %v517
      %v519 = vmul.f32 %v511, %v517
      %v520 = vmul.f32 %v512, %v517
      %v521 = vmul.f32 %v513, %v517
      %v522 = vadd.f32 %v505, %v518
      %v523 = vadd.f32 %v506, %v519
      %v524 = vadd.f32 %v507, %v520
      %v525 = vadd.f32 %v508, %v521
      %v526 = vld [vmem:[%s492 + $0x1] sm:$0xff]
      %v527 = vld [vmem:[%s492 + $0x11] sm:$0xff]
      %v528 = vld [vmem:[%s492 + $0x21] sm:$0xff]
      %v529 = vld [vmem:[%s492 + $0x31] sm:$0xff]
      %v530 = vlaneseq
      %v531 = vshrl.u32 %v530, 7
      %v532 = vsub.s32 5, %v531
      %v533 = vrot.slane %v443, %v532
      %v534 = vmul.f32 %v526, %v533
      %v535 = vmul.f32 %v527, %v533
      %v536 = vmul.f32 %v528, %v533
      %v537 = vmul.f32 %v529, %v533
      %v538 = vadd.f32 %v522, %v534
      %v539 = vadd.f32 %v523, %v535
      %v540 = vadd.f32 %v524, %v536
      %v541 = vadd.f32 %v525, %v537
      %s542 = sadd.s32 %s442, 1
      %s543 = smul.u32 %s542, 16
      %s544 = scalar_lea.vmem %s415, %s543
      %v545 = vld [vmem:[%s544] sm:$0xff]
      %v546 = vld [vmem:[%s544 + $0x10] sm:$0xff]
      %v547 = vld [vmem:[%s544 + $0x20] sm:$0xff]
      %v548 = vld [vmem:[%s544 + $0x30] sm:$0xff]
      %v549 = vlaneseq
      %v550 = vshrl.u32 %v549, 7
      %v551 = vsub.s32 6, %v550
      %v552 = vrot.slane %v443, %v551
      %v553 = vmul.f32 %v545, %v552
      %v554 = vmul.f32 %v546, %v552
      %v555 = vmul.f32 %v547, %v552
      %v556 = vmul.f32 %v548, %v552
      %v557 = vadd.f32 %v538, %v553
      %v558 = vadd.f32 %v539, %v554
      %v559 = vadd.f32 %v540, %v555
      %v560 = vadd.f32 %v541, %v556
      %s561 = scalar_lea.vmem %s420, %s543
      %v562 = vld [vmem:[%s561] sm:$0xff]
      %v563 = vld [vmem:[%s561 + $0x10] sm:$0xff]
      %v564 = vld [vmem:[%s561 + $0x20] sm:$0xff]
      %v565 = vld [vmem:[%s561 + $0x30] sm:$0xff]
      %v566 = vlaneseq
      %v567 = vshrl.u32 %v566, 7
      %v568 = vsub.s32 7, %v567
      %v569 = vrot.slane %v443, %v568
      %v570 = vmul.f32 %v562, %v569
      %v571 = vmul.f32 %v563, %v569
      %v572 = vmul.f32 %v564, %v569
      %v573 = vmul.f32 %v565, %v569
      %v574 = vadd.f32 %v557, %v570
      %v575 = vadd.f32 %v558, %v571
      %v576 = vadd.f32 %v559, %v572
      %v577 = vadd.f32 %v560, %v573
      %v578 = vld [vmem:[%s544 + $0x1] sm:$0xff]
      %v579 = vld [vmem:[%s544 + $0x11] sm:$0xff]
      %v580 = vld [vmem:[%s544 + $0x21] sm:$0xff]
      %v581 = vld [vmem:[%s544 + $0x31] sm:$0xff]
      %v582 = vlaneseq
      %v583 = vshrl.u32 %v582, 7
      %v584 = vsub.s32 0, %v583
      %v585 = vrot.slane %v444, %v584
      %v586 = vmul.f32 %v578, %v585
      %v587 = vmul.f32 %v579, %v585
      %v588 = vmul.f32 %v580, %v585
      %v589 = vmul.f32 %v581, %v585
      %v590 = vadd.f32 %v574, %v586
      %v591 = vadd.f32 %v575, %v587
      %v592 = vadd.f32 %v576, %v588
      %v593 = vadd.f32 %v577, %v589
      %v594 = vld [vmem:[%s5] sm:$0x1]
      %v595 = vmul.f32 %v594, 0.0078125
      %v596 = vld [vmem:[%s5 + $0x1] sm:$0x1]
      %v597 = vmul.f32 %v596, 0.0078125
      %v598 = vmul.f32 %v595, %v595
      %v599 = vsub.f32 %v597, %v598
      %v600 = vadd.f32 %v599, 1e-05
      %v601 = vrsqrt.pop %v600
      %v602 = vld [vmem:[%s6] sm:$0x1]
      %v603 = vmul.f32 %v601, %v602
      %v604 = vlaneseq
      %v605 = vshrl.u32 %v604, 7
      %v606 = vsub.s32 0, %v605
      %v607 = vrot.slane %v595, %v606
      %v608 = vsub.f32 %v590, %v607
      %v609 = vsub.f32 %v591, %v607
      %v610 = vsub.f32 %v592, %v607
      %v611 = vsub.f32 %v593, %v607
      %v612 = vlaneseq
      %v613 = vshrl.u32 %v612, 7
      %v614 = vsub.s32 0, %v613
      %v615 = vrot.slane %v603, %v614
      %v616 = vmul.f32 %v608, %v615
      %v617 = vmul.f32 %v609, %v615
      %v618 = vmul.f32 %v610, %v615
      %v619 = vmul.f32 %v611, %v615
      %v620 = vld [vmem:[%s7] sm:$0x1]
      %v622 = vlaneseq
      %v623 = vshrl.u32 %v622, 7
      %v624 = vsub.s32 0, %v623
      %v625 = vrot.slane %v620, %v624
      %v627 = vadd.f32 %v616, %v625
      %v628 = vadd.f32 %v617, %v625
      %v629 = vadd.f32 %v618, %v625
      %v630 = vadd.f32 %v619, %v625
      %v631 = vmax.f32 %v627, 0.0
      %v632 = vmax.f32 %v628, 0.0
      %v633 = vmax.f32 %v629, 0.0
      %v634 = vmax.f32 %v630, 0.0
      %v635 = vmin.f32 %v631, 6.0
      %v636 = vmin.f32 %v632, 6.0
      %v637 = vmin.f32 %v633, 6.0
      %v638 = vmin.f32 %v634, 6.0
      %v639 = vpack.c.bf16 %v636, %v635
      %v640 = vpack.c.bf16 %v638, %v637
      %v641 = vld [vmem:[%s8] sm:$0xf]
      %v642 = vld [vmem:[%s8 + $0x4] sm:$0xf]
      %v643 = vld [vmem:[%s8 + $0x8] sm:$0xf]
      %v644 = vld [vmem:[%s8 + $0xc] sm:$0xf]
      %v645 = vld [vmem:[%s8 + $0x10] sm:$0xf]
      %v646 = vld [vmem:[%s8 + $0x14] sm:$0xf]
      %v647 = vld [vmem:[%s8 + $0x18] sm:$0xf]
      %v648 = vld [vmem:[%s8 + $0x1c] sm:$0xf]
      %v649 = vld [vmem:[%s8 + $0x20] sm:$0xf]
      %v650 = vld [vmem:[%s8 + $0x24] sm:$0xf]
      %v651 = vld [vmem:[%s8 + $0x28] sm:$0xf]
      %v652 = vld [vmem:[%s8 + $0x2c] sm:$0xf]
      %v653 = vld [vmem:[%s8 + $0x30] sm:$0xf]
      %v654 = vld [vmem:[%s8 + $0x34] sm:$0xf]
      %v655 = vld [vmem:[%s8 + $0x38] sm:$0xf]
      %v656 = vld [vmem:[%s8 + $0x3c] sm:$0xf]
      %v673 = vunpack.c.l.b16 %v641
      %v674 = vunpack.c.l.b16 %v642
      %v675 = vunpack.c.l.b16 %v643
      %v676 = vunpack.c.l.b16 %v644
      %v677 = vunpack.c.l.b16 %v645
      %v678 = vunpack.c.l.b16 %v646
      %v679 = vunpack.c.l.b16 %v647
      %v680 = vunpack.c.l.b16 %v648
      %v681 = vunpack.c.l.b16 %v649
      %v682 = vunpack.c.l.b16 %v650
      %v683 = vunpack.c.l.b16 %v651
      %v684 = vunpack.c.l.b16 %v652
      %v685 = vunpack.c.l.b16 %v653
      %v686 = vunpack.c.l.b16 %v654
      %v687 = vunpack.c.l.b16 %v655
      %v688 = vunpack.c.l.b16 %v656
      %v689 = vpack.c.b16 %v674, %v673
      %v690 = vpack.c.b16 %v676, %v675
      %v691 = vpack.c.b16 %v678, %v677
      %v692 = vpack.c.b16 %v680, %v679
      %v693 = vpack.c.b16 %v682, %v681
      %v694 = vpack.c.b16 %v684, %v683
      %v695 = vpack.c.b16 %v686, %v685
      %v696 = vpack.c.b16 %v688, %v687
      %705 = vmatprep.subr.bf16.mxu0 0
      %706 = vmatpush1.bf16.msra.mxu0 %v689
      %707 = vmatprep.subr.bf16.mxu0 0
      %708 = vmatpush1.bf16.msra.mxu0 %v690
      %709 = vmatprep.subr.bf16.mxu0 0
      %710 = vmatpush1.bf16.msra.mxu0 %v691
      %711 = vmatprep.subr.bf16.mxu0 0
      %712 = vmatpush1.bf16.msra.mxu0 %v692
      %713 = vmatprep.subr.bf16.mxu0 0
      %714 = vmatpush1.bf16.msra.mxu0 %v693
      %715 = vmatprep.subr.bf16.mxu0 0
      %716 = vmatpush1.bf16.msra.mxu0 %v694
      %717 = vmatprep.subr.bf16.mxu0 0
      %718 = vmatpush1.bf16.msra.mxu0 %v695
      %719 = vmatprep.subr.bf16.mxu0 0
      %720 = vmatpush1.bf16.msra.mxu0 %v696
      %721 = vmatprep.subr.bf16.mxu0 0
      %722 = vmatpush1.bf16.msra.mxu0 0
      %723 = vmatprep.subr.bf16.mxu0 0
      %724 = vmatpush1.bf16.msra.mxu0 0
      %725 = vmatprep.subr.bf16.mxu0 0
      %726 = vmatpush1.bf16.msra.mxu0 0
      %727 = vmatprep.subr.bf16.mxu0 0
      %728 = vmatpush1.bf16.msra.mxu0 0
      %729 = vmatprep.subr.bf16.mxu0 0
      %730 = vmatpush1.bf16.msra.mxu0 0
      %731 = vmatprep.subr.bf16.mxu0 0
      %732 = vmatpush1.bf16.msra.mxu0 0
      %733 = vmatprep.subr.bf16.mxu0 0
      %734 = vmatpush1.bf16.msra.mxu0 0
      %735 = vmatprep.subr.bf16.mxu0 0
      %736 = vmatpush1.bf16.msra.mxu0 0
      %737 = vmatprep.mubr.bf16.mxu0 0
      %738 = vmatmul.mubr.bf16.gmra.mrb[0].mxu0 %v639
      %v739 = vpop.f32.mrb[0].mxu0
      %v740 = vadd.f32 0.0, %v739
      %v741 = vpop.f32.mrb[0].mxu0
      %v742 = vpop.f32.mrb[0].mxu0
      %v743 = vadd.f32 0.0, %v742
      %v744 = vpop.f32.mrb[0].mxu0
      %745 = vmatprep.mubr.bf16.mxu0 0
      %746 = vmatmul.mubr.bf16.gmra.mrb[0].mxu0 %v640
      %v747 = vpop.f32.mrb[0].mxu0
      %v748 = vadd.f32 0.0, %v747
      %v749 = vpop.f32.mrb[0].mxu0
      %v750 = vpop.f32.mrb[0].mxu0
      %v751 = vadd.f32 0.0, %v750
      %v752 = vpop.f32.mrb[0].mxu0
      %753 = vdwg.mxu0
      %p754 = scmp.eq.s32.totalorder %s26, 0
      %p755 = scmp.eq.s32.totalorder %s27, 0
      %p756 = pnand %p754, %p755
      %p757 = pneg %p756
      // Predicated region
      $region57: #{inverted_residual_forward.8} parent=55 // pred_check
        _
      $region58: #{inverted_residual_forward.8} parent=55 // pred_check_branch
        %759 = sbr.rel (%p756) target = $region60
      $region59: #{inverted_residual_forward.8} parent=55 // pred_region
        %760 = vst [vmem:[%s10] sm:$0x3] 0.0
      $region60: #{inverted_residual_forward.8} parent=55 // pred_fallthru
        _
      %v761 = vld [vmem:[%s10] sm:$0x1]
      %v762 = vadd.f32 %v740, %v743
      %v763 = vadd.f32 %v762, %v748
      %v764 = vadd.f32 %v763, %v751
      %v765 = vrot.slane %v764, 4
      %v766 = vadd.f32 %v764, %v765
      %v767 = vrot.slane %v766, 2
      %v768 = vadd.f32 %v766, %v767
      %v769 = vrot.slane %v768, 1
      %v770 = vadd.f32 %v768, %v769
      %v771 = vadd.f32 %v761, %v770
      %772 = vst [vmem:[%s10] sm:$0x1] %v771
      %v773 = vld [vmem:[%s10 + $0x1] sm:$0x1]
      %v774 = vmul.f32 %v740, %v740
      %v775 = vmul.f32 %v743, %v743
      %v776 = vmul.f32 %v748, %v748
      %v777 = vmul.f32 %v751, %v751
      %v778 = vadd.f32 %v774, %v775
      %v779 = vadd.f32 %v778, %v776
      %v780 = vadd.f32 %v779, %v777
      %v781 = vrot.slane %v780, 4
      %v782 = vadd.f32 %v780, %v781
      %v783 = vrot.slane %v782, 2
      %v784 = vadd.f32 %v782, %v783
      %v785 = vrot.slane %v784, 1
      %v786 = vadd.f32 %v784, %v785
      %v787 = vadd.f32 %v773, %v786
      %788 = vst [vmem:[%s10 + $0x1] sm:$0x1] %v787
      %789 = vst [vmem:[%s439] sm:$0xff] %v740
      %790 = vst [vmem:[%s439 + $0x8] sm:$0xff] %v743
      %791 = vst [vmem:[%s439 + $0x10] sm:$0xff] %v748
      %792 = vst [vmem:[%s439 + $0x18] sm:$0xff] %v751
      %s793 = smul.u32 4, %s27
      %p794 = scmp.lt.s32.totalorder %s26, 1
      %s795 = scalar_select %p794, %s26, 1
      %p796 = scmp.lt.s32.totalorder %s793, 7
      %s797 = scalar_select %p796, %s793, 7
      %s798 = smul.addr %s795, 8
      %s799 = sadd.s32 %s797, %s798
      %s800 = smul.addr %s799, 8
      %s801 = scalar_lea.vmem %s9, %s800
      // Predicated region
      $region61: #{inverted_residual_forward.8} parent=55 // pred_check
        %p802 = pneg %p263
      $region62: #{inverted_residual_forward.8} parent=55 // pred_check_branch
        %804 = sbr.rel (%p802) target = $region64
      $region63: #{inverted_residual_forward.8} parent=55 // pred_region
        %s805 = smul.u32 4, %s27
      $region64: #{inverted_residual_forward.8} parent=55 // pred_fallthru
        _
      // Predicated region
      $region65: #{inverted_residual_forward.8} parent=55 // pred_check
        %p806 = pneg %p284
      $region66: #{inverted_residual_forward.8} parent=55 // pred_check_branch
        %808 = sbr.rel (%p806) target = $region68
      $region67: #{inverted_residual_forward.8} parent=55 // pred_region
        _
      $region68: #{inverted_residual_forward.8} parent=55 // pred_fallthru
        _
      // Predicated region
      $region69: #{inverted_residual_forward.8} parent=55 // pred_check
        %p809 = pneg %p284
      $region70: #{inverted_residual_forward.8} parent=55 // pred_check_branch
        %811 = sbr.rel (%p809) target = $region72
      $region71: #{inverted_residual_forward.8} parent=55 // pred_region
        _
      $region72: #{inverted_residual_forward.8} parent=55 // pred_fallthru
        _
    $region56: #{inverted_residual_forward.8} parent=5 // pred_fallthru
      _
    %p812 = scmp.le.s32.totalorder 2, %s17
    // Predicated region
    $region73: #{inverted_residual_forward.8} parent=5 // pred_check
      %p813 = pneg %p812
    $region74: #{inverted_residual_forward.8} parent=5 // pred_check_branch
      %815 = sbr.rel (%p813) target = $region76
    $region75: #{inverted_residual_forward.8} parent=5 // pred_region
      %s816 = ssub.s32 %s17, 2
      // Predicated region
      $region77: #{inverted_residual_forward.8} parent=75 // pred_check
        %p817 = pneg %p269
      $region78: #{inverted_residual_forward.8} parent=75 // pred_check_branch
        %819 = sbr.rel (%p817) target = $region80
      $region79: #{inverted_residual_forward.8} parent=75 // pred_region
        %s820 = smul.u32 4, %s29
        %p821 = scmp.lt.s32.totalorder %s28, 1
        %s822 = scalar_select %p821, %s28, 1
        %p823 = scmp.lt.s32.totalorder %s820, 7
        %s824 = scalar_select %p823, %s820, 7
        %s825 = smul.addr %s822, 8
        %s826 = sadd.s32 %s824, %s825
        %s827 = smul.addr %s826, 8
        %s828 = scalar_lea.vmem %s9, %s827
      $region80: #{inverted_residual_forward.8} parent=75 // pred_fallthru
        _
    $region76: #{inverted_residual_forward.8} parent=5 // pred_fallthru
      _
  $region6: #{inverted_residual_forward.8} parent=0 // loop_footer
    %s21 = sadd.s32 1, %s17
  $region7: #{inverted_residual_forward.8} parent=0 // loop_footer_branch
    %16 = sbr.rel target = $region3
  $region8: #{inverted_residual_forward.8} parent=0 // loop_exit
    _

// kernel: inverted_residual_forward.9
$region0: #{inverted_residual_forward.9}
  #allocation0 [shape = 'u32[]', space=smem, size = 0x4, offset = 0x4, fixed_abs, tag = 'smem constant byte address 0x4 - core index']
  #allocation1 [shape = 'u32[144,128]{1,0:T(1,128)}', space=vmem, size = 0x12000, scoped, tag = 'internal scratch']
  %s0 = inlined_call_operand.vmem [shape: f32[2,8,8,128], index: 0, kind: input, shape index: {}]
  %s1 = inlined_call_operand.vmem [shape: f32[2,128], index: 1, kind: input, shape index: {}]
  %s2 = inlined_call_operand.vmem [shape: f32[1,128], index: 2, kind: input, shape index: {}]
  %s3 = inlined_call_operand.vmem [shape: f32[1,128], index: 3, kind: input, shape index: {}]
  %s4 = inlined_call_operand.vmem [shape: f32[2,8,8,128], index: 4, kind: output, shape index: {}]
  %s5 = sld [smem:[#allocation0]]
  $region49: #{inverted_residual_forward.9} parent=0
    _
  %s7 = ssub.s32 1, %s5
  %s8 = scalar_select 0, %s7, %s5
  loop: start=0, step=1, limit=6
  $region2: #{inverted_residual_forward.9} parent=0 // loop_pre_header
    _
  $region3: #{inverted_residual_forward.9} parent=0 // loop_header
    %s10 = sphi 0, %s14
    %p11 = scmp.ge.s32.totalorder %s10, 6
    %s17 = sphi 0, %s29
    %s18 = sphi 0, %s25
    %s19 = sphi 0, %s17
    %s20 = sphi 0, %s18
    %s21 = sphi 0, %s19
    %s22 = sphi 0, %s20
    %s34 = sphi 0, %s36
    %s37 = sphi 0, %s34
    %s38 = sphi 0, %s37
    %s54 = sphi 0, %s38
    %s58 = sphi 0, %s58
    %s60 = sphi 0, %s58
    %s61 = sphi 0, %s60
    %s75 = sphi 0, %s61
    %s79 = sphi 0, %s79
    %s81 = sphi 0, %s79
    %s82 = sphi 0, %s81
    %s96 = sphi 0, %s82
    %s100 = sphi 0, %s100
    %s102 = sphi 0, %s100
    %s103 = sphi 0, %s102
    %s117 = sphi 0, %s103
    %s125 = sphi 0, %s127
    %s128 = sphi 0, %s125
    %s129 = sphi 0, %s128
    %s145 = sphi 0, %s129
  $region4: #{inverted_residual_forward.9} parent=0 // loop_header_branch
    %13 = sbr.rel (%p11) target = $region8
  $region5: #{inverted_residual_forward.9} parent=0 // loop_body
    %s15 = ssub.s32 %s10, 1
    %s16 = ssub.s32 %s10, 2
    %s23 = sadd.s32 1, %s18
    %p24 = scmp.ge.s32.totalorder %s23, 2
    %s25 = scalar_select %p24, 0, %s23
    %s26 = sadd.s32 1, %s17
    %s27 = scalar_select %p24, %s26, %s17
    %p28 = scmp.ge.s32.totalorder %s27, 2
    %s29 = scalar_select %p28, 0, %s27
    %s30 = ssub.s32 %s17, %s29
    %s31 = ssub.s32 %s18, %s25
    %s32 = sor.u32 %s30, %s31
    %p33 = scmp.eq.s32.totalorder %s32, 0
    %s35 = sadd.s32 %s34, 1
    %s36 = scalar_select %p33, %s34, %s35
    %p39 = pneg %p33
    %p40 = scmp.eq.s32.totalorder %s10, 3
    %p41 = por %p39, %p40
    %p42 = scmp.ne.s32.totalorder %s34, %s37
    %p43 = scmp.eq.s32.totalorder %s10, 0
    %p44 = por %p42, %p43
    %p45 = scmp.ne.s32.totalorder %s34, %s37
    %p46 = scmp.eq.s32.totalorder %s15, 3
    %p47 = por %p45, %p46
    %p48 = scmp.ne.s32.totalorder %s37, %s38
    %p49 = scmp.eq.s32.totalorder %s15, 0
    %p50 = por %p48, %p49
    %p51 = scmp.ne.s32.totalorder %s37, %s38
    %p52 = scmp.eq.s32.totalorder %s16, 3
    %p53 = por %p51, %p52
    %p55 = scmp.ne.s32.totalorder %s38, %s54
    %p56 = scmp.eq.s32.totalorder %s16, 0
    %p57 = por %p55, %p56
    %s59 = sadd.s32 %s58, 1
    %p62 = scmp.eq.s32.totalorder %s10, 3
    %p63 = scmp.ne.s32.totalorder %s58, %s60
    %p64 = scmp.eq.s32.totalorder %s10, 0
    %p65 = por %p63, %p64
    %p66 = scmp.ne.s32.totalorder %s58, %s60
    %p67 = scmp.eq.s32.totalorder %s15, 3
    %p68 = por %p66, %p67
    %p69 = scmp.ne.s32.totalorder %s60, %s61
    %p70 = scmp.eq.s32.totalorder %s15, 0
    %p71 = por %p69, %p70
    %p72 = scmp.ne.s32.totalorder %s60, %s61
    %p73 = scmp.eq.s32.totalorder %s16, 3
    %p74 = por %p72, %p73
    %p76 = scmp.ne.s32.totalorder %s61, %s75
    %p77 = scmp.eq.s32.totalorder %s16, 0
    %p78 = por %p76, %p77
    %s80 = sadd.s32 %s79, 1
    %p83 = scmp.eq.s32.totalorder %s10, 3
    %p84 = scmp.ne.s32.totalorder %s79, %s81
    %p85 = scmp.eq.s32.totalorder %s10, 0
    %p86 = por %p84, %p85
    %p87 = scmp.ne.s32.totalorder %s79, %s81
    %p88 = scmp.eq.s32.totalorder %s15, 3
    %p89 = por %p87, %p88
    %p90 = scmp.ne.s32.totalorder %s81, %s82
    %p91 = scmp.eq.s32.totalorder %s15, 0
    %p92 = por %p90, %p91
    %p93 = scmp.ne.s32.totalorder %s81, %s82
    %p94 = scmp.eq.s32.totalorder %s16, 3
    %p95 = por %p93, %p94
    %p97 = scmp.ne.s32.totalorder %s82, %s96
    %p98 = scmp.eq.s32.totalorder %s16, 0
    %p99 = por %p97, %p98
    %s101 = sadd.s32 %s100, 1
    %p104 = scmp.eq.s32.totalorder %s10, 3
    %p105 = scmp.ne.s32.totalorder %s100, %s102
    %p106 = scmp.eq.s32.totalorder %s10, 0
    %p107 = por %p105, %p106
    %p108 = scmp.ne.s32.totalorder %s100, %s102
    %p109 = scmp.eq.s32.totalorder %s15, 3
    %p110 = por %p108, %p109
    %p111 = scmp.ne.s32.totalorder %s102, %s103
    %p112 = scmp.eq.s32.totalorder %s15, 0
    %p113 = por %p111, %p112
    %p114 = scmp.ne.s32.totalorder %s102, %s103
    %p115 = scmp.eq.s32.totalorder %s16, 3
    %p116 = por %p114, %p115
    %p118 = scmp.ne.s32.totalorder %s103, %s117
    %p119 = scmp.eq.s32.totalorder %s16, 0
    %p120 = por %p118, %p119
    %s121 = ssub.s32 %s17, %s29
    %s122 = ssub.s32 %s18, %s25
    %s123 = sor.u32 %s121, %s122
    %p124 = scmp.eq.s32.totalorder %s123, 0
    %s126 = sadd.s32 %s125, 1
    %s127 = scalar_select %p124, %s125, %s126
    %p130 = pneg %p124
    %p131 = scmp.eq.s32.totalorder %s10, 3
    %p132 = por %p130, %p131
    %p133 = scmp.ne.s32.totalorder %s125, %s128
    %p134 = scmp.eq.s32.totalorder %s10, 0
    %p135 = por %p133, %p134
    %p136 = scmp.ne.s32.totalorder %s125, %s128
    %p137 = scmp.eq.s32.totalorder %s15, 3
    %p138 = por %p136, %p137
    %p139 = scmp.ne.s32.totalorder %s128, %s129
    %p140 = scmp.eq.s32.totalorder %s15, 0
    %p141 = por %p139, %p140
    %p142 = scmp.ne.s32.totalorder %s128, %s129
    %p143 = scmp.eq.s32.totalorder %s16, 3
    %p144 = por %p142, %p143
    %p146 = scmp.ne.s32.totalorder %s129, %s145
    %p147 = scmp.eq.s32.totalorder %s16, 0
    %p148 = por %p146, %p147
    %p149 = scmp.le.s32.totalorder 1, %s10
    %p150 = scmp.lt.s32.totalorder %s10, 5
    %p151 = pnand %p149, %p150
    %p152 = pneg %p151
    // Predicated region
    $region9: #{inverted_residual_forward.9} parent=5 // pred_check
      _
    $region10: #{inverted_residual_forward.9} parent=5 // pred_check_branch
      %154 = sbr.rel (%p151) target = $region12
    $region11: #{inverted_residual_forward.9} parent=5 // pred_region
      %s155 = ssub.s32 %s10, 1
      // Predicated region
      $region13: #{inverted_residual_forward.9} parent=11 // pred_check
        %p156 = pneg %p71
      $region14: #{inverted_residual_forward.9} parent=11 // pred_check_branch
        %158 = sbr.rel (%p156) target = $region16
      $region15: #{inverted_residual_forward.9} parent=11 // pred_region
        _
      $region16: #{inverted_residual_forward.9} parent=11 // pred_fallthru
        _
      // Predicated region
      $region17: #{inverted_residual_forward.9} parent=11 // pred_check
        %p159 = pneg %p92
      $region18: #{inverted_residual_forward.9} parent=11 // pred_check_branch
        %161 = sbr.rel (%p159) target = $region20
      $region19: #{inverted_residual_forward.9} parent=11 // pred_region
        _
      $region20: #{inverted_residual_forward.9} parent=11 // pred_fallthru
        _
      // Predicated region
      $region21: #{inverted_residual_forward.9} parent=11 // pred_check
        %p162 = pneg %p113
      $region22: #{inverted_residual_forward.9} parent=11 // pred_check_branch
        %164 = sbr.rel (%p162) target = $region24
      $region23: #{inverted_residual_forward.9} parent=11 // pred_region
        _
      $region24: #{inverted_residual_forward.9} parent=11 // pred_fallthru
        _
    $region12: #{inverted_residual_forward.9} parent=5 // pred_fallthru
      _
    %p165 = scmp.lt.s32.totalorder %s10, 4
    // Predicated region
    $region25: #{inverted_residual_forward.9} parent=5 // pred_check
      %p166 = pneg %p165
    $region26: #{inverted_residual_forward.9} parent=5 // pred_check_branch
      %168 = sbr.rel (%p166) target = $region28
    $region27: #{inverted_residual_forward.9} parent=5 // pred_region
      // Predicated region
      $region29: #{inverted_residual_forward.9} parent=27 // pred_check
        %p169 = pneg %p44
      $region30: #{inverted_residual_forward.9} parent=27 // pred_check_branch
        %171 = sbr.rel (%p169) target = $region32
      $region31: #{inverted_residual_forward.9} parent=27 // pred_region
        %s172 = smul.u32 4, %s18
        %p173 = scmp.lt.s32.totalorder %s17, 1
        %s174 = scalar_select %p173, %s17, 1
        %p175 = scmp.lt.s32.totalorder %s172, 7
        %s176 = scalar_select %p175, %s172, 7
        %s177 = smul.addr %s174, 8
        %s178 = sadd.s32 %s176, %s177
        %s179 = smul.addr %s178, 8
        %s180 = scalar_lea.vmem %s0, %s179
        %s181 = smul.u32 4, %s18
      $region32: #{inverted_residual_forward.9} parent=27 // pred_fallthru
        _
    $region28: #{inverted_residual_forward.9} parent=5 // pred_fallthru
      _
    %p182 = scmp.le.s32.totalorder 1, %s10
    %p183 = scmp.lt.s32.totalorder %s10, 5
    %p184 = pnand %p182, %p183
    %p185 = pneg %p184
    // Predicated region
    $region33: #{inverted_residual_forward.9} parent=5 // pred_check
      _
    $region34: #{inverted_residual_forward.9} parent=5 // pred_check_branch
      %187 = sbr.rel (%p184) target = $region36
    $region35: #{inverted_residual_forward.9} parent=5 // pred_region
      %s188 = ssub.s32 %s10, 1
      %s189 = smul.u32 4, %s20
      %p190 = scmp.lt.s32.totalorder %s19, 1
      %s191 = scalar_select %p190, %s19, 1
      %p192 = scmp.lt.s32.totalorder %s189, 7
      %s193 = scalar_select %p192, %s189, 7
      %s194 = smul.addr %s191, 8
      %s195 = sadd.s32 %s193, %s194
      %s196 = smul.addr %s195, 8
      %s197 = scalar_lea.vmem %s0, %s196
      %p198 = pneg %p50
      %p199 = pneg %p47
      %p200 = pneg %p71
      %p201 = pneg %p68
      %p202 = pneg %p92
      %p203 = pneg %p89
      %p204 = pneg %p113
      %p205 = pneg %p110
      %p206 = pneg %p141
      %p207 = pneg %p138
      %s208 = smul.u32 4, %s20
      %p209 = scmp.lt.s32.totalorder %s19, 1
      %s210 = scalar_select %p209, %s19, 1
      %p211 = scmp.lt.s32.totalorder %s208, 7
      %s212 = scalar_select %p211, %s208, 7
      %s213 = smul.addr %s210, 8
      %s214 = sadd.s32 %s212, %s213
      %s215 = smul.addr %s214, 8
      %s216 = scalar_lea.vmem %s4, %s215
      %s217 = smul.u32 4, %s20
      %p218 = scmp.lt.s32.totalorder %s19, 1
      %s219 = scalar_select %p218, %s19, 1
      %p220 = scmp.lt.s32.totalorder %s217, 7
      %s221 = scalar_select %p220, %s217, 7
      %s222 = smul.addr %s219, 8
      %s223 = sadd.s32 %s221, %s222
      %s224 = smul.addr %s223, 8
      %s225 = scalar_lea.vmem %s0, %s224
      %s226 = smul.u32 4, %s20
      %s227 = smul.u32 4, %s20
      %p228 = scmp.lt.s32.totalorder %s19, 1
      %s229 = scalar_select %p228, %s19, 1
      %p230 = scmp.lt.s32.totalorder %s227, 7
      %s231 = scalar_select %p230, %s227, 7
      %s232 = smul.addr %s229, 8
      %s233 = sadd.s32 %s231, %s232
      %s234 = smul.addr %s233, 8
      %s235 = scalar_lea.vmem %s4, %s234
      %s236 = smul.u32 4, %s20
      %v237 = vld [vmem:[%s225] sm:$0xff]
      %v238 = vld [vmem:[%s225 + $0x8] sm:$0xff]
      %v239 = vld [vmem:[%s225 + $0x10] sm:$0xff]
      %v240 = vld [vmem:[%s225 + $0x18] sm:$0xff]
      %v241 = vld [vmem:[%s1] sm:$0x1]
      %v242 = vmul.f32 %v241, 0.0078125
      %v243 = vld [vmem:[%s1 + $0x1] sm:$0x1]
      %v244 = vmul.f32 %v243, 0.0078125
      %v245 = vmul.f32 %v242, %v242
      %v246 = vsub.f32 %v244, %v245
      %v247 = vadd.f32 %v246, 1e-05
      %v248 = vrsqrt.pop %v247
      %v249 = vld [vmem:[%s2] sm:$0x1]
      %v250 = vmul.f32 %v248, %v249
      %v251 = vlaneseq
      %v252 = vshrl.u32 %v251, 7
      %v253 = vsub.s32 0, %v252
      %v254 = vrot.slane %v242, %v253
      %v255 = vsub.f32 %v237, %v254
      %v256 = vsub.f32 %v238, %v254
      %v257 = vsub.f32 %v239, %v254
      %v258 = vsub.f32 %v240, %v254
      %v259 = vlaneseq
      %v260 = vshrl.u32 %v259, 7
      %v261 = vsub.s32 0, %v260
      %v262 = vrot.slane %v250, %v261
      %v263 = vmul.f32 %v255, %v262
      %v264 = vmul.f32 %v256, %v262
      %v265 = vmul.f32 %v257, %v262
      %v266 = vmul.f32 %v258, %v262
      %v267 = vld [vmem:[%s3] sm:$0x1]
      %v269 = vlaneseq
      %v270 = vshrl.u32 %v269, 7
      %v271 = vsub.s32 0, %v270
      %v272 = vrot.slane %v267, %v271
      %v274 = vadd.f32 %v263, %v272
      %v275 = vadd.f32 %v264, %v272
      %v276 = vadd.f32 %v265, %v272
      %v277 = vadd.f32 %v266, %v272
      %278 = vst [vmem:[%s235] sm:$0xff] %v274
      %279 = vst [vmem:[%s235 + $0x8] sm:$0xff] %v275
      %280 = vst [vmem:[%s235 + $0x10] sm:$0xff] %v276
      %281 = vst [vmem:[%s235 + $0x18] sm:$0xff] %v277
      %s282 = smul.u32 4, %s20
      %p283 = scmp.lt.s32.totalorder %s19, 1
      %s284 = scalar_select %p283, %s19, 1
      %p285 = scmp.lt.s32.totalorder %s282, 7
      %s286 = scalar_select %p285, %s282, 7
      %s287 = smul.addr %s284, 8
      %s288 = sadd.s32 %s286, %s287
      %s289 = smul.addr %s288, 8
      %s290 = scalar_lea.vmem %s4, %s289
      // Predicated region
      $region37: #{inverted_residual_forward.9} parent=35 // pred_check
        %p291 = pneg %p138
      $region38: #{inverted_residual_forward.9} parent=35 // pred_check_branch
        %293 = sbr.rel (%p291) target = $region40
      $region39: #{inverted_residual_forward.9} parent=35 // pred_region
        %s294 = smul.u32 4, %s20
      $region40: #{inverted_residual_forward.9} parent=35 // pred_fallthru
        _
    $region36: #{inverted_residual_forward.9} parent=5 // pred_fallthru
      _
    %p295 = scmp.le.s32.totalorder 2, %s10
    // Predicated region
    $region41: #{inverted_residual_forward.9} parent=5 // pred_check
      %p296 = pneg %p295
    $region42: #{inverted_residual_forward.9} parent=5 // pred_check_branch
      %298 = sbr.rel (%p296) target = $region44
    $region43: #{inverted_residual_forward.9} parent=5 // pred_region
      %s299 = ssub.s32 %s10, 2
      // Predicated region
      $region45: #{inverted_residual_forward.9} parent=43 // pred_check
        %p300 = pneg %p144
      $region46: #{inverted_residual_forward.9} parent=43 // pred_check_branch
        %302 = sbr.rel (%p300) target = $region48
      $region47: #{inverted_residual_forward.9} parent=43 // pred_region
        %s303 = smul.u32 4, %s22
        %p304 = scmp.lt.s32.totalorder %s21, 1
        %s305 = scalar_select %p304, %s21, 1
        %p306 = scmp.lt.s32.totalorder %s303, 7
        %s307 = scalar_select %p306, %s303, 7
        %s308 = smul.addr %s305, 8
        %s309 = sadd.s32 %s307, %s308
        %s310 = smul.addr %s309, 8
        %s311 = scalar_lea.vmem %s4, %s310
      $region48: #{inverted_residual_forward.9} parent=43 // pred_fallthru
        _
    $region44: #{inverted_residual_forward.9} parent=5 // pred_fallthru
      _
  $region6: #{inverted_residual_forward.9} parent=0 // loop_footer
    %s14 = sadd.s32 1, %s10
  $region7: #{inverted_residual_forward.9} parent=0 // loop_footer_branch
    %9 = sbr.rel target = $region3
  $region8: #{inverted_residual_forward.9} parent=0 // loop_exit
    _

</llo_original>
